<compile_context>
chip_gen: v7x
topology: tpu7x:2x2x1
jax: 0.10.0
libtpu: 0.0.40
codegen_flags: <defaults>
</compile_context>

<pallas_src>
from functools import partial

import jax
import jax.numpy as jnp
import numpy as np
from jax.experimental import pallas as pl
from jax.experimental.pallas import tpu as pltpu


def _leaky_relu(x, negative_slope=0.2):
    # max(x, a*x) == LeakyReLU(a) for 0 < a < 1; 2 VALU ops/elem vs 3 for where().
    return jnp.maximum(x, negative_slope * x)


def _round_up(x, m):
    return (x + m - 1) // m * m


def _max_batch_tile():
    """256-row tiles fill the 256-wide MXU on v6e/v7x; v5e's MXU is 128-wide."""
    try:
        kind = jax.devices()[0].device_kind.lower()
    except Exception:
        return 128
    if "v5 lite" in kind or "v5e" in kind or "v5litepod" in kind:
        return 128
    if "v6" in kind or "v7" in kind or "trillium" in kind:
        return 256
    return 128


_MAX_TILE_B = _max_batch_tile()


def encoder_kernel(x_ref,
                   w1_ref, b1_ref,
                   w2_ref, b2_ref,
                   w3_ref, b3_ref,
                   w4_ref, b4_ref,
                   w5_ref, b5_ref,
                   o_ref):
    # x_ref: (TILE_B, D_in) bf16; weights bf16 (full arrays, VMEM-resident);
    # biases fp32; all accumulation + elementwise math in fp32.
    h = jnp.dot(x_ref[...], w1_ref[...],
                preferred_element_type=jnp.float32) + b1_ref[...]
    h = _leaky_relu(h)

    h = jnp.dot(h.astype(jnp.bfloat16), w2_ref[...],
                preferred_element_type=jnp.float32) + b2_ref[...]
    h = _leaky_relu(h)

    h = jnp.dot(h.astype(jnp.bfloat16), w3_ref[...],
                preferred_element_type=jnp.float32) + b3_ref[...]
    h = _leaky_relu(h)

    h = jnp.dot(h.astype(jnp.bfloat16), w4_ref[...],
                preferred_element_type=jnp.float32) + b4_ref[...]
    h = _leaky_relu(h)

    h = jnp.dot(h.astype(jnp.bfloat16), w5_ref[...],
                preferred_element_type=jnp.float32) + b5_ref[...]
    o_ref[...] = jnp.tanh(h).astype(o_ref.dtype)


def init_encoder_params(key, img_shape, latent_dim):
    """Deterministic init mimicking PyTorch nn.Linear default U(-k, k), k=1/sqrt(fan_in)."""
    d_in = int(np.prod(img_shape))
    dims = [d_in, 1024, 512, 256, 128, latent_dim]
    params = []
    for i in range(5):
        fan_in, fan_out = dims[i], dims[i + 1]
        key, kw, kb = jax.random.split(key, 3)
        bound = 1.0 / np.sqrt(fan_in)
        w = jax.random.uniform(kw, (fan_in, fan_out), jnp.float32, -bound, bound)
        b = jax.random.uniform(kb, (1, fan_out), jnp.float32, -bound, bound)
        params.append((w, b))
    return params


def prepare_encoder_params(params, latent_dim):
    """One-time conversion to the kernel's layout: bf16 weights, fp32 biases,
    last layer padded to a lane-dense multiple of 128.  Do this ONCE at init;
    the jitted forward then streams these arrays directly with no per-call
    cast/pad HBM traffic."""
    latent_pad = _round_up(latent_dim, 128)
    flat = []
    for li, (w, b) in enumerate(params):
        if li == 4 and latent_pad != latent_dim:
            w = jnp.pad(w, ((0, 0), (0, latent_pad - latent_dim)))
            b = jnp.pad(b, ((0, 0), (0, latent_pad - latent_dim)))
        flat.append(jnp.asarray(w, jnp.bfloat16))   # bf16 weight stream
        flat.append(jnp.asarray(b, jnp.float32))    # fp32 bias add
    return tuple(flat)


@partial(jax.jit, static_argnames=("latent_dim",))
def encoder_forward(img, prepared_params, latent_dim):
    B = img.shape[0]
    x = img.reshape(B, -1).astype(jnp.bfloat16)            # img.view(B, -1)
    d_in = x.shape[1]
    latent_pad = prepared_params[-1].shape[-1]              # lane-padded latent

    # ---- batch tiling: bf16-friendly tiles (16 sublanes / vreg) ------------
    if B >= 256 and _MAX_TILE_B >= 256:
        tile_b = 256                                        # fills v6e/v7x MXU
    elif B >= 128:
        tile_b = 128
    else:
        tile_b = _round_up(max(B, 16), 16)
    b_pad = _round_up(B, tile_b)
    if b_pad != B:
        x = jnp.pad(x, ((0, b_pad - B), (0, 0)))

    # ---- BlockSpecs ---------------------------------------------------------
    # x / out: tiled over the batch grid. Weights/biases: full-array blocks
    # with constant index_map -> DMA'd once, resident across grid steps.
    in_specs = [pl.BlockSpec((tile_b, d_in), lambda i: (i, 0))]
    for p in prepared_params:
        in_specs.append(pl.BlockSpec(p.shape, lambda i: (0, 0)))
    out_specs = pl.BlockSpec((tile_b, latent_pad), lambda i: (i, 0))

    # ---- VMEM budget: actual footprint + headroom, well below v7x's 64 MiB --
    weight_bytes = sum(int(np.prod(p.shape)) * p.dtype.itemsize
                       for p in prepared_params)
    io_bytes = 2 * (tile_b * d_in * 2 + tile_b * latent_pad * 4)   # double-buffered tiles
    vmem_limit = int(min(2 * weight_bytes + io_bytes + (8 << 20), 48 << 20))

    out = pl.pallas_call(
        encoder_kernel,
        out_shape=jax.ShapeDtypeStruct((b_pad, latent_pad), jnp.float32),
        grid=(b_pad // tile_b,),
        in_specs=in_specs,
        out_specs=out_specs,
        compiler_params=pltpu.CompilerParams(
            dimension_semantics=("parallel",),
            vmem_limit_bytes=vmem_limit,
        ),
    )(x, *prepared_params)

    return out[:B, :latent_dim]


def encoder_reference(img, params, use_bf16=True):
    """Pure-JAX reference. With use_bf16=True it mirrors the kernel's mixed
    precision (bf16 matmul inputs, fp32 accumulation / elementwise math)."""
    h32 = img.reshape(img.shape[0], -1).astype(jnp.float32)
    for i, (w, b) in enumerate(params):
        if use_bf16:
            h32 = jnp.dot(h32.astype(jnp.bfloat16), w.astype(jnp.bfloat16),
                          preferred_element_type=jnp.float32) + b
        else:
            h32 = h32 @ w + b
        h32 = _leaky_relu(h32) if i < 4 else jnp.tanh(h32)
    return h32


if __name__ == "__main__":
    key = jax.random.PRNGKey(0)

    img_shape = (4, 16, 16)   # (C, H, W) -> prod = 1024
    latent_dim = 32
    batch = 2

    key, k_img, k_params = jax.random.split(key, 3)
    img = jax.random.normal(k_img, (batch,) + img_shape, jnp.float32)  # NCHW
    params = init_encoder_params(k_params, img_shape, latent_dim)

    # One-time weight preparation (bf16 cast + lane padding), kept across calls.
    prepared = prepare_encoder_params(params, latent_dim)
    prepared = jax.block_until_ready(prepared)

    out = encoder_forward(img, prepared, latent_dim)
    out = jax.block_until_ready(out)

    # Check against a reference that mirrors the kernel's bf16/fp32 mixed
    # precision (tight), and sanity-check vs the pure-fp32 module (loose).
    ref_mixed = encoder_reference(img, params, use_bf16=True)
    np.testing.assert_allclose(np.asarray(out), np.asarray(ref_mixed),
                               rtol=1e-2, atol=1e-2)
    ref_fp32 = encoder_reference(img, params, use_bf16=False)
    np.testing.assert_allclose(np.asarray(out), np.asarray(ref_fp32),
                               rtol=5e-2, atol=5e-2)

    assert out.shape == (batch, latent_dim)
    print("KERNEL_OK")
</pallas_src>

<mosaic_0001>
module attributes {stable_mosaic.version = 11 : i64} {
  func.func @encoder_kernel(%arg0: i32, %arg1: memref<16x1024xbf16, #tpu.memory_space<vmem>>, %arg2: memref<1024x1024xbf16, #tpu.memory_space<vmem>>, %arg3: memref<1x1024xf32, #tpu.memory_space<vmem>>, %arg4: memref<1024x512xbf16, #tpu.memory_space<vmem>>, %arg5: memref<1x512xf32, #tpu.memory_space<vmem>>, %arg6: memref<512x256xbf16, #tpu.memory_space<vmem>>, %arg7: memref<1x256xf32, #tpu.memory_space<vmem>>, %arg8: memref<256x128xbf16, #tpu.memory_space<vmem>>, %arg9: memref<1x128xf32, #tpu.memory_space<vmem>>, %arg10: memref<128x128xbf16, #tpu.memory_space<vmem>>, %arg11: memref<1x128xf32, #tpu.memory_space<vmem>>, %arg12: memref<16x128xf32, #tpu.memory_space<vmem>>) attributes {dimension_semantics = [#tpu.dimension_semantics<parallel>], iteration_bounds = array<i64: 1>, scalar_prefetch = 0 : i64, scratch_operands = 0 : i64, tpu.core_type = #tpu.core_type<tc>, window_params = [{transform_indices = @transform_0, window_bounds = array<i64: 16, 1024>}, {pipeline_mode = #tpu.pipeline_mode<synchronous>, transform_indices = @transform_1, window_bounds = array<i64: 1024, 1024>}, {pipeline_mode = #tpu.pipeline_mode<synchronous>, transform_indices = @transform_2, window_bounds = array<i64: 1, 1024>}, {pipeline_mode = #tpu.pipeline_mode<synchronous>, transform_indices = @transform_3, window_bounds = array<i64: 1024, 512>}, {pipeline_mode = #tpu.pipeline_mode<synchronous>, transform_indices = @transform_4, window_bounds = array<i64: 1, 512>}, {pipeline_mode = #tpu.pipeline_mode<synchronous>, transform_indices = @transform_5, window_bounds = array<i64: 512, 256>}, {pipeline_mode = #tpu.pipeline_mode<synchronous>, transform_indices = @transform_6, window_bounds = array<i64: 1, 256>}, {pipeline_mode = #tpu.pipeline_mode<synchronous>, transform_indices = @transform_7, window_bounds = array<i64: 256, 128>}, {pipeline_mode = #tpu.pipeline_mode<synchronous>, transform_indices = @transform_8, window_bounds = array<i64: 1, 128>}, {pipeline_mode = #tpu.pipeline_mode<synchronous>, transform_indices = @transform_9, window_bounds = array<i64: 128, 128>}, {pipeline_mode = #tpu.pipeline_mode<synchronous>, transform_indices = @transform_10, window_bounds = array<i64: 1, 128>}, {transform_indices = @transform_11, window_bounds = array<i64: 16, 128>}]} {
    %c0 = arith.constant 0 : index
    %c0_0 = arith.constant 0 : index
    %0 = vector.load %arg1[%c0, %c0_0] : memref<16x1024xbf16, #tpu.memory_space<vmem>>, vector<16x1024xbf16>
    %c0_1 = arith.constant 0 : index
    %c0_2 = arith.constant 0 : index
    %1 = vector.load %arg2[%c0_1, %c0_2] : memref<1024x1024xbf16, #tpu.memory_space<vmem>>, vector<1024x1024xbf16>
    %cst = arith.constant dense<0.000000e+00> : vector<16x1024xf32>
    %2 = tpu.matmul %0, %1, %cst {dimension_numbers = #tpu.dot_dimension_numbers<[1], [0], [0], [1], [0, 0, 1, 1], [], []>} : vector<16x1024xbf16>, vector<1024x1024xbf16>, vector<16x1024xf32> -> vector<16x1024xf32>
    %c0_3 = arith.constant 0 : index
    %c0_4 = arith.constant 0 : index
    %3 = vector.load %arg3[%c0_3, %c0_4] : memref<1x1024xf32, #tpu.memory_space<vmem>>, vector<1x1024xf32>
    %4 = vector.broadcast %3 : vector<1x1024xf32> to vector<16x1024xf32>
    %5 = arith.addf %2, %4 : vector<16x1024xf32>
    %cst_5 = arith.constant 2.000000e-01 : f32
    %6 = vector.broadcast %cst_5 : f32 to vector<16x1024xf32>
    %7 = arith.mulf %6, %5 : vector<16x1024xf32>
    %8 = arith.maximumf %5, %7 : vector<16x1024xf32>
    %9 = arith.truncf %8 : vector<16x1024xf32> to vector<16x1024xbf16>
    %c0_6 = arith.constant 0 : index
    %c0_7 = arith.constant 0 : index
    %10 = vector.load %arg4[%c0_6, %c0_7] : memref<1024x512xbf16, #tpu.memory_space<vmem>>, vector<1024x512xbf16>
    %cst_8 = arith.constant dense<0.000000e+00> : vector<16x512xf32>
    %11 = tpu.matmul %9, %10, %cst_8 {dimension_numbers = #tpu.dot_dimension_numbers<[1], [0], [0], [1], [0, 0, 1, 1], [], []>} : vector<16x1024xbf16>, vector<1024x512xbf16>, vector<16x512xf32> -> vector<16x512xf32>
    %c0_9 = arith.constant 0 : index
    %c0_10 = arith.constant 0 : index
    %12 = vector.load %arg5[%c0_9, %c0_10] : memref<1x512xf32, #tpu.memory_space<vmem>>, vector<1x512xf32>
    %13 = vector.broadcast %12 : vector<1x512xf32> to vector<16x512xf32>
    %14 = arith.addf %11, %13 : vector<16x512xf32>
    %cst_11 = arith.constant 2.000000e-01 : f32
    %15 = vector.broadcast %cst_11 : f32 to vector<16x512xf32>
    %16 = arith.mulf %15, %14 : vector<16x512xf32>
    %17 = arith.maximumf %14, %16 : vector<16x512xf32>
    %18 = arith.truncf %17 : vector<16x512xf32> to vector<16x512xbf16>
    %c0_12 = arith.constant 0 : index
    %c0_13 = arith.constant 0 : index
    %19 = vector.load %arg6[%c0_12, %c0_13] : memref<512x256xbf16, #tpu.memory_space<vmem>>, vector<512x256xbf16>
    %cst_14 = arith.constant dense<0.000000e+00> : vector<16x256xf32>
    %20 = tpu.matmul %18, %19, %cst_14 {dimension_numbers = #tpu.dot_dimension_numbers<[1], [0], [0], [1], [0, 0, 1, 1], [], []>} : vector<16x512xbf16>, vector<512x256xbf16>, vector<16x256xf32> -> vector<16x256xf32>
    %c0_15 = arith.constant 0 : index
    %c0_16 = arith.constant 0 : index
    %21 = vector.load %arg7[%c0_15, %c0_16] : memref<1x256xf32, #tpu.memory_space<vmem>>, vector<1x256xf32>
    %22 = vector.broadcast %21 : vector<1x256xf32> to vector<16x256xf32>
    %23 = arith.addf %20, %22 : vector<16x256xf32>
    %cst_17 = arith.constant 2.000000e-01 : f32
    %24 = vector.broadcast %cst_17 : f32 to vector<16x256xf32>
    %25 = arith.mulf %24, %23 : vector<16x256xf32>
    %26 = arith.maximumf %23, %25 : vector<16x256xf32>
    %27 = arith.truncf %26 : vector<16x256xf32> to vector<16x256xbf16>
    %c0_18 = arith.constant 0 : index
    %c0_19 = arith.constant 0 : index
    %28 = vector.load %arg8[%c0_18, %c0_19] : memref<256x128xbf16, #tpu.memory_space<vmem>>, vector<256x128xbf16>
    %cst_20 = arith.constant dense<0.000000e+00> : vector<16x128xf32>
    %29 = tpu.matmul %27, %28, %cst_20 {dimension_numbers = #tpu.dot_dimension_numbers<[1], [0], [0], [1], [0, 0, 1, 1], [], []>} : vector<16x256xbf16>, vector<256x128xbf16>, vector<16x128xf32> -> vector<16x128xf32>
    %c0_21 = arith.constant 0 : index
    %c0_22 = arith.constant 0 : index
    %30 = vector.load %arg9[%c0_21, %c0_22] : memref<1x128xf32, #tpu.memory_space<vmem>>, vector<1x128xf32>
    %31 = vector.broadcast %30 : vector<1x128xf32> to vector<16x128xf32>
    %32 = arith.addf %29, %31 : vector<16x128xf32>
    %cst_23 = arith.constant 2.000000e-01 : f32
    %33 = vector.broadcast %cst_23 : f32 to vector<16x128xf32>
    %34 = arith.mulf %33, %32 : vector<16x128xf32>
    %35 = arith.maximumf %32, %34 : vector<16x128xf32>
    %36 = arith.truncf %35 : vector<16x128xf32> to vector<16x128xbf16>
    %c0_24 = arith.constant 0 : index
    %c0_25 = arith.constant 0 : index
    %37 = vector.load %arg10[%c0_24, %c0_25] : memref<128x128xbf16, #tpu.memory_space<vmem>>, vector<128x128xbf16>
    %cst_26 = arith.constant dense<0.000000e+00> : vector<16x128xf32>
    %38 = tpu.matmul %36, %37, %cst_26 {dimension_numbers = #tpu.dot_dimension_numbers<[1], [0], [0], [1], [0, 0, 1, 1], [], []>} : vector<16x128xbf16>, vector<128x128xbf16>, vector<16x128xf32> -> vector<16x128xf32>
    %c0_27 = arith.constant 0 : index
    %c0_28 = arith.constant 0 : index
    %39 = vector.load %arg11[%c0_27, %c0_28] : memref<1x128xf32, #tpu.memory_space<vmem>>, vector<1x128xf32>
    %40 = vector.broadcast %39 : vector<1x128xf32> to vector<16x128xf32>
    %41 = arith.addf %38, %40 : vector<16x128xf32>
    %42 = math.tanh %41 : vector<16x128xf32>
    %c0_29 = arith.constant 0 : index
    %c0_30 = arith.constant 0 : index
    %43 = vector.load %arg12[%c0_29, %c0_30] : memref<16x128xf32, #tpu.memory_space<vmem>>, vector<16x128xf32>
    tpu.vector_store %arg12[%c0_29, %c0_30], %42 {strides = array<i32>} : memref<16x128xf32, #tpu.memory_space<vmem>>, vector<16x128xf32>,
    return
  }
  func.func @transform_0(%arg0: i32) -> (i32, i32) {
    %c0_i32 = arith.constant 0 : i32
    %c0_i32_0 = arith.constant 0 : i32
    return %arg0, %c0_i32 : i32, i32
  }
  func.func @transform_1(%arg0: i32) -> (i32, i32) {
    %c0_i32 = arith.constant 0 : i32
    %c0_i32_0 = arith.constant 0 : i32
    %c0_i32_1 = arith.constant 0 : i32
    return %c0_i32, %c0_i32_0 : i32, i32
  }
  func.func @transform_2(%arg0: i32) -> (i32, i32) {
    %c0_i32 = arith.constant 0 : i32
    %c0_i32_0 = arith.constant 0 : i32
    %c0_i32_1 = arith.constant 0 : i32
    return %c0_i32, %c0_i32_0 : i32, i32
  }
  func.func @transform_3(%arg0: i32) -> (i32, i32) {
    %c0_i32 = arith.constant 0 : i32
    %c0_i32_0 = arith.constant 0 : i32
    %c0_i32_1 = arith.constant 0 : i32
    return %c0_i32, %c0_i32_0 : i32, i32
  }
  func.func @transform_4(%arg0: i32) -> (i32, i32) {
    %c0_i32 = arith.constant 0 : i32
    %c0_i32_0 = arith.constant 0 : i32
    %c0_i32_1 = arith.constant 0 : i32
    return %c0_i32, %c0_i32_0 : i32, i32
  }
  func.func @transform_5(%arg0: i32) -> (i32, i32) {
    %c0_i32 = arith.constant 0 : i32
    %c0_i32_0 = arith.constant 0 : i32
    %c0_i32_1 = arith.constant 0 : i32
    return %c0_i32, %c0_i32_0 : i32, i32
  }
  func.func @transform_6(%arg0: i32) -> (i32, i32) {
    %c0_i32 = arith.constant 0 : i32
    %c0_i32_0 = arith.constant 0 : i32
    %c0_i32_1 = arith.constant 0 : i32
    return %c0_i32, %c0_i32_0 : i32, i32
  }
  func.func @transform_7(%arg0: i32) -> (i32, i32) {
    %c0_i32 = arith.constant 0 : i32
    %c0_i32_0 = arith.constant 0 : i32
    %c0_i32_1 = arith.constant 0 : i32
    return %c0_i32, %c0_i32_0 : i32, i32
  }
  func.func @transform_8(%arg0: i32) -> (i32, i32) {
    %c0_i32 = arith.constant 0 : i32
    %c0_i32_0 = arith.constant 0 : i32
    %c0_i32_1 = arith.constant 0 : i32
    return %c0_i32, %c0_i32_0 : i32, i32
  }
  func.func @transform_9(%arg0: i32) -> (i32, i32) {
    %c0_i32 = arith.constant 0 : i32
    %c0_i32_0 = arith.constant 0 : i32
    %c0_i32_1 = arith.constant 0 : i32
    return %c0_i32, %c0_i32_0 : i32, i32
  }
  func.func @transform_10(%arg0: i32) -> (i32, i32) {
    %c0_i32 = arith.constant 0 : i32
    %c0_i32_0 = arith.constant 0 : i32
    %c0_i32_1 = arith.constant 0 : i32
    return %c0_i32, %c0_i32_0 : i32, i32
  }
  func.func @transform_11(%arg0: i32) -> (i32, i32) {
    %c0_i32 = arith.constant 0 : i32
    %c0_i32_0 = arith.constant 0 : i32
    return %arg0, %c0_i32 : i32, i32
  }
}

</mosaic_0001>

<llo_original>
// kernel: encoder_forward.1
$region0: #{encoder_forward.1}
  #allocation0 [shape = 'u32[]', space=smem, size = 0x4, offset = 0x4, fixed_abs, tag = 'smem constant byte address 0x4 - core index']
  #allocation1 [shape = 'u32[144,128]{1,0:T(1,128)}', space=vmem, size = 0x12000, scoped, tag = 'internal scratch']
  %s0 = inlined_call_operand.vmem [shape: bf16[16,1024], index: 0, kind: input, shape index: {}]
  %s1 = inlined_call_operand.hbm [shape: bf16[1024,1024], index: 1, kind: input, shape index: {}]
  %s2 = inlined_call_operand.hbm [shape: f32[1,1024], index: 2, kind: input, shape index: {}]
  %s3 = inlined_call_operand.hbm [shape: bf16[1024,512], index: 3, kind: input, shape index: {}]
  %s4 = inlined_call_operand.hbm [shape: f32[1,512], index: 4, kind: input, shape index: {}]
  %s5 = inlined_call_operand.hbm [shape: bf16[512,256], index: 5, kind: input, shape index: {}]
  %s6 = inlined_call_operand.hbm [shape: f32[1,256], index: 6, kind: input, shape index: {}]
  %s7 = inlined_call_operand.hbm [shape: bf16[256,128], index: 7, kind: input, shape index: {}]
  %s8 = inlined_call_operand.hbm [shape: f32[1,128], index: 8, kind: input, shape index: {}]
  %s9 = inlined_call_operand.hbm [shape: bf16[128,128], index: 9, kind: input, shape index: {}]
  %s10 = inlined_call_operand.hbm [shape: f32[1,128], index: 10, kind: input, shape index: {}]
  %s11 = inlined_call_operand.vmem [shape: f32[16,128], index: 11, kind: output, shape index: {}]
  %s12 = sld [smem:[#allocation0]]
  $region94: #{encoder_forward.1} parent=0
    _
  %s14 = ssub.s32 1, %s12
  %s15 = scalar_select 0, %s14, %s12
  $region1: #{encoder_forward.1} parent=0
    #allocation2 [shape = 'u8[2097152]{0}', space=vmem, size = 0x200000, scoped, tag = 'input window, operand 1, single buffered']
    #allocation3 [shape = 's32[1]{0}', space=sflag, size = 0x4, scoped, tag = 'scoped memory for encoder_forward.1']
    #allocation4 [shape = 'u8[4096]{0}', space=vmem, size = 0x1000, scoped, tag = 'input window, operand 2, single buffered']
    #allocation5 [shape = 's32[1]{0}', space=sflag, size = 0x4, scoped, tag = 'scoped memory for encoder_forward.1']
    #allocation6 [shape = 'u8[1048576]{0}', space=vmem, size = 0x100000, scoped, tag = 'input window, operand 3, single buffered']
    #allocation7 [shape = 'u8[2048]{0}', space=vmem, size = 0x800, scoped, tag = 'input window, operand 4, single buffered']
    #allocation8 [shape = 's32[1]{0}', space=sflag, size = 0x4, scoped, tag = 'scoped memory for encoder_forward.1']
    #allocation9 [shape = 'u8[262144]{0}', space=vmem, size = 0x40000, scoped, tag = 'input window, operand 5, single buffered']
    #allocation10 [shape = 'u8[1024]{0}', space=vmem, size = 0x400, scoped, tag = 'input window, operand 6, single buffered']
    #allocation11 [shape = 's32[1]{0}', space=sflag, size = 0x4, scoped, tag = 'scoped memory for encoder_forward.1']
    #allocation12 [shape = 'u8[65536]{0}', space=vmem, size = 0x10000, scoped, tag = 'input window, operand 7, single buffered']
    #allocation13 [shape = 'u8[512]{0}', space=vmem, size = 0x400, scoped, tag = 'input window, operand 8, single buffered']
    #allocation14 [shape = 's32[1]{0}', space=sflag, size = 0x4, scoped, tag = 'scoped memory for encoder_forward.1']
    #allocation15 [shape = 'u8[32768]{0}', space=vmem, size = 0x8000, scoped, tag = 'input window, operand 9, single buffered']
    #allocation16 [shape = 'u8[512]{0}', space=vmem, size = 0x400, scoped, tag = 'input window, operand 10, single buffered']
    #allocation17 [shape = 's32[1]{0}', space=sflag, size = 0x4, scoped, tag = 'scoped memory for encoder_forward.1']
    %16 = vsyncpa [#allocation3], 0
    %17 = vsyncpa [#allocation5], 0
    %18 = vsyncpa [#allocation8], 0
    %19 = vsyncpa [#allocation11], 0
    %20 = vsyncpa [#allocation14], 0
    %21 = vsyncpa [#allocation17], 0
    // Predicated region
    $region2: #{encoder_forward.1} parent=1 // pred_check
      _
    $region3: #{encoder_forward.1} parent=1 // pred_check_branch
      %23 = sbr.rel (0) target = $region5
    $region4: #{encoder_forward.1} parent=1 // pred_region
      _
    $region5: #{encoder_forward.1} parent=1 // pred_fallthru
      _
    // Predicated region
    $region6: #{encoder_forward.1} parent=1 // pred_check
      _
    $region7: #{encoder_forward.1} parent=1 // pred_check_branch
      %25 = sbr.rel (0) target = $region9
    $region8: #{encoder_forward.1} parent=1 // pred_region
      %s27 = ssub.s32 65536, 65536
      %28 = vsyncadd [#allocation3], %s27
      %s29 = sshll.u32 [#allocation2], 4
      %s30 = int_to_ptr.vmem [resolvable:$true] %s29
      %35 = dma.hbm_to_vmem [thread:$0]  %s1, 65536, %s30, [#allocation3], 512, 512, 32
    $region9: #{encoder_forward.1} parent=1 // pred_fallthru
      _
    // Predicated region
    $region10: #{encoder_forward.1} parent=1 // pred_check
      _
    $region11: #{encoder_forward.1} parent=1 // pred_check_branch
      %37 = sbr.rel (0) target = $region13
    $region12: #{encoder_forward.1} parent=1 // pred_region
      %s39 = ssub.s32 128, 128
      %40 = vsyncadd [#allocation5], %s39
      %s42 = sshll.u32 [#allocation4], 4
      %s43 = int_to_ptr.vmem [resolvable:$true] %s42
      %45 = dma.hbm_to_vmem [thread:$0]  %s2, 128, %s43, [#allocation5]
    $region13: #{encoder_forward.1} parent=1 // pred_fallthru
      _
    // Predicated region
    $region14: #{encoder_forward.1} parent=1 // pred_check
      _
    $region15: #{encoder_forward.1} parent=1 // pred_check_branch
      %47 = sbr.rel (0) target = $region17
    $region16: #{encoder_forward.1} parent=1 // pred_region
      %s49 = ssub.s32 32768, 32768
      %50 = vsyncadd [#allocation5], %s49
      %s51 = sshll.u32 [#allocation6], 4
      %s52 = int_to_ptr.vmem [resolvable:$true] %s51
      %57 = dma.hbm_to_vmem [thread:$0]  %s3, 32768, %s52, [#allocation5], 256, 256, 16
    $region17: #{encoder_forward.1} parent=1 // pred_fallthru
      _
    // Predicated region
    $region18: #{encoder_forward.1} parent=1 // pred_check
      _
    $region19: #{encoder_forward.1} parent=1 // pred_check_branch
      %59 = sbr.rel (0) target = $region21
    $region20: #{encoder_forward.1} parent=1 // pred_region
      %s61 = ssub.s32 64, 64
      %62 = vsyncadd [#allocation8], %s61
      %s64 = sshll.u32 [#allocation7], 4
      %s65 = int_to_ptr.vmem [resolvable:$true] %s64
      %67 = dma.hbm_to_vmem [thread:$0]  %s4, 64, %s65, [#allocation8]
    $region21: #{encoder_forward.1} parent=1 // pred_fallthru
      _
    // Predicated region
    $region22: #{encoder_forward.1} parent=1 // pred_check
      _
    $region23: #{encoder_forward.1} parent=1 // pred_check_branch
      %69 = sbr.rel (0) target = $region25
    $region24: #{encoder_forward.1} parent=1 // pred_region
      %s71 = ssub.s32 8192, 8192
      %72 = vsyncadd [#allocation8], %s71
      %s73 = sshll.u32 [#allocation9], 4
      %s74 = int_to_ptr.vmem [resolvable:$true] %s73
      %79 = dma.hbm_to_vmem [thread:$0]  %s5, 8192, %s74, [#allocation8], 128, 128, 8
    $region25: #{encoder_forward.1} parent=1 // pred_fallthru
      _
    // Predicated region
    $region26: #{encoder_forward.1} parent=1 // pred_check
      _
    $region27: #{encoder_forward.1} parent=1 // pred_check_branch
      %81 = sbr.rel (0) target = $region29
    $region28: #{encoder_forward.1} parent=1 // pred_region
      %s83 = ssub.s32 32, 32
      %84 = vsyncadd [#allocation11], %s83
      %s86 = sshll.u32 [#allocation10], 4
      %s87 = int_to_ptr.vmem [resolvable:$true] %s86
      %89 = dma.hbm_to_vmem [thread:$0]  %s6, 32, %s87, [#allocation11]
    $region29: #{encoder_forward.1} parent=1 // pred_fallthru
      _
    // Predicated region
    $region30: #{encoder_forward.1} parent=1 // pred_check
      _
    $region31: #{encoder_forward.1} parent=1 // pred_check_branch
      %91 = sbr.rel (0) target = $region33
    $region32: #{encoder_forward.1} parent=1 // pred_region
      %s93 = ssub.s32 2048, 2048
      %94 = vsyncadd [#allocation11], %s93
      %s95 = sshll.u32 [#allocation12], 4
      %s96 = int_to_ptr.vmem [resolvable:$true] %s95
      %101 = dma.hbm_to_vmem [thread:$0]  %s7, 2048, %s96, [#allocation11], 64, 64, 4
    $region33: #{encoder_forward.1} parent=1 // pred_fallthru
      _
    // Predicated region
    $region34: #{encoder_forward.1} parent=1 // pred_check
      _
    $region35: #{encoder_forward.1} parent=1 // pred_check_branch
      %103 = sbr.rel (0) target = $region37
    $region36: #{encoder_forward.1} parent=1 // pred_region
      %s105 = ssub.s32 16, 16
      %106 = vsyncadd [#allocation14], %s105
      %s108 = sshll.u32 [#allocation13], 4
      %s109 = int_to_ptr.vmem [resolvable:$true] %s108
      %111 = dma.hbm_to_vmem [thread:$0]  %s8, 16, %s109, [#allocation14]
    $region37: #{encoder_forward.1} parent=1 // pred_fallthru
      _
    // Predicated region
    $region38: #{encoder_forward.1} parent=1 // pred_check
      _
    $region39: #{encoder_forward.1} parent=1 // pred_check_branch
      %113 = sbr.rel (0) target = $region41
    $region40: #{encoder_forward.1} parent=1 // pred_region
      %s115 = ssub.s32 1024, 1024
      %116 = vsyncadd [#allocation14], %s115
      %s117 = sshll.u32 [#allocation15], 4
      %s118 = int_to_ptr.vmem [resolvable:$true] %s117
      %123 = dma.hbm_to_vmem [thread:$0]  %s9, 1024, %s118, [#allocation14], 64, 64, 4
    $region41: #{encoder_forward.1} parent=1 // pred_fallthru
      _
    // Predicated region
    $region42: #{encoder_forward.1} parent=1 // pred_check
      _
    $region43: #{encoder_forward.1} parent=1 // pred_check_branch
      %125 = sbr.rel (0) target = $region45
    $region44: #{encoder_forward.1} parent=1 // pred_region
      %s127 = ssub.s32 16, 16
      %128 = vsyncadd [#allocation17], %s127
      %s130 = sshll.u32 [#allocation16], 4
      %s131 = int_to_ptr.vmem [resolvable:$true] %s130
      %133 = dma.hbm_to_vmem [thread:$0]  %s10, 16, %s131, [#allocation17]
    $region45: #{encoder_forward.1} parent=1 // pred_fallthru
      _
    // Predicated region
    $region46: #{encoder_forward.1} parent=1 // pred_check
      _
    $region47: #{encoder_forward.1} parent=1 // pred_check_branch
      %135 = sbr.rel (0) target = $region49
    $region48: #{encoder_forward.1} parent=1 // pred_region
      %136 = dma.done [#allocation3], 65536
    $region49: #{encoder_forward.1} parent=1 // pred_fallthru
      _
    // Predicated region
    $region50: #{encoder_forward.1} parent=1 // pred_check
      _
    $region51: #{encoder_forward.1} parent=1 // pred_check_branch
      %138 = sbr.rel (0) target = $region53
    $region52: #{encoder_forward.1} parent=1 // pred_region
      %139 = dma.done [#allocation5], 128
    $region53: #{encoder_forward.1} parent=1 // pred_fallthru
      _
    // Predicated region
    $region54: #{encoder_forward.1} parent=1 // pred_check
      _
    $region55: #{encoder_forward.1} parent=1 // pred_check_branch
      %141 = sbr.rel (0) target = $region57
    $region56: #{encoder_forward.1} parent=1 // pred_region
      %142 = dma.done [#allocation5], 32768
    $region57: #{encoder_forward.1} parent=1 // pred_fallthru
      _
    // Predicated region
    $region58: #{encoder_forward.1} parent=1 // pred_check
      _
    $region59: #{encoder_forward.1} parent=1 // pred_check_branch
      %144 = sbr.rel (0) target = $region61
    $region60: #{encoder_forward.1} parent=1 // pred_region
      %145 = dma.done [#allocation8], 64
    $region61: #{encoder_forward.1} parent=1 // pred_fallthru
      _
    // Predicated region
    $region62: #{encoder_forward.1} parent=1 // pred_check
      _
    $region63: #{encoder_forward.1} parent=1 // pred_check_branch
      %147 = sbr.rel (0) target = $region65
    $region64: #{encoder_forward.1} parent=1 // pred_region
      %148 = dma.done [#allocation8], 8192
    $region65: #{encoder_forward.1} parent=1 // pred_fallthru
      _
    // Predicated region
    $region66: #{encoder_forward.1} parent=1 // pred_check
      _
    $region67: #{encoder_forward.1} parent=1 // pred_check_branch
      %150 = sbr.rel (0) target = $region69
    $region68: #{encoder_forward.1} parent=1 // pred_region
      %151 = dma.done [#allocation11], 32
    $region69: #{encoder_forward.1} parent=1 // pred_fallthru
      _
    // Predicated region
    $region70: #{encoder_forward.1} parent=1 // pred_check
      _
    $region71: #{encoder_forward.1} parent=1 // pred_check_branch
      %153 = sbr.rel (0) target = $region73
    $region72: #{encoder_forward.1} parent=1 // pred_region
      %154 = dma.done [#allocation11], 2048
    $region73: #{encoder_forward.1} parent=1 // pred_fallthru
      _
    // Predicated region
    $region74: #{encoder_forward.1} parent=1 // pred_check
      _
    $region75: #{encoder_forward.1} parent=1 // pred_check_branch
      %156 = sbr.rel (0) target = $region77
    $region76: #{encoder_forward.1} parent=1 // pred_region
      %157 = dma.done [#allocation14], 16
    $region77: #{encoder_forward.1} parent=1 // pred_fallthru
      _
    // Predicated region
    $region78: #{encoder_forward.1} parent=1 // pred_check
      _
    $region79: #{encoder_forward.1} parent=1 // pred_check_branch
      %159 = sbr.rel (0) target = $region81
    $region80: #{encoder_forward.1} parent=1 // pred_region
      %160 = dma.done [#allocation14], 1024
    $region81: #{encoder_forward.1} parent=1 // pred_fallthru
      _
    // Predicated region
    $region82: #{encoder_forward.1} parent=1 // pred_check
      _
    $region83: #{encoder_forward.1} parent=1 // pred_check_branch
      %162 = sbr.rel (0) target = $region85
    $region84: #{encoder_forward.1} parent=1 // pred_region
      %163 = dma.done [#allocation17], 16
    $region85: #{encoder_forward.1} parent=1 // pred_fallthru
      _
    %v165 = vld [vmem:[%s0] sm:$0xff]
    %v166 = vld [vmem:[%s0 + $0x8] sm:$0xff]
    %v167 = vld [vmem:[%s0 + $0x10] sm:$0xff]
    %v168 = vld [vmem:[%s0 + $0x18] sm:$0xff]
    %v169 = vld [vmem:[%s0 + $0x20] sm:$0xff]
    %v170 = vld [vmem:[%s0 + $0x28] sm:$0xff]
    %v171 = vld [vmem:[%s0 + $0x30] sm:$0xff]
    %v172 = vld [vmem:[%s0 + $0x38] sm:$0xff]
    %v173 = vld [vmem:[#allocation2] sm:$0xff]
    %v174 = vld [vmem:[#allocation2 + $0x8] sm:$0xff]
    %v175 = vld [vmem:[#allocation2 + $0x10] sm:$0xff]
    %v176 = vld [vmem:[#allocation2 + $0x18] sm:$0xff]
    %v177 = vld [vmem:[#allocation2 + $0x20] sm:$0xff]
    %v178 = vld [vmem:[#allocation2 + $0x28] sm:$0xff]
    %v179 = vld [vmem:[#allocation2 + $0x30] sm:$0xff]
    %v180 = vld [vmem:[#allocation2 + $0x38] sm:$0xff]
    %v181 = vld [vmem:[#allocation2 + $0x40] sm:$0xff]
    %v182 = vld [vmem:[#allocation2 + $0x48] sm:$0xff]
    %v183 = vld [vmem:[#allocation2 + $0x50] sm:$0xff]
    %v184 = vld [vmem:[#allocation2 + $0x58] sm:$0xff]
    %v185 = vld [vmem:[#allocation2 + $0x60] sm:$0xff]
    %v186 = vld [vmem:[#allocation2 + $0x68] sm:$0xff]
    %v187 = vld [vmem:[#allocation2 + $0x70] sm:$0xff]
    %v188 = vld [vmem:[#allocation2 + $0x78] sm:$0xff]
    %v189 = vld [vmem:[#allocation2 + $0x80] sm:$0xff]
    %v190 = vld [vmem:[#allocation2 + $0x88] sm:$0xff]
    %v191 = vld [vmem:[#allocation2 + $0x90] sm:$0xff]
    %v192 = vld [vmem:[#allocation2 + $0x98] sm:$0xff]
    %v193 = vld [vmem:[#allocation2 + $0xa0] sm:$0xff]
    %v194 = vld [vmem:[#allocation2 + $0xa8] sm:$0xff]
    %v195 = vld [vmem:[#allocation2 + $0xb0] sm:$0xff]
    %v196 = vld [vmem:[#allocation2 + $0xb8] sm:$0xff]
    %v197 = vld [vmem:[#allocation2 + $0xc0] sm:$0xff]
    %v198 = vld [vmem:[#allocation2 + $0xc8] sm:$0xff]
    %v199 = vld [vmem:[#allocation2 + $0xd0] sm:$0xff]
    %v200 = vld [vmem:[#allocation2 + $0xd8] sm:$0xff]
    %v201 = vld [vmem:[#allocation2 + $0xe0] sm:$0xff]
    %v202 = vld [vmem:[#allocation2 + $0xe8] sm:$0xff]
    %v203 = vld [vmem:[#allocation2 + $0xf0] sm:$0xff]
    %v204 = vld [vmem:[#allocation2 + $0xf8] sm:$0xff]
    %v205 = vld [vmem:[#allocation2 + $0x100] sm:$0xff]
    %v206 = vld [vmem:[#allocation2 + $0x108] sm:$0xff]
    %v207 = vld [vmem:[#allocation2 + $0x110] sm:$0xff]
    %v208 = vld [vmem:[#allocation2 + $0x118] sm:$0xff]
    %v209 = vld [vmem:[#allocation2 + $0x120] sm:$0xff]
    %v210 = vld [vmem:[#allocation2 + $0x128] sm:$0xff]
    %v211 = vld [vmem:[#allocation2 + $0x130] sm:$0xff]
    %v212 = vld [vmem:[#allocation2 + $0x138] sm:$0xff]
    %v213 = vld [vmem:[#allocation2 + $0x140] sm:$0xff]
    %v214 = vld [vmem:[#allocation2 + $0x148] sm:$0xff]
    %v215 = vld [vmem:[#allocation2 + $0x150] sm:$0xff]
    %v216 = vld [vmem:[#allocation2 + $0x158] sm:$0xff]
    %v217 = vld [vmem:[#allocation2 + $0x160] sm:$0xff]
    %v218 = vld [vmem:[#allocation2 + $0x168] sm:$0xff]
    %v219 = vld [vmem:[#allocation2 + $0x170] sm:$0xff]
    %v220 = vld [vmem:[#allocation2 + $0x178] sm:$0xff]
    %v221 = vld [vmem:[#allocation2 + $0x180] sm:$0xff]
    %v222 = vld [vmem:[#allocation2 + $0x188] sm:$0xff]
    %v223 = vld [vmem:[#allocation2 + $0x190] sm:$0xff]
    %v224 = vld [vmem:[#allocation2 + $0x198] sm:$0xff]
    %v225 = vld [vmem:[#allocation2 + $0x1a0] sm:$0xff]
    %v226 = vld [vmem:[#allocation2 + $0x1a8] sm:$0xff]
    %v227 = vld [vmem:[#allocation2 + $0x1b0] sm:$0xff]
    %v228 = vld [vmem:[#allocation2 + $0x1b8] sm:$0xff]
    %v229 = vld [vmem:[#allocation2 + $0x1c0] sm:$0xff]
    %v230 = vld [vmem:[#allocation2 + $0x1c8] sm:$0xff]
    %v231 = vld [vmem:[#allocation2 + $0x1d0] sm:$0xff]
    %v232 = vld [vmem:[#allocation2 + $0x1d8] sm:$0xff]
    %v233 = vld [vmem:[#allocation2 + $0x1e0] sm:$0xff]
    %v234 = vld [vmem:[#allocation2 + $0x1e8] sm:$0xff]
    %v235 = vld [vmem:[#allocation2 + $0x1f0] sm:$0xff]
    %v236 = vld [vmem:[#allocation2 + $0x1f8] sm:$0xff]
    %v237 = vld [vmem:[#allocation2 + $0x200] sm:$0xff]
    %v238 = vld [vmem:[#allocation2 + $0x208] sm:$0xff]
    %v239 = vld [vmem:[#allocation2 + $0x210] sm:$0xff]
    %v240 = vld [vmem:[#allocation2 + $0x218] sm:$0xff]
    %v241 = vld [vmem:[#allocation2 + $0x220] sm:$0xff]
    %v242 = vld [vmem:[#allocation2 + $0x228] sm:$0xff]
    %v243 = vld [vmem:[#allocation2 + $0x230] sm:$0xff]
    %v244 = vld [vmem:[#allocation2 + $0x238] sm:$0xff]
    %v245 = vld [vmem:[#allocation2 + $0x240] sm:$0xff]
    %v246 = vld [vmem:[#allocation2 + $0x248] sm:$0xff]
    %v247 = vld [vmem:[#allocation2 + $0x250] sm:$0xff]
    %v248 = vld [vmem:[#allocation2 + $0x258] sm:$0xff]
    %v249 = vld [vmem:[#allocation2 + $0x260] sm:$0xff]
    %v250 = vld [vmem:[#allocation2 + $0x268] sm:$0xff]
    %v251 = vld [vmem:[#allocation2 + $0x270] sm:$0xff]
    %v252 = vld [vmem:[#allocation2 + $0x278] sm:$0xff]
    %v253 = vld [vmem:[#allocation2 + $0x280] sm:$0xff]
    %v254 = vld [vmem:[#allocation2 + $0x288] sm:$0xff]
    %v255 = vld [vmem:[#allocation2 + $0x290] sm:$0xff]
    %v256 = vld [vmem:[#allocation2 + $0x298] sm:$0xff]
    %v257 = vld [vmem:[#allocation2 + $0x2a0] sm:$0xff]
    %v258 = vld [vmem:[#allocation2 + $0x2a8] sm:$0xff]
    %v259 = vld [vmem:[#allocation2 + $0x2b0] sm:$0xff]
    %v260 = vld [vmem:[#allocation2 + $0x2b8] sm:$0xff]
    %v261 = vld [vmem:[#allocation2 + $0x2c0] sm:$0xff]
    %v262 = vld [vmem:[#allocation2 + $0x2c8] sm:$0xff]
    %v263 = vld [vmem:[#allocation2 + $0x2d0] sm:$0xff]
    %v264 = vld [vmem:[#allocation2 + $0x2d8] sm:$0xff]
    %v265 = vld [vmem:[#allocation2 + $0x2e0] sm:$0xff]
    %v266 = vld [vmem:[#allocation2 + $0x2e8] sm:$0xff]
    %v267 = vld [vmem:[#allocation2 + $0x2f0] sm:$0xff]
    %v268 = vld [vmem:[#allocation2 + $0x2f8] sm:$0xff]
    %v269 = vld [vmem:[#allocation2 + $0x300] sm:$0xff]
    %v270 = vld [vmem:[#allocation2 + $0x308] sm:$0xff]
    %v271 = vld [vmem:[#allocation2 + $0x310] sm:$0xff]
    %v272 = vld [vmem:[#allocation2 + $0x318] sm:$0xff]
    %v273 = vld [vmem:[#allocation2 + $0x320] sm:$0xff]
    %v274 = vld [vmem:[#allocation2 + $0x328] sm:$0xff]
    %v275 = vld [vmem:[#allocation2 + $0x330] sm:$0xff]
    %v276 = vld [vmem:[#allocation2 + $0x338] sm:$0xff]
    %v277 = vld [vmem:[#allocation2 + $0x340] sm:$0xff]
    %v278 = vld [vmem:[#allocation2 + $0x348] sm:$0xff]
    %v279 = vld [vmem:[#allocation2 + $0x350] sm:$0xff]
    %v280 = vld [vmem:[#allocation2 + $0x358] sm:$0xff]
    %v281 = vld [vmem:[#allocation2 + $0x360] sm:$0xff]
    %v282 = vld [vmem:[#allocation2 + $0x368] sm:$0xff]
    %v283 = vld [vmem:[#allocation2 + $0x370] sm:$0xff]
    %v284 = vld [vmem:[#allocation2 + $0x378] sm:$0xff]
    %v285 = vld [vmem:[#allocation2 + $0x380] sm:$0xff]
    %v286 = vld [vmem:[#allocation2 + $0x388] sm:$0xff]
    %v287 = vld [vmem:[#allocation2 + $0x390] sm:$0xff]
    %v288 = vld [vmem:[#allocation2 + $0x398] sm:$0xff]
    %v289 = vld [vmem:[#allocation2 + $0x3a0] sm:$0xff]
    %v290 = vld [vmem:[#allocation2 + $0x3a8] sm:$0xff]
    %v291 = vld [vmem:[#allocation2 + $0x3b0] sm:$0xff]
    %v292 = vld [vmem:[#allocation2 + $0x3b8] sm:$0xff]
    %v293 = vld [vmem:[#allocation2 + $0x3c0] sm:$0xff]
    %v294 = vld [vmem:[#allocation2 + $0x3c8] sm:$0xff]
    %v295 = vld [vmem:[#allocation2 + $0x3d0] sm:$0xff]
    %v296 = vld [vmem:[#allocation2 + $0x3d8] sm:$0xff]
    %v297 = vld [vmem:[#allocation2 + $0x3e0] sm:$0xff]
    %v298 = vld [vmem:[#allocation2 + $0x3e8] sm:$0xff]
    %v299 = vld [vmem:[#allocation2 + $0x3f0] sm:$0xff]
    %v300 = vld [vmem:[#allocation2 + $0x3f8] sm:$0xff]
    %v301 = vld [vmem:[#allocation2 + $0x400] sm:$0xff]
    %v302 = vld [vmem:[#allocation2 + $0x408] sm:$0xff]
    %v303 = vld [vmem:[#allocation2 + $0x410] sm:$0xff]
    %v304 = vld [vmem:[#allocation2 + $0x418] sm:$0xff]
    %v305 = vld [vmem:[#allocation2 + $0x420] sm:$0xff]
    %v306 = vld [vmem:[#allocation2 + $0x428] sm:$0xff]
    %v307 = vld [vmem:[#allocation2 + $0x430] sm:$0xff]
    %v308 = vld [vmem:[#allocation2 + $0x438] sm:$0xff]
    %v309 = vld [vmem:[#allocation2 + $0x440] sm:$0xff]
    %v310 = vld [vmem:[#allocation2 + $0x448] sm:$0xff]
    %v311 = vld [vmem:[#allocation2 + $0x450] sm:$0xff]
    %v312 = vld [vmem:[#allocation2 + $0x458] sm:$0xff]
    %v313 = vld [vmem:[#allocation2 + $0x460] sm:$0xff]
    %v314 = vld [vmem:[#allocation2 + $0x468] sm:$0xff]
    %v315 = vld [vmem:[#allocation2 + $0x470] sm:$0xff]
    %v316 = vld [vmem:[#allocation2 + $0x478] sm:$0xff]
    %v317 = vld [vmem:[#allocation2 + $0x480] sm:$0xff]
    %v318 = vld [vmem:[#allocation2 + $0x488] sm:$0xff]
    %v319 = vld [vmem:[#allocation2 + $0x490] sm:$0xff]
    %v320 = vld [vmem:[#allocation2 + $0x498] sm:$0xff]
    %v321 = vld [vmem:[#allocation2 + $0x4a0] sm:$0xff]
    %v322 = vld [vmem:[#allocation2 + $0x4a8] sm:$0xff]
    %v323 = vld [vmem:[#allocation2 + $0x4b0] sm:$0xff]
    %v324 = vld [vmem:[#allocation2 + $0x4b8] sm:$0xff]
    %v325 = vld [vmem:[#allocation2 + $0x4c0] sm:$0xff]
    %v326 = vld [vmem:[#allocation2 + $0x4c8] sm:$0xff]
    %v327 = vld [vmem:[#allocation2 + $0x4d0] sm:$0xff]
    %v328 = vld [vmem:[#allocation2 + $0x4d8] sm:$0xff]
    %v329 = vld [vmem:[#allocation2 + $0x4e0] sm:$0xff]
    %v330 = vld [vmem:[#allocation2 + $0x4e8] sm:$0xff]
    %v331 = vld [vmem:[#allocation2 + $0x4f0] sm:$0xff]
    %v332 = vld [vmem:[#allocation2 + $0x4f8] sm:$0xff]
    %v333 = vld [vmem:[#allocation2 + $0x500] sm:$0xff]
    %v334 = vld [vmem:[#allocation2 + $0x508] sm:$0xff]
    %v335 = vld [vmem:[#allocation2 + $0x510] sm:$0xff]
    %v336 = vld [vmem:[#allocation2 + $0x518] sm:$0xff]
    %v337 = vld [vmem:[#allocation2 + $0x520] sm:$0xff]
    %v338 = vld [vmem:[#allocation2 + $0x528] sm:$0xff]
    %v339 = vld [vmem:[#allocation2 + $0x530] sm:$0xff]
    %v340 = vld [vmem:[#allocation2 + $0x538] sm:$0xff]
    %v341 = vld [vmem:[#allocation2 + $0x540] sm:$0xff]
    %v342 = vld [vmem:[#allocation2 + $0x548] sm:$0xff]
    %v343 = vld [vmem:[#allocation2 + $0x550] sm:$0xff]
    %v344 = vld [vmem:[#allocation2 + $0x558] sm:$0xff]
    %v345 = vld [vmem:[#allocation2 + $0x560] sm:$0xff]
    %v346 = vld [vmem:[#allocation2 + $0x568] sm:$0xff]
    %v347 = vld [vmem:[#allocation2 + $0x570] sm:$0xff]
    %v348 = vld [vmem:[#allocation2 + $0x578] sm:$0xff]
    %v349 = vld [vmem:[#allocation2 + $0x580] sm:$0xff]
    %v350 = vld [vmem:[#allocation2 + $0x588] sm:$0xff]
    %v351 = vld [vmem:[#allocation2 + $0x590] sm:$0xff]
    %v352 = vld [vmem:[#allocation2 + $0x598] sm:$0xff]
    %v353 = vld [vmem:[#allocation2 + $0x5a0] sm:$0xff]
    %v354 = vld [vmem:[#allocation2 + $0x5a8] sm:$0xff]
    %v355 = vld [vmem:[#allocation2 + $0x5b0] sm:$0xff]
    %v356 = vld [vmem:[#allocation2 + $0x5b8] sm:$0xff]
    %v357 = vld [vmem:[#allocation2 + $0x5c0] sm:$0xff]
    %v358 = vld [vmem:[#allocation2 + $0x5c8] sm:$0xff]
    %v359 = vld [vmem:[#allocation2 + $0x5d0] sm:$0xff]
    %v360 = vld [vmem:[#allocation2 + $0x5d8] sm:$0xff]
    %v361 = vld [vmem:[#allocation2 + $0x5e0] sm:$0xff]
    %v362 = vld [vmem:[#allocation2 + $0x5e8] sm:$0xff]
    %v363 = vld [vmem:[#allocation2 + $0x5f0] sm:$0xff]
    %v364 = vld [vmem:[#allocation2 + $0x5f8] sm:$0xff]
    %v365 = vld [vmem:[#allocation2 + $0x600] sm:$0xff]
    %v366 = vld [vmem:[#allocation2 + $0x608] sm:$0xff]
    %v367 = vld [vmem:[#allocation2 + $0x610] sm:$0xff]
    %v368 = vld [vmem:[#allocation2 + $0x618] sm:$0xff]
    %v369 = vld [vmem:[#allocation2 + $0x620] sm:$0xff]
    %v370 = vld [vmem:[#allocation2 + $0x628] sm:$0xff]
    %v371 = vld [vmem:[#allocation2 + $0x630] sm:$0xff]
    %v372 = vld [vmem:[#allocation2 + $0x638] sm:$0xff]
    %v373 = vld [vmem:[#allocation2 + $0x640] sm:$0xff]
    %v374 = vld [vmem:[#allocation2 + $0x648] sm:$0xff]
    %v375 = vld [vmem:[#allocation2 + $0x650] sm:$0xff]
    %v376 = vld [vmem:[#allocation2 + $0x658] sm:$0xff]
    %v377 = vld [vmem:[#allocation2 + $0x660] sm:$0xff]
    %v378 = vld [vmem:[#allocation2 + $0x668] sm:$0xff]
    %v379 = vld [vmem:[#allocation2 + $0x670] sm:$0xff]
    %v380 = vld [vmem:[#allocation2 + $0x678] sm:$0xff]
    %v381 = vld [vmem:[#allocation2 + $0x680] sm:$0xff]
    %v382 = vld [vmem:[#allocation2 + $0x688] sm:$0xff]
    %v383 = vld [vmem:[#allocation2 + $0x690] sm:$0xff]
    %v384 = vld [vmem:[#allocation2 + $0x698] sm:$0xff]
    %v385 = vld [vmem:[#allocation2 + $0x6a0] sm:$0xff]
    %v386 = vld [vmem:[#allocation2 + $0x6a8] sm:$0xff]
    %v387 = vld [vmem:[#allocation2 + $0x6b0] sm:$0xff]
    %v388 = vld [vmem:[#allocation2 + $0x6b8] sm:$0xff]
    %v389 = vld [vmem:[#allocation2 + $0x6c0] sm:$0xff]
    %v390 = vld [vmem:[#allocation2 + $0x6c8] sm:$0xff]
    %v391 = vld [vmem:[#allocation2 + $0x6d0] sm:$0xff]
    %v392 = vld [vmem:[#allocation2 + $0x6d8] sm:$0xff]
    %v393 = vld [vmem:[#allocation2 + $0x6e0] sm:$0xff]
    %v394 = vld [vmem:[#allocation2 + $0x6e8] sm:$0xff]
    %v395 = vld [vmem:[#allocation2 + $0x6f0] sm:$0xff]
    %v396 = vld [vmem:[#allocation2 + $0x6f8] sm:$0xff]
    %v397 = vld [vmem:[#allocation2 + $0x700] sm:$0xff]
    %v398 = vld [vmem:[#allocation2 + $0x708] sm:$0xff]
    %v399 = vld [vmem:[#allocation2 + $0x710] sm:$0xff]
    %v400 = vld [vmem:[#allocation2 + $0x718] sm:$0xff]
    %v401 = vld [vmem:[#allocation2 + $0x720] sm:$0xff]
    %v402 = vld [vmem:[#allocation2 + $0x728] sm:$0xff]
    %v403 = vld [vmem:[#allocation2 + $0x730] sm:$0xff]
    %v404 = vld [vmem:[#allocation2 + $0x738] sm:$0xff]
    %v405 = vld [vmem:[#allocation2 + $0x740] sm:$0xff]
    %v406 = vld [vmem:[#allocation2 + $0x748] sm:$0xff]
    %v407 = vld [vmem:[#allocation2 + $0x750] sm:$0xff]
    %v408 = vld [vmem:[#allocation2 + $0x758] sm:$0xff]
    %v409 = vld [vmem:[#allocation2 + $0x760] sm:$0xff]
    %v410 = vld [vmem:[#allocation2 + $0x768] sm:$0xff]
    %v411 = vld [vmem:[#allocation2 + $0x770] sm:$0xff]
    %v412 = vld [vmem:[#allocation2 + $0x778] sm:$0xff]
    %v413 = vld [vmem:[#allocation2 + $0x780] sm:$0xff]
    %v414 = vld [vmem:[#allocation2 + $0x788] sm:$0xff]
    %v415 = vld [vmem:[#allocation2 + $0x790] sm:$0xff]
    %v416 = vld [vmem:[#allocation2 + $0x798] sm:$0xff]
    %v417 = vld [vmem:[#allocation2 + $0x7a0] sm:$0xff]
    %v418 = vld [vmem:[#allocation2 + $0x7a8] sm:$0xff]
    %v419 = vld [vmem:[#allocation2 + $0x7b0] sm:$0xff]
    %v420 = vld [vmem:[#allocation2 + $0x7b8] sm:$0xff]
    %v421 = vld [vmem:[#allocation2 + $0x7c0] sm:$0xff]
    %v422 = vld [vmem:[#allocation2 + $0x7c8] sm:$0xff]
    %v423 = vld [vmem:[#allocation2 + $0x7d0] sm:$0xff]
    %v424 = vld [vmem:[#allocation2 + $0x7d8] sm:$0xff]
    %v425 = vld [vmem:[#allocation2 + $0x7e0] sm:$0xff]
    %v426 = vld [vmem:[#allocation2 + $0x7e8] sm:$0xff]
    %v427 = vld [vmem:[#allocation2 + $0x7f0] sm:$0xff]
    %v428 = vld [vmem:[#allocation2 + $0x7f8] sm:$0xff]
    %v429 = vld [vmem:[#allocation2 + $0x800] sm:$0xff]
    %v430 = vld [vmem:[#allocation2 + $0x808] sm:$0xff]
    %v431 = vld [vmem:[#allocation2 + $0x810] sm:$0xff]
    %v432 = vld [vmem:[#allocation2 + $0x818] sm:$0xff]
    %v433 = vld [vmem:[#allocation2 + $0x820] sm:$0xff]
    %v434 = vld [vmem:[#allocation2 + $0x828] sm:$0xff]
    %v435 = vld [vmem:[#allocation2 + $0x830] sm:$0xff]
    %v436 = vld [vmem:[#allocation2 + $0x838] sm:$0xff]
    %v437 = vld [vmem:[#allocation2 + $0x840] sm:$0xff]
    %v438 = vld [vmem:[#allocation2 + $0x848] sm:$0xff]
    %v439 = vld [vmem:[#allocation2 + $0x850] sm:$0xff]
    %v440 = vld [vmem:[#allocation2 + $0x858] sm:$0xff]
    %v441 = vld [vmem:[#allocation2 + $0x860] sm:$0xff]
    %v442 = vld [vmem:[#allocation2 + $0x868] sm:$0xff]
    %v443 = vld [vmem:[#allocation2 + $0x870] sm:$0xff]
    %v444 = vld [vmem:[#allocation2 + $0x878] sm:$0xff]
    %v445 = vld [vmem:[#allocation2 + $0x880] sm:$0xff]
    %v446 = vld [vmem:[#allocation2 + $0x888] sm:$0xff]
    %v447 = vld [vmem:[#allocation2 + $0x890] sm:$0xff]
    %v448 = vld [vmem:[#allocation2 + $0x898] sm:$0xff]
    %v449 = vld [vmem:[#allocation2 + $0x8a0] sm:$0xff]
    %v450 = vld [vmem:[#allocation2 + $0x8a8] sm:$0xff]
    %v451 = vld [vmem:[#allocation2 + $0x8b0] sm:$0xff]
    %v452 = vld [vmem:[#allocation2 + $0x8b8] sm:$0xff]
    %v453 = vld [vmem:[#allocation2 + $0x8c0] sm:$0xff]
    %v454 = vld [vmem:[#allocation2 + $0x8c8] sm:$0xff]
    %v455 = vld [vmem:[#allocation2 + $0x8d0] sm:$0xff]
    %v456 = vld [vmem:[#allocation2 + $0x8d8] sm:$0xff]
    %v457 = vld [vmem:[#allocation2 + $0x8e0] sm:$0xff]
    %v458 = vld [vmem:[#allocation2 + $0x8e8] sm:$0xff]
    %v459 = vld [vmem:[#allocation2 + $0x8f0] sm:$0xff]
    %v460 = vld [vmem:[#allocation2 + $0x8f8] sm:$0xff]
    %v461 = vld [vmem:[#allocation2 + $0x900] sm:$0xff]
    %v462 = vld [vmem:[#allocation2 + $0x908] sm:$0xff]
    %v463 = vld [vmem:[#allocation2 + $0x910] sm:$0xff]
    %v464 = vld [vmem:[#allocation2 + $0x918] sm:$0xff]
    %v465 = vld [vmem:[#allocation2 + $0x920] sm:$0xff]
    %v466 = vld [vmem:[#allocation2 + $0x928] sm:$0xff]
    %v467 = vld [vmem:[#allocation2 + $0x930] sm:$0xff]
    %v468 = vld [vmem:[#allocation2 + $0x938] sm:$0xff]
    %v469 = vld [vmem:[#allocation2 + $0x940] sm:$0xff]
    %v470 = vld [vmem:[#allocation2 + $0x948] sm:$0xff]
    %v471 = vld [vmem:[#allocation2 + $0x950] sm:$0xff]
    %v472 = vld [vmem:[#allocation2 + $0x958] sm:$0xff]
    %v473 = vld [vmem:[#allocation2 + $0x960] sm:$0xff]
    %v474 = vld [vmem:[#allocation2 + $0x968] sm:$0xff]
    %v475 = vld [vmem:[#allocation2 + $0x970] sm:$0xff]
    %v476 = vld [vmem:[#allocation2 + $0x978] sm:$0xff]
    %v477 = vld [vmem:[#allocation2 + $0x980] sm:$0xff]
    %v478 = vld [vmem:[#allocation2 + $0x988] sm:$0xff]
    %v479 = vld [vmem:[#allocation2 + $0x990] sm:$0xff]
    %v480 = vld [vmem:[#allocation2 + $0x998] sm:$0xff]
    %v481 = vld [vmem:[#allocation2 + $0x9a0] sm:$0xff]
    %v482 = vld [vmem:[#allocation2 + $0x9a8] sm:$0xff]
    %v483 = vld [vmem:[#allocation2 + $0x9b0] sm:$0xff]
    %v484 = vld [vmem:[#allocation2 + $0x9b8] sm:$0xff]
    %v485 = vld [vmem:[#allocation2 + $0x9c0] sm:$0xff]
    %v486 = vld [vmem:[#allocation2 + $0x9c8] sm:$0xff]
    %v487 = vld [vmem:[#allocation2 + $0x9d0] sm:$0xff]
    %v488 = vld [vmem:[#allocation2 + $0x9d8] sm:$0xff]
    %v489 = vld [vmem:[#allocation2 + $0x9e0] sm:$0xff]
    %v490 = vld [vmem:[#allocation2 + $0x9e8] sm:$0xff]
    %v491 = vld [vmem:[#allocation2 + $0x9f0] sm:$0xff]
    %v492 = vld [vmem:[#allocation2 + $0x9f8] sm:$0xff]
    %v493 = vld [vmem:[#allocation2 + $0xa00] sm:$0xff]
    %v494 = vld [vmem:[#allocation2 + $0xa08] sm:$0xff]
    %v495 = vld [vmem:[#allocation2 + $0xa10] sm:$0xff]
    %v496 = vld [vmem:[#allocation2 + $0xa18] sm:$0xff]
    %v497 = vld [vmem:[#allocation2 + $0xa20] sm:$0xff]
    %v498 = vld [vmem:[#allocation2 + $0xa28] sm:$0xff]
    %v499 = vld [vmem:[#allocation2 + $0xa30] sm:$0xff]
    %v500 = vld [vmem:[#allocation2 + $0xa38] sm:$0xff]
    %v501 = vld [vmem:[#allocation2 + $0xa40] sm:$0xff]
    %v502 = vld [vmem:[#allocation2 + $0xa48] sm:$0xff]
    %v503 = vld [vmem:[#allocation2 + $0xa50] sm:$0xff]
    %v504 = vld [vmem:[#allocation2 + $0xa58] sm:$0xff]
    %v505 = vld [vmem:[#allocation2 + $0xa60] sm:$0xff]
    %v506 = vld [vmem:[#allocation2 + $0xa68] sm:$0xff]
    %v507 = vld [vmem:[#allocation2 + $0xa70] sm:$0xff]
    %v508 = vld [vmem:[#allocation2 + $0xa78] sm:$0xff]
    %v509 = vld [vmem:[#allocation2 + $0xa80] sm:$0xff]
    %v510 = vld [vmem:[#allocation2 + $0xa88] sm:$0xff]
    %v511 = vld [vmem:[#allocation2 + $0xa90] sm:$0xff]
    %v512 = vld [vmem:[#allocation2 + $0xa98] sm:$0xff]
    %v513 = vld [vmem:[#allocation2 + $0xaa0] sm:$0xff]
    %v514 = vld [vmem:[#allocation2 + $0xaa8] sm:$0xff]
    %v515 = vld [vmem:[#allocation2 + $0xab0] sm:$0xff]
    %v516 = vld [vmem:[#allocation2 + $0xab8] sm:$0xff]
    %v517 = vld [vmem:[#allocation2 + $0xac0] sm:$0xff]
    %v518 = vld [vmem:[#allocation2 + $0xac8] sm:$0xff]
    %v519 = vld [vmem:[#allocation2 + $0xad0] sm:$0xff]
    %v520 = vld [vmem:[#allocation2 + $0xad8] sm:$0xff]
    %v521 = vld [vmem:[#allocation2 + $0xae0] sm:$0xff]
    %v522 = vld [vmem:[#allocation2 + $0xae8] sm:$0xff]
    %v523 = vld [vmem:[#allocation2 + $0xaf0] sm:$0xff]
    %v524 = vld [vmem:[#allocation2 + $0xaf8] sm:$0xff]
    %v525 = vld [vmem:[#allocation2 + $0xb00] sm:$0xff]
    %v526 = vld [vmem:[#allocation2 + $0xb08] sm:$0xff]
    %v527 = vld [vmem:[#allocation2 + $0xb10] sm:$0xff]
    %v528 = vld [vmem:[#allocation2 + $0xb18] sm:$0xff]
    %v529 = vld [vmem:[#allocation2 + $0xb20] sm:$0xff]
    %v530 = vld [vmem:[#allocation2 + $0xb28] sm:$0xff]
    %v531 = vld [vmem:[#allocation2 + $0xb30] sm:$0xff]
    %v532 = vld [vmem:[#allocation2 + $0xb38] sm:$0xff]
    %v533 = vld [vmem:[#allocation2 + $0xb40] sm:$0xff]
    %v534 = vld [vmem:[#allocation2 + $0xb48] sm:$0xff]
    %v535 = vld [vmem:[#allocation2 + $0xb50] sm:$0xff]
    %v536 = vld [vmem:[#allocation2 + $0xb58] sm:$0xff]
    %v537 = vld [vmem:[#allocation2 + $0xb60] sm:$0xff]
    %v538 = vld [vmem:[#allocation2 + $0xb68] sm:$0xff]
    %v539 = vld [vmem:[#allocation2 + $0xb70] sm:$0xff]
    %v540 = vld [vmem:[#allocation2 + $0xb78] sm:$0xff]
    %v541 = vld [vmem:[#allocation2 + $0xb80] sm:$0xff]
    %v542 = vld [vmem:[#allocation2 + $0xb88] sm:$0xff]
    %v543 = vld [vmem:[#allocation2 + $0xb90] sm:$0xff]
    %v544 = vld [vmem:[#allocation2 + $0xb98] sm:$0xff]
    %v545 = vld [vmem:[#allocation2 + $0xba0] sm:$0xff]
    %v546 = vld [vmem:[#allocation2 + $0xba8] sm:$0xff]
    %v547 = vld [vmem:[#allocation2 + $0xbb0] sm:$0xff]
    %v548 = vld [vmem:[#allocation2 + $0xbb8] sm:$0xff]
    %v549 = vld [vmem:[#allocation2 + $0xbc0] sm:$0xff]
    %v550 = vld [vmem:[#allocation2 + $0xbc8] sm:$0xff]
    %v551 = vld [vmem:[#allocation2 + $0xbd0] sm:$0xff]
    %v552 = vld [vmem:[#allocation2 + $0xbd8] sm:$0xff]
    %v553 = vld [vmem:[#allocation2 + $0xbe0] sm:$0xff]
    %v554 = vld [vmem:[#allocation2 + $0xbe8] sm:$0xff]
    %v555 = vld [vmem:[#allocation2 + $0xbf0] sm:$0xff]
    %v556 = vld [vmem:[#allocation2 + $0xbf8] sm:$0xff]
    %v557 = vld [vmem:[#allocation2 + $0xc00] sm:$0xff]
    %v558 = vld [vmem:[#allocation2 + $0xc08] sm:$0xff]
    %v559 = vld [vmem:[#allocation2 + $0xc10] sm:$0xff]
    %v560 = vld [vmem:[#allocation2 + $0xc18] sm:$0xff]
    %v561 = vld [vmem:[#allocation2 + $0xc20] sm:$0xff]
    %v562 = vld [vmem:[#allocation2 + $0xc28] sm:$0xff]
    %v563 = vld [vmem:[#allocation2 + $0xc30] sm:$0xff]
    %v564 = vld [vmem:[#allocation2 + $0xc38] sm:$0xff]
    %v565 = vld [vmem:[#allocation2 + $0xc40] sm:$0xff]
    %v566 = vld [vmem:[#allocation2 + $0xc48] sm:$0xff]
    %v567 = vld [vmem:[#allocation2 + $0xc50] sm:$0xff]
    %v568 = vld [vmem:[#allocation2 + $0xc58] sm:$0xff]
    %v569 = vld [vmem:[#allocation2 + $0xc60] sm:$0xff]
    %v570 = vld [vmem:[#allocation2 + $0xc68] sm:$0xff]
    %v571 = vld [vmem:[#allocation2 + $0xc70] sm:$0xff]
    %v572 = vld [vmem:[#allocation2 + $0xc78] sm:$0xff]
    %v573 = vld [vmem:[#allocation2 + $0xc80] sm:$0xff]
    %v574 = vld [vmem:[#allocation2 + $0xc88] sm:$0xff]
    %v575 = vld [vmem:[#allocation2 + $0xc90] sm:$0xff]
    %v576 = vld [vmem:[#allocation2 + $0xc98] sm:$0xff]
    %v577 = vld [vmem:[#allocation2 + $0xca0] sm:$0xff]
    %v578 = vld [vmem:[#allocation2 + $0xca8] sm:$0xff]
    %v579 = vld [vmem:[#allocation2 + $0xcb0] sm:$0xff]
    %v580 = vld [vmem:[#allocation2 + $0xcb8] sm:$0xff]
    %v581 = vld [vmem:[#allocation2 + $0xcc0] sm:$0xff]
    %v582 = vld [vmem:[#allocation2 + $0xcc8] sm:$0xff]
    %v583 = vld [vmem:[#allocation2 + $0xcd0] sm:$0xff]
    %v584 = vld [vmem:[#allocation2 + $0xcd8] sm:$0xff]
    %v585 = vld [vmem:[#allocation2 + $0xce0] sm:$0xff]
    %v586 = vld [vmem:[#allocation2 + $0xce8] sm:$0xff]
    %v587 = vld [vmem:[#allocation2 + $0xcf0] sm:$0xff]
    %v588 = vld [vmem:[#allocation2 + $0xcf8] sm:$0xff]
    %v589 = vld [vmem:[#allocation2 + $0xd00] sm:$0xff]
    %v590 = vld [vmem:[#allocation2 + $0xd08] sm:$0xff]
    %v591 = vld [vmem:[#allocation2 + $0xd10] sm:$0xff]
    %v592 = vld [vmem:[#allocation2 + $0xd18] sm:$0xff]
    %v593 = vld [vmem:[#allocation2 + $0xd20] sm:$0xff]
    %v594 = vld [vmem:[#allocation2 + $0xd28] sm:$0xff]
    %v595 = vld [vmem:[#allocation2 + $0xd30] sm:$0xff]
    %v596 = vld [vmem:[#allocation2 + $0xd38] sm:$0xff]
    %v597 = vld [vmem:[#allocation2 + $0xd40] sm:$0xff]
    %v598 = vld [vmem:[#allocation2 + $0xd48] sm:$0xff]
    %v599 = vld [vmem:[#allocation2 + $0xd50] sm:$0xff]
    %v600 = vld [vmem:[#allocation2 + $0xd58] sm:$0xff]
    %v601 = vld [vmem:[#allocation2 + $0xd60] sm:$0xff]
    %v602 = vld [vmem:[#allocation2 + $0xd68] sm:$0xff]
    %v603 = vld [vmem:[#allocation2 + $0xd70] sm:$0xff]
    %v604 = vld [vmem:[#allocation2 + $0xd78] sm:$0xff]
    %v605 = vld [vmem:[#allocation2 + $0xd80] sm:$0xff]
    %v606 = vld [vmem:[#allocation2 + $0xd88] sm:$0xff]
    %v607 = vld [vmem:[#allocation2 + $0xd90] sm:$0xff]
    %v608 = vld [vmem:[#allocation2 + $0xd98] sm:$0xff]
    %v609 = vld [vmem:[#allocation2 + $0xda0] sm:$0xff]
    %v610 = vld [vmem:[#allocation2 + $0xda8] sm:$0xff]
    %v611 = vld [vmem:[#allocation2 + $0xdb0] sm:$0xff]
    %v612 = vld [vmem:[#allocation2 + $0xdb8] sm:$0xff]
    %v613 = vld [vmem:[#allocation2 + $0xdc0] sm:$0xff]
    %v614 = vld [vmem:[#allocation2 + $0xdc8] sm:$0xff]
    %v615 = vld [vmem:[#allocation2 + $0xdd0] sm:$0xff]
    %v616 = vld [vmem:[#allocation2 + $0xdd8] sm:$0xff]
    %v617 = vld [vmem:[#allocation2 + $0xde0] sm:$0xff]
    %v618 = vld [vmem:[#allocation2 + $0xde8] sm:$0xff]
    %v619 = vld [vmem:[#allocation2 + $0xdf0] sm:$0xff]
    %v620 = vld [vmem:[#allocation2 + $0xdf8] sm:$0xff]
    %v621 = vld [vmem:[#allocation2 + $0xe00] sm:$0xff]
    %v622 = vld [vmem:[#allocation2 + $0xe08] sm:$0xff]
    %v623 = vld [vmem:[#allocation2 + $0xe10] sm:$0xff]
    %v624 = vld [vmem:[#allocation2 + $0xe18] sm:$0xff]
    %v625 = vld [vmem:[#allocation2 + $0xe20] sm:$0xff]
    %v626 = vld [vmem:[#allocation2 + $0xe28] sm:$0xff]
    %v627 = vld [vmem:[#allocation2 + $0xe30] sm:$0xff]
    %v628 = vld [vmem:[#allocation2 + $0xe38] sm:$0xff]
    %v629 = vld [vmem:[#allocation2 + $0xe40] sm:$0xff]
    %v630 = vld [vmem:[#allocation2 + $0xe48] sm:$0xff]
    %v631 = vld [vmem:[#allocation2 + $0xe50] sm:$0xff]
    %v632 = vld [vmem:[#allocation2 + $0xe58] sm:$0xff]
    %v633 = vld [vmem:[#allocation2 + $0xe60] sm:$0xff]
    %v634 = vld [vmem:[#allocation2 + $0xe68] sm:$0xff]
    %v635 = vld [vmem:[#allocation2 + $0xe70] sm:$0xff]
    %v636 = vld [vmem:[#allocation2 + $0xe78] sm:$0xff]
    %v637 = vld [vmem:[#allocation2 + $0xe80] sm:$0xff]
    %v638 = vld [vmem:[#allocation2 + $0xe88] sm:$0xff]
    %v639 = vld [vmem:[#allocation2 + $0xe90] sm:$0xff]
    %v640 = vld [vmem:[#allocation2 + $0xe98] sm:$0xff]
    %v641 = vld [vmem:[#allocation2 + $0xea0] sm:$0xff]
    %v642 = vld [vmem:[#allocation2 + $0xea8] sm:$0xff]
    %v643 = vld [vmem:[#allocation2 + $0xeb0] sm:$0xff]
    %v644 = vld [vmem:[#allocation2 + $0xeb8] sm:$0xff]
    %v645 = vld [vmem:[#allocation2 + $0xec0] sm:$0xff]
    %v646 = vld [vmem:[#allocation2 + $0xec8] sm:$0xff]
    %v647 = vld [vmem:[#allocation2 + $0xed0] sm:$0xff]
    %v648 = vld [vmem:[#allocation2 + $0xed8] sm:$0xff]
    %v649 = vld [vmem:[#allocation2 + $0xee0] sm:$0xff]
    %v650 = vld [vmem:[#allocation2 + $0xee8] sm:$0xff]
    %v651 = vld [vmem:[#allocation2 + $0xef0] sm:$0xff]
    %v652 = vld [vmem:[#allocation2 + $0xef8] sm:$0xff]
    %v653 = vld [vmem:[#allocation2 + $0xf00] sm:$0xff]
    %v654 = vld [vmem:[#allocation2 + $0xf08] sm:$0xff]
    %v655 = vld [vmem:[#allocation2 + $0xf10] sm:$0xff]
    %v656 = vld [vmem:[#allocation2 + $0xf18] sm:$0xff]
    %v657 = vld [vmem:[#allocation2 + $0xf20] sm:$0xff]
    %v658 = vld [vmem:[#allocation2 + $0xf28] sm:$0xff]
    %v659 = vld [vmem:[#allocation2 + $0xf30] sm:$0xff]
    %v660 = vld [vmem:[#allocation2 + $0xf38] sm:$0xff]
    %v661 = vld [vmem:[#allocation2 + $0xf40] sm:$0xff]
    %v662 = vld [vmem:[#allocation2 + $0xf48] sm:$0xff]
    %v663 = vld [vmem:[#allocation2 + $0xf50] sm:$0xff]
    %v664 = vld [vmem:[#allocation2 + $0xf58] sm:$0xff]
    %v665 = vld [vmem:[#allocation2 + $0xf60] sm:$0xff]
    %v666 = vld [vmem:[#allocation2 + $0xf68] sm:$0xff]
    %v667 = vld [vmem:[#allocation2 + $0xf70] sm:$0xff]
    %v668 = vld [vmem:[#allocation2 + $0xf78] sm:$0xff]
    %v669 = vld [vmem:[#allocation2 + $0xf80] sm:$0xff]
    %v670 = vld [vmem:[#allocation2 + $0xf88] sm:$0xff]
    %v671 = vld [vmem:[#allocation2 + $0xf90] sm:$0xff]
    %v672 = vld [vmem:[#allocation2 + $0xf98] sm:$0xff]
    %v673 = vld [vmem:[#allocation2 + $0xfa0] sm:$0xff]
    %v674 = vld [vmem:[#allocation2 + $0xfa8] sm:$0xff]
    %v675 = vld [vmem:[#allocation2 + $0xfb0] sm:$0xff]
    %v676 = vld [vmem:[#allocation2 + $0xfb8] sm:$0xff]
    %v677 = vld [vmem:[#allocation2 + $0xfc0] sm:$0xff]
    %v678 = vld [vmem:[#allocation2 + $0xfc8] sm:$0xff]
    %v679 = vld [vmem:[#allocation2 + $0xfd0] sm:$0xff]
    %v680 = vld [vmem:[#allocation2 + $0xfd8] sm:$0xff]
    %v681 = vld [vmem:[#allocation2 + $0xfe0] sm:$0xff]
    %v682 = vld [vmem:[#allocation2 + $0xfe8] sm:$0xff]
    %v683 = vld [vmem:[#allocation2 + $0xff0] sm:$0xff]
    %v684 = vld [vmem:[#allocation2 + $0xff8] sm:$0xff]
    %v685 = vld [vmem:[#allocation4] sm:$0xff]
    %v687 = vlaneseq
    %v688 = vshrl.u32 %v687, 7
    %v689 = vsub.s32 0, %v688
    %v690 = vrot.slane %v685, %v689
    %v691 = vlaneseq
    %v692 = vshrl.u32 %v691, 7
    %v693 = vsub.s32 1, %v692
    %v694 = vrot.slane %v685, %v693
    %v695 = vlaneseq
    %v696 = vshrl.u32 %v695, 7
    %v697 = vsub.s32 2, %v696
    %v698 = vrot.slane %v685, %v697
    %v699 = vlaneseq
    %v700 = vshrl.u32 %v699, 7
    %v701 = vsub.s32 3, %v700
    %v702 = vrot.slane %v685, %v701
    %v703 = vlaneseq
    %v704 = vshrl.u32 %v703, 7
    %v705 = vsub.s32 4, %v704
    %v706 = vrot.slane %v685, %v705
    %v707 = vlaneseq
    %v708 = vshrl.u32 %v707, 7
    %v709 = vsub.s32 5, %v708
    %v710 = vrot.slane %v685, %v709
    %v711 = vlaneseq
    %v712 = vshrl.u32 %v711, 7
    %v713 = vsub.s32 6, %v712
    %v714 = vrot.slane %v685, %v713
    %v715 = vlaneseq
    %v716 = vshrl.u32 %v715, 7
    %v717 = vsub.s32 7, %v716
    %v718 = vrot.slane %v685, %v717
    %v735 = vunpack.c.l.b16 %v165
    %v736 = vunpack.c.h.b16 %v165
    %v737 = vunpack.c.l.b16 %v166
    %v738 = vunpack.c.h.b16 %v166
    %v739 = vunpack.c.l.b16 %v167
    %v740 = vunpack.c.h.b16 %v167
    %v741 = vunpack.c.l.b16 %v168
    %v742 = vunpack.c.h.b16 %v168
    %v743 = vunpack.c.l.b16 %v169
    %v744 = vunpack.c.h.b16 %v169
    %v745 = vunpack.c.l.b16 %v170
    %v746 = vunpack.c.h.b16 %v170
    %v747 = vunpack.c.l.b16 %v171
    %v748 = vunpack.c.h.b16 %v171
    %v749 = vunpack.c.l.b16 %v172
    %v750 = vunpack.c.h.b16 %v172
    %v751 = vpack.c.b16 %v743, %v735
    %v752 = vpack.c.b16 %v744, %v736
    %v753 = vpack.c.b16 %v745, %v737
    %v754 = vpack.c.b16 %v746, %v738
    %v755 = vpack.c.b16 %v747, %v739
    %v756 = vpack.c.b16 %v748, %v740
    %v757 = vpack.c.b16 %v749, %v741
    %v758 = vpack.c.b16 %v750, %v742
    %v1279 = vunpack.c.l.b16 %v173
    %v1280 = vunpack.c.h.b16 %v173
    %v1281 = vunpack.c.l.b16 %v174
    %v1282 = vunpack.c.h.b16 %v174
    %v1283 = vunpack.c.l.b16 %v175
    %v1284 = vunpack.c.h.b16 %v175
    %v1285 = vunpack.c.l.b16 %v176
    %v1286 = vunpack.c.h.b16 %v176
    %v1287 = vunpack.c.l.b16 %v177
    %v1288 = vunpack.c.h.b16 %v177
    %v1289 = vunpack.c.l.b16 %v178
    %v1290 = vunpack.c.h.b16 %v178
    %v1291 = vunpack.c.l.b16 %v179
    %v1292 = vunpack.c.h.b16 %v179
    %v1293 = vunpack.c.l.b16 %v180
    %v1294 = vunpack.c.h.b16 %v180
    %v1295 = vunpack.c.l.b16 %v181
    %v1296 = vunpack.c.h.b16 %v181
    %v1297 = vunpack.c.l.b16 %v182
    %v1298 = vunpack.c.h.b16 %v182
    %v1299 = vunpack.c.l.b16 %v183
    %v1300 = vunpack.c.h.b16 %v183
    %v1301 = vunpack.c.l.b16 %v184
    %v1302 = vunpack.c.h.b16 %v184
    %v1303 = vunpack.c.l.b16 %v185
    %v1304 = vunpack.c.h.b16 %v185
    %v1305 = vunpack.c.l.b16 %v186
    %v1306 = vunpack.c.h.b16 %v186
    %v1307 = vunpack.c.l.b16 %v187
    %v1308 = vunpack.c.h.b16 %v187
    %v1309 = vunpack.c.l.b16 %v188
    %v1310 = vunpack.c.h.b16 %v188
    %v1311 = vunpack.c.l.b16 %v189
    %v1312 = vunpack.c.h.b16 %v189
    %v1313 = vunpack.c.l.b16 %v190
    %v1314 = vunpack.c.h.b16 %v190
    %v1315 = vunpack.c.l.b16 %v191
    %v1316 = vunpack.c.h.b16 %v191
    %v1317 = vunpack.c.l.b16 %v192
    %v1318 = vunpack.c.h.b16 %v192
    %v1319 = vunpack.c.l.b16 %v193
    %v1320 = vunpack.c.h.b16 %v193
    %v1321 = vunpack.c.l.b16 %v194
    %v1322 = vunpack.c.h.b16 %v194
    %v1323 = vunpack.c.l.b16 %v195
    %v1324 = vunpack.c.h.b16 %v195
    %v1325 = vunpack.c.l.b16 %v196
    %v1326 = vunpack.c.h.b16 %v196
    %v1327 = vunpack.c.l.b16 %v197
    %v1328 = vunpack.c.h.b16 %v197
    %v1329 = vunpack.c.l.b16 %v198
    %v1330 = vunpack.c.h.b16 %v198
    %v1331 = vunpack.c.l.b16 %v199
    %v1332 = vunpack.c.h.b16 %v199
    %v1333 = vunpack.c.l.b16 %v200
    %v1334 = vunpack.c.h.b16 %v200
    %v1335 = vunpack.c.l.b16 %v201
    %v1336 = vunpack.c.h.b16 %v201
    %v1337 = vunpack.c.l.b16 %v202
    %v1338 = vunpack.c.h.b16 %v202
    %v1339 = vunpack.c.l.b16 %v203
    %v1340 = vunpack.c.h.b16 %v203
    %v1341 = vunpack.c.l.b16 %v204
    %v1342 = vunpack.c.h.b16 %v204
    %v1343 = vunpack.c.l.b16 %v205
    %v1344 = vunpack.c.h.b16 %v205
    %v1345 = vunpack.c.l.b16 %v206
    %v1346 = vunpack.c.h.b16 %v206
    %v1347 = vunpack.c.l.b16 %v207
    %v1348 = vunpack.c.h.b16 %v207
    %v1349 = vunpack.c.l.b16 %v208
    %v1350 = vunpack.c.h.b16 %v208
    %v1351 = vunpack.c.l.b16 %v209
    %v1352 = vunpack.c.h.b16 %v209
    %v1353 = vunpack.c.l.b16 %v210
    %v1354 = vunpack.c.h.b16 %v210
    %v1355 = vunpack.c.l.b16 %v211
    %v1356 = vunpack.c.h.b16 %v211
    %v1357 = vunpack.c.l.b16 %v212
    %v1358 = vunpack.c.h.b16 %v212
    %v1359 = vunpack.c.l.b16 %v213
    %v1360 = vunpack.c.h.b16 %v213
    %v1361 = vunpack.c.l.b16 %v214
    %v1362 = vunpack.c.h.b16 %v214
    %v1363 = vunpack.c.l.b16 %v215
    %v1364 = vunpack.c.h.b16 %v215
    %v1365 = vunpack.c.l.b16 %v216
    %v1366 = vunpack.c.h.b16 %v216
    %v1367 = vunpack.c.l.b16 %v217
    %v1368 = vunpack.c.h.b16 %v217
    %v1369 = vunpack.c.l.b16 %v218
    %v1370 = vunpack.c.h.b16 %v218
    %v1371 = vunpack.c.l.b16 %v219
    %v1372 = vunpack.c.h.b16 %v219
    %v1373 = vunpack.c.l.b16 %v220
    %v1374 = vunpack.c.h.b16 %v220
    %v1375 = vunpack.c.l.b16 %v221
    %v1376 = vunpack.c.h.b16 %v221
    %v1377 = vunpack.c.l.b16 %v222
    %v1378 = vunpack.c.h.b16 %v222
    %v1379 = vunpack.c.l.b16 %v223
    %v1380 = vunpack.c.h.b16 %v223
    %v1381 = vunpack.c.l.b16 %v224
    %v1382 = vunpack.c.h.b16 %v224
    %v1383 = vunpack.c.l.b16 %v225
    %v1384 = vunpack.c.h.b16 %v225
    %v1385 = vunpack.c.l.b16 %v226
    %v1386 = vunpack.c.h.b16 %v226
    %v1387 = vunpack.c.l.b16 %v227
    %v1388 = vunpack.c.h.b16 %v227
    %v1389 = vunpack.c.l.b16 %v228
    %v1390 = vunpack.c.h.b16 %v228
    %v1391 = vunpack.c.l.b16 %v229
    %v1392 = vunpack.c.h.b16 %v229
    %v1393 = vunpack.c.l.b16 %v230
    %v1394 = vunpack.c.h.b16 %v230
    %v1395 = vunpack.c.l.b16 %v231
    %v1396 = vunpack.c.h.b16 %v231
    %v1397 = vunpack.c.l.b16 %v232
    %v1398 = vunpack.c.h.b16 %v232
    %v1399 = vunpack.c.l.b16 %v233
    %v1400 = vunpack.c.h.b16 %v233
    %v1401 = vunpack.c.l.b16 %v234
    %v1402 = vunpack.c.h.b16 %v234
    %v1403 = vunpack.c.l.b16 %v235
    %v1404 = vunpack.c.h.b16 %v235
    %v1405 = vunpack.c.l.b16 %v236
    %v1406 = vunpack.c.h.b16 %v236
    %v1407 = vunpack.c.l.b16 %v237
    %v1408 = vunpack.c.h.b16 %v237
    %v1409 = vunpack.c.l.b16 %v238
    %v1410 = vunpack.c.h.b16 %v238
    %v1411 = vunpack.c.l.b16 %v239
    %v1412 = vunpack.c.h.b16 %v239
    %v1413 = vunpack.c.l.b16 %v240
    %v1414 = vunpack.c.h.b16 %v240
    %v1415 = vunpack.c.l.b16 %v241
    %v1416 = vunpack.c.h.b16 %v241
    %v1417 = vunpack.c.l.b16 %v242
    %v1418 = vunpack.c.h.b16 %v242
    %v1419 = vunpack.c.l.b16 %v243
    %v1420 = vunpack.c.h.b16 %v243
    %v1421 = vunpack.c.l.b16 %v244
    %v1422 = vunpack.c.h.b16 %v244
    %v1423 = vunpack.c.l.b16 %v245
    %v1424 = vunpack.c.h.b16 %v245
    %v1425 = vunpack.c.l.b16 %v246
    %v1426 = vunpack.c.h.b16 %v246
    %v1427 = vunpack.c.l.b16 %v247
    %v1428 = vunpack.c.h.b16 %v247
    %v1429 = vunpack.c.l.b16 %v248
    %v1430 = vunpack.c.h.b16 %v248
    %v1431 = vunpack.c.l.b16 %v249
    %v1432 = vunpack.c.h.b16 %v249
    %v1433 = vunpack.c.l.b16 %v250
    %v1434 = vunpack.c.h.b16 %v250
    %v1435 = vunpack.c.l.b16 %v251
    %v1436 = vunpack.c.h.b16 %v251
    %v1437 = vunpack.c.l.b16 %v252
    %v1438 = vunpack.c.h.b16 %v252
    %v1439 = vunpack.c.l.b16 %v253
    %v1440 = vunpack.c.h.b16 %v253
    %v1441 = vunpack.c.l.b16 %v254
    %v1442 = vunpack.c.h.b16 %v254
    %v1443 = vunpack.c.l.b16 %v255
    %v1444 = vunpack.c.h.b16 %v255
    %v1445 = vunpack.c.l.b16 %v256
    %v1446 = vunpack.c.h.b16 %v256
    %v1447 = vunpack.c.l.b16 %v257
    %v1448 = vunpack.c.h.b16 %v257
    %v1449 = vunpack.c.l.b16 %v258
    %v1450 = vunpack.c.h.b16 %v258
    %v1451 = vunpack.c.l.b16 %v259
    %v1452 = vunpack.c.h.b16 %v259
    %v1453 = vunpack.c.l.b16 %v260
    %v1454 = vunpack.c.h.b16 %v260
    %v1455 = vunpack.c.l.b16 %v261
    %v1456 = vunpack.c.h.b16 %v261
    %v1457 = vunpack.c.l.b16 %v262
    %v1458 = vunpack.c.h.b16 %v262
    %v1459 = vunpack.c.l.b16 %v263
    %v1460 = vunpack.c.h.b16 %v263
    %v1461 = vunpack.c.l.b16 %v264
    %v1462 = vunpack.c.h.b16 %v264
    %v1463 = vunpack.c.l.b16 %v265
    %v1464 = vunpack.c.h.b16 %v265
    %v1465 = vunpack.c.l.b16 %v266
    %v1466 = vunpack.c.h.b16 %v266
    %v1467 = vunpack.c.l.b16 %v267
    %v1468 = vunpack.c.h.b16 %v267
    %v1469 = vunpack.c.l.b16 %v268
    %v1470 = vunpack.c.h.b16 %v268
    %v1471 = vunpack.c.l.b16 %v269
    %v1472 = vunpack.c.h.b16 %v269
    %v1473 = vunpack.c.l.b16 %v270
    %v1474 = vunpack.c.h.b16 %v270
    %v1475 = vunpack.c.l.b16 %v271
    %v1476 = vunpack.c.h.b16 %v271
    %v1477 = vunpack.c.l.b16 %v272
    %v1478 = vunpack.c.h.b16 %v272
    %v1479 = vunpack.c.l.b16 %v273
    %v1480 = vunpack.c.h.b16 %v273
    %v1481 = vunpack.c.l.b16 %v274
    %v1482 = vunpack.c.h.b16 %v274
    %v1483 = vunpack.c.l.b16 %v275
    %v1484 = vunpack.c.h.b16 %v275
    %v1485 = vunpack.c.l.b16 %v276
    %v1486 = vunpack.c.h.b16 %v276
    %v1487 = vunpack.c.l.b16 %v277
    %v1488 = vunpack.c.h.b16 %v277
    %v1489 = vunpack.c.l.b16 %v278
    %v1490 = vunpack.c.h.b16 %v278
    %v1491 = vunpack.c.l.b16 %v279
    %v1492 = vunpack.c.h.b16 %v279
    %v1493 = vunpack.c.l.b16 %v280
    %v1494 = vunpack.c.h.b16 %v280
    %v1495 = vunpack.c.l.b16 %v281
    %v1496 = vunpack.c.h.b16 %v281
    %v1497 = vunpack.c.l.b16 %v282
    %v1498 = vunpack.c.h.b16 %v282
    %v1499 = vunpack.c.l.b16 %v283
    %v1500 = vunpack.c.h.b16 %v283
    %v1501 = vunpack.c.l.b16 %v284
    %v1502 = vunpack.c.h.b16 %v284
    %v1503 = vunpack.c.l.b16 %v285
    %v1504 = vunpack.c.h.b16 %v285
    %v1505 = vunpack.c.l.b16 %v286
    %v1506 = vunpack.c.h.b16 %v286
    %v1507 = vunpack.c.l.b16 %v287
    %v1508 = vunpack.c.h.b16 %v287
    %v1509 = vunpack.c.l.b16 %v288
    %v1510 = vunpack.c.h.b16 %v288
    %v1511 = vunpack.c.l.b16 %v289
    %v1512 = vunpack.c.h.b16 %v289
    %v1513 = vunpack.c.l.b16 %v290
    %v1514 = vunpack.c.h.b16 %v290
    %v1515 = vunpack.c.l.b16 %v291
    %v1516 = vunpack.c.h.b16 %v291
    %v1517 = vunpack.c.l.b16 %v292
    %v1518 = vunpack.c.h.b16 %v292
    %v1519 = vunpack.c.l.b16 %v293
    %v1520 = vunpack.c.h.b16 %v293
    %v1521 = vunpack.c.l.b16 %v294
    %v1522 = vunpack.c.h.b16 %v294
    %v1523 = vunpack.c.l.b16 %v295
    %v1524 = vunpack.c.h.b16 %v295
    %v1525 = vunpack.c.l.b16 %v296
    %v1526 = vunpack.c.h.b16 %v296
    %v1527 = vunpack.c.l.b16 %v297
    %v1528 = vunpack.c.h.b16 %v297
    %v1529 = vunpack.c.l.b16 %v298
    %v1530 = vunpack.c.h.b16 %v298
    %v1531 = vunpack.c.l.b16 %v299
    %v1532 = vunpack.c.h.b16 %v299
    %v1533 = vunpack.c.l.b16 %v300
    %v1534 = vunpack.c.h.b16 %v300
    %v1535 = vunpack.c.l.b16 %v301
    %v1536 = vunpack.c.h.b16 %v301
    %v1537 = vunpack.c.l.b16 %v302
    %v1538 = vunpack.c.h.b16 %v302
    %v1539 = vunpack.c.l.b16 %v303
    %v1540 = vunpack.c.h.b16 %v303
    %v1541 = vunpack.c.l.b16 %v304
    %v1542 = vunpack.c.h.b16 %v304
    %v1543 = vunpack.c.l.b16 %v305
    %v1544 = vunpack.c.h.b16 %v305
    %v1545 = vunpack.c.l.b16 %v306
    %v1546 = vunpack.c.h.b16 %v306
    %v1547 = vunpack.c.l.b16 %v307
    %v1548 = vunpack.c.h.b16 %v307
    %v1549 = vunpack.c.l.b16 %v308
    %v1550 = vunpack.c.h.b16 %v308
    %v1551 = vunpack.c.l.b16 %v309
    %v1552 = vunpack.c.h.b16 %v309
    %v1553 = vunpack.c.l.b16 %v310
    %v1554 = vunpack.c.h.b16 %v310
    %v1555 = vunpack.c.l.b16 %v311
    %v1556 = vunpack.c.h.b16 %v311
    %v1557 = vunpack.c.l.b16 %v312
    %v1558 = vunpack.c.h.b16 %v312
    %v1559 = vunpack.c.l.b16 %v313
    %v1560 = vunpack.c.h.b16 %v313
    %v1561 = vunpack.c.l.b16 %v314
    %v1562 = vunpack.c.h.b16 %v314
    %v1563 = vunpack.c.l.b16 %v315
    %v1564 = vunpack.c.h.b16 %v315
    %v1565 = vunpack.c.l.b16 %v316
    %v1566 = vunpack.c.h.b16 %v316
    %v1567 = vunpack.c.l.b16 %v317
    %v1568 = vunpack.c.h.b16 %v317
    %v1569 = vunpack.c.l.b16 %v318
    %v1570 = vunpack.c.h.b16 %v318
    %v1571 = vunpack.c.l.b16 %v319
    %v1572 = vunpack.c.h.b16 %v319
    %v1573 = vunpack.c.l.b16 %v320
    %v1574 = vunpack.c.h.b16 %v320
    %v1575 = vunpack.c.l.b16 %v321
    %v1576 = vunpack.c.h.b16 %v321
    %v1577 = vunpack.c.l.b16 %v322
    %v1578 = vunpack.c.h.b16 %v322
    %v1579 = vunpack.c.l.b16 %v323
    %v1580 = vunpack.c.h.b16 %v323
    %v1581 = vunpack.c.l.b16 %v324
    %v1582 = vunpack.c.h.b16 %v324
    %v1583 = vunpack.c.l.b16 %v325
    %v1584 = vunpack.c.h.b16 %v325
    %v1585 = vunpack.c.l.b16 %v326
    %v1586 = vunpack.c.h.b16 %v326
    %v1587 = vunpack.c.l.b16 %v327
    %v1588 = vunpack.c.h.b16 %v327
    %v1589 = vunpack.c.l.b16 %v328
    %v1590 = vunpack.c.h.b16 %v328
    %v1591 = vunpack.c.l.b16 %v329
    %v1592 = vunpack.c.h.b16 %v329
    %v1593 = vunpack.c.l.b16 %v330
    %v1594 = vunpack.c.h.b16 %v330
    %v1595 = vunpack.c.l.b16 %v331
    %v1596 = vunpack.c.h.b16 %v331
    %v1597 = vunpack.c.l.b16 %v332
    %v1598 = vunpack.c.h.b16 %v332
    %v1599 = vunpack.c.l.b16 %v333
    %v1600 = vunpack.c.h.b16 %v333
    %v1601 = vunpack.c.l.b16 %v334
    %v1602 = vunpack.c.h.b16 %v334
    %v1603 = vunpack.c.l.b16 %v335
    %v1604 = vunpack.c.h.b16 %v335
    %v1605 = vunpack.c.l.b16 %v336
    %v1606 = vunpack.c.h.b16 %v336
    %v1607 = vunpack.c.l.b16 %v337
    %v1608 = vunpack.c.h.b16 %v337
    %v1609 = vunpack.c.l.b16 %v338
    %v1610 = vunpack.c.h.b16 %v338
    %v1611 = vunpack.c.l.b16 %v339
    %v1612 = vunpack.c.h.b16 %v339
    %v1613 = vunpack.c.l.b16 %v340
    %v1614 = vunpack.c.h.b16 %v340
    %v1615 = vunpack.c.l.b16 %v341
    %v1616 = vunpack.c.h.b16 %v341
    %v1617 = vunpack.c.l.b16 %v342
    %v1618 = vunpack.c.h.b16 %v342
    %v1619 = vunpack.c.l.b16 %v343
    %v1620 = vunpack.c.h.b16 %v343
    %v1621 = vunpack.c.l.b16 %v344
    %v1622 = vunpack.c.h.b16 %v344
    %v1623 = vunpack.c.l.b16 %v345
    %v1624 = vunpack.c.h.b16 %v345
    %v1625 = vunpack.c.l.b16 %v346
    %v1626 = vunpack.c.h.b16 %v346
    %v1627 = vunpack.c.l.b16 %v347
    %v1628 = vunpack.c.h.b16 %v347
    %v1629 = vunpack.c.l.b16 %v348
    %v1630 = vunpack.c.h.b16 %v348
    %v1631 = vunpack.c.l.b16 %v349
    %v1632 = vunpack.c.h.b16 %v349
    %v1633 = vunpack.c.l.b16 %v350
    %v1634 = vunpack.c.h.b16 %v350
    %v1635 = vunpack.c.l.b16 %v351
    %v1636 = vunpack.c.h.b16 %v351
    %v1637 = vunpack.c.l.b16 %v352
    %v1638 = vunpack.c.h.b16 %v352
    %v1639 = vunpack.c.l.b16 %v353
    %v1640 = vunpack.c.h.b16 %v353
    %v1641 = vunpack.c.l.b16 %v354
    %v1642 = vunpack.c.h.b16 %v354
    %v1643 = vunpack.c.l.b16 %v355
    %v1644 = vunpack.c.h.b16 %v355
    %v1645 = vunpack.c.l.b16 %v356
    %v1646 = vunpack.c.h.b16 %v356
    %v1647 = vunpack.c.l.b16 %v357
    %v1648 = vunpack.c.h.b16 %v357
    %v1649 = vunpack.c.l.b16 %v358
    %v1650 = vunpack.c.h.b16 %v358
    %v1651 = vunpack.c.l.b16 %v359
    %v1652 = vunpack.c.h.b16 %v359
    %v1653 = vunpack.c.l.b16 %v360
    %v1654 = vunpack.c.h.b16 %v360
    %v1655 = vunpack.c.l.b16 %v361
    %v1656 = vunpack.c.h.b16 %v361
    %v1657 = vunpack.c.l.b16 %v362
    %v1658 = vunpack.c.h.b16 %v362
    %v1659 = vunpack.c.l.b16 %v363
    %v1660 = vunpack.c.h.b16 %v363
    %v1661 = vunpack.c.l.b16 %v364
    %v1662 = vunpack.c.h.b16 %v364
    %v1663 = vunpack.c.l.b16 %v365
    %v1664 = vunpack.c.h.b16 %v365
    %v1665 = vunpack.c.l.b16 %v366
    %v1666 = vunpack.c.h.b16 %v366
    %v1667 = vunpack.c.l.b16 %v367
    %v1668 = vunpack.c.h.b16 %v367
    %v1669 = vunpack.c.l.b16 %v368
    %v1670 = vunpack.c.h.b16 %v368
    %v1671 = vunpack.c.l.b16 %v369
    %v1672 = vunpack.c.h.b16 %v369
    %v1673 = vunpack.c.l.b16 %v370
    %v1674 = vunpack.c.h.b16 %v370
    %v1675 = vunpack.c.l.b16 %v371
    %v1676 = vunpack.c.h.b16 %v371
    %v1677 = vunpack.c.l.b16 %v372
    %v1678 = vunpack.c.h.b16 %v372
    %v1679 = vunpack.c.l.b16 %v373
    %v1680 = vunpack.c.h.b16 %v373
    %v1681 = vunpack.c.l.b16 %v374
    %v1682 = vunpack.c.h.b16 %v374
    %v1683 = vunpack.c.l.b16 %v375
    %v1684 = vunpack.c.h.b16 %v375
    %v1685 = vunpack.c.l.b16 %v376
    %v1686 = vunpack.c.h.b16 %v376
    %v1687 = vunpack.c.l.b16 %v377
    %v1688 = vunpack.c.h.b16 %v377
    %v1689 = vunpack.c.l.b16 %v378
    %v1690 = vunpack.c.h.b16 %v378
    %v1691 = vunpack.c.l.b16 %v379
    %v1692 = vunpack.c.h.b16 %v379
    %v1693 = vunpack.c.l.b16 %v380
    %v1694 = vunpack.c.h.b16 %v380
    %v1695 = vunpack.c.l.b16 %v381
    %v1696 = vunpack.c.h.b16 %v381
    %v1697 = vunpack.c.l.b16 %v382
    %v1698 = vunpack.c.h.b16 %v382
    %v1699 = vunpack.c.l.b16 %v383
    %v1700 = vunpack.c.h.b16 %v383
    %v1701 = vunpack.c.l.b16 %v384
    %v1702 = vunpack.c.h.b16 %v384
    %v1703 = vunpack.c.l.b16 %v385
    %v1704 = vunpack.c.h.b16 %v385
    %v1705 = vunpack.c.l.b16 %v386
    %v1706 = vunpack.c.h.b16 %v386
    %v1707 = vunpack.c.l.b16 %v387
    %v1708 = vunpack.c.h.b16 %v387
    %v1709 = vunpack.c.l.b16 %v388
    %v1710 = vunpack.c.h.b16 %v388
    %v1711 = vunpack.c.l.b16 %v389
    %v1712 = vunpack.c.h.b16 %v389
    %v1713 = vunpack.c.l.b16 %v390
    %v1714 = vunpack.c.h.b16 %v390
    %v1715 = vunpack.c.l.b16 %v391
    %v1716 = vunpack.c.h.b16 %v391
    %v1717 = vunpack.c.l.b16 %v392
    %v1718 = vunpack.c.h.b16 %v392
    %v1719 = vunpack.c.l.b16 %v393
    %v1720 = vunpack.c.h.b16 %v393
    %v1721 = vunpack.c.l.b16 %v394
    %v1722 = vunpack.c.h.b16 %v394
    %v1723 = vunpack.c.l.b16 %v395
    %v1724 = vunpack.c.h.b16 %v395
    %v1725 = vunpack.c.l.b16 %v396
    %v1726 = vunpack.c.h.b16 %v396
    %v1727 = vunpack.c.l.b16 %v397
    %v1728 = vunpack.c.h.b16 %v397
    %v1729 = vunpack.c.l.b16 %v398
    %v1730 = vunpack.c.h.b16 %v398
    %v1731 = vunpack.c.l.b16 %v399
    %v1732 = vunpack.c.h.b16 %v399
    %v1733 = vunpack.c.l.b16 %v400
    %v1734 = vunpack.c.h.b16 %v400
    %v1735 = vunpack.c.l.b16 %v401
    %v1736 = vunpack.c.h.b16 %v401
    %v1737 = vunpack.c.l.b16 %v402
    %v1738 = vunpack.c.h.b16 %v402
    %v1739 = vunpack.c.l.b16 %v403
    %v1740 = vunpack.c.h.b16 %v403
    %v1741 = vunpack.c.l.b16 %v404
    %v1742 = vunpack.c.h.b16 %v404
    %v1743 = vunpack.c.l.b16 %v405
    %v1744 = vunpack.c.h.b16 %v405
    %v1745 = vunpack.c.l.b16 %v406
    %v1746 = vunpack.c.h.b16 %v406
    %v1747 = vunpack.c.l.b16 %v407
    %v1748 = vunpack.c.h.b16 %v407
    %v1749 = vunpack.c.l.b16 %v408
    %v1750 = vunpack.c.h.b16 %v408
    %v1751 = vunpack.c.l.b16 %v409
    %v1752 = vunpack.c.h.b16 %v409
    %v1753 = vunpack.c.l.b16 %v410
    %v1754 = vunpack.c.h.b16 %v410
    %v1755 = vunpack.c.l.b16 %v411
    %v1756 = vunpack.c.h.b16 %v411
    %v1757 = vunpack.c.l.b16 %v412
    %v1758 = vunpack.c.h.b16 %v412
    %v1759 = vunpack.c.l.b16 %v413
    %v1760 = vunpack.c.h.b16 %v413
    %v1761 = vunpack.c.l.b16 %v414
    %v1762 = vunpack.c.h.b16 %v414
    %v1763 = vunpack.c.l.b16 %v415
    %v1764 = vunpack.c.h.b16 %v415
    %v1765 = vunpack.c.l.b16 %v416
    %v1766 = vunpack.c.h.b16 %v416
    %v1767 = vunpack.c.l.b16 %v417
    %v1768 = vunpack.c.h.b16 %v417
    %v1769 = vunpack.c.l.b16 %v418
    %v1770 = vunpack.c.h.b16 %v418
    %v1771 = vunpack.c.l.b16 %v419
    %v1772 = vunpack.c.h.b16 %v419
    %v1773 = vunpack.c.l.b16 %v420
    %v1774 = vunpack.c.h.b16 %v420
    %v1775 = vunpack.c.l.b16 %v421
    %v1776 = vunpack.c.h.b16 %v421
    %v1777 = vunpack.c.l.b16 %v422
    %v1778 = vunpack.c.h.b16 %v422
    %v1779 = vunpack.c.l.b16 %v423
    %v1780 = vunpack.c.h.b16 %v423
    %v1781 = vunpack.c.l.b16 %v424
    %v1782 = vunpack.c.h.b16 %v424
    %v1783 = vunpack.c.l.b16 %v425
    %v1784 = vunpack.c.h.b16 %v425
    %v1785 = vunpack.c.l.b16 %v426
    %v1786 = vunpack.c.h.b16 %v426
    %v1787 = vunpack.c.l.b16 %v427
    %v1788 = vunpack.c.h.b16 %v427
    %v1789 = vunpack.c.l.b16 %v428
    %v1790 = vunpack.c.h.b16 %v428
    %v1791 = vunpack.c.l.b16 %v429
    %v1792 = vunpack.c.h.b16 %v429
    %v1793 = vunpack.c.l.b16 %v430
    %v1794 = vunpack.c.h.b16 %v430
    %v1795 = vunpack.c.l.b16 %v431
    %v1796 = vunpack.c.h.b16 %v431
    %v1797 = vunpack.c.l.b16 %v432
    %v1798 = vunpack.c.h.b16 %v432
    %v1799 = vunpack.c.l.b16 %v433
    %v1800 = vunpack.c.h.b16 %v433
    %v1801 = vunpack.c.l.b16 %v434
    %v1802 = vunpack.c.h.b16 %v434
    %v1803 = vunpack.c.l.b16 %v435
    %v1804 = vunpack.c.h.b16 %v435
    %v1805 = vunpack.c.l.b16 %v436
    %v1806 = vunpack.c.h.b16 %v436
    %v1807 = vunpack.c.l.b16 %v437
    %v1808 = vunpack.c.h.b16 %v437
    %v1809 = vunpack.c.l.b16 %v438
    %v1810 = vunpack.c.h.b16 %v438
    %v1811 = vunpack.c.l.b16 %v439
    %v1812 = vunpack.c.h.b16 %v439
    %v1813 = vunpack.c.l.b16 %v440
    %v1814 = vunpack.c.h.b16 %v440
    %v1815 = vunpack.c.l.b16 %v441
    %v1816 = vunpack.c.h.b16 %v441
    %v1817 = vunpack.c.l.b16 %v442
    %v1818 = vunpack.c.h.b16 %v442
    %v1819 = vunpack.c.l.b16 %v443
    %v1820 = vunpack.c.h.b16 %v443
    %v1821 = vunpack.c.l.b16 %v444
    %v1822 = vunpack.c.h.b16 %v444
    %v1823 = vunpack.c.l.b16 %v445
    %v1824 = vunpack.c.h.b16 %v445
    %v1825 = vunpack.c.l.b16 %v446
    %v1826 = vunpack.c.h.b16 %v446
    %v1827 = vunpack.c.l.b16 %v447
    %v1828 = vunpack.c.h.b16 %v447
    %v1829 = vunpack.c.l.b16 %v448
    %v1830 = vunpack.c.h.b16 %v448
    %v1831 = vunpack.c.l.b16 %v449
    %v1832 = vunpack.c.h.b16 %v449
    %v1833 = vunpack.c.l.b16 %v450
    %v1834 = vunpack.c.h.b16 %v450
    %v1835 = vunpack.c.l.b16 %v451
    %v1836 = vunpack.c.h.b16 %v451
    %v1837 = vunpack.c.l.b16 %v452
    %v1838 = vunpack.c.h.b16 %v452
    %v1839 = vunpack.c.l.b16 %v453
    %v1840 = vunpack.c.h.b16 %v453
    %v1841 = vunpack.c.l.b16 %v454
    %v1842 = vunpack.c.h.b16 %v454
    %v1843 = vunpack.c.l.b16 %v455
    %v1844 = vunpack.c.h.b16 %v455
    %v1845 = vunpack.c.l.b16 %v456
    %v1846 = vunpack.c.h.b16 %v456
    %v1847 = vunpack.c.l.b16 %v457
    %v1848 = vunpack.c.h.b16 %v457
    %v1849 = vunpack.c.l.b16 %v458
    %v1850 = vunpack.c.h.b16 %v458
    %v1851 = vunpack.c.l.b16 %v459
    %v1852 = vunpack.c.h.b16 %v459
    %v1853 = vunpack.c.l.b16 %v460
    %v1854 = vunpack.c.h.b16 %v460
    %v1855 = vunpack.c.l.b16 %v461
    %v1856 = vunpack.c.h.b16 %v461
    %v1857 = vunpack.c.l.b16 %v462
    %v1858 = vunpack.c.h.b16 %v462
    %v1859 = vunpack.c.l.b16 %v463
    %v1860 = vunpack.c.h.b16 %v463
    %v1861 = vunpack.c.l.b16 %v464
    %v1862 = vunpack.c.h.b16 %v464
    %v1863 = vunpack.c.l.b16 %v465
    %v1864 = vunpack.c.h.b16 %v465
    %v1865 = vunpack.c.l.b16 %v466
    %v1866 = vunpack.c.h.b16 %v466
    %v1867 = vunpack.c.l.b16 %v467
    %v1868 = vunpack.c.h.b16 %v467
    %v1869 = vunpack.c.l.b16 %v468
    %v1870 = vunpack.c.h.b16 %v468
    %v1871 = vunpack.c.l.b16 %v469
    %v1872 = vunpack.c.h.b16 %v469
    %v1873 = vunpack.c.l.b16 %v470
    %v1874 = vunpack.c.h.b16 %v470
    %v1875 = vunpack.c.l.b16 %v471
    %v1876 = vunpack.c.h.b16 %v471
    %v1877 = vunpack.c.l.b16 %v472
    %v1878 = vunpack.c.h.b16 %v472
    %v1879 = vunpack.c.l.b16 %v473
    %v1880 = vunpack.c.h.b16 %v473
    %v1881 = vunpack.c.l.b16 %v474
    %v1882 = vunpack.c.h.b16 %v474
    %v1883 = vunpack.c.l.b16 %v475
    %v1884 = vunpack.c.h.b16 %v475
    %v1885 = vunpack.c.l.b16 %v476
    %v1886 = vunpack.c.h.b16 %v476
    %v1887 = vunpack.c.l.b16 %v477
    %v1888 = vunpack.c.h.b16 %v477
    %v1889 = vunpack.c.l.b16 %v478
    %v1890 = vunpack.c.h.b16 %v478
    %v1891 = vunpack.c.l.b16 %v479
    %v1892 = vunpack.c.h.b16 %v479
    %v1893 = vunpack.c.l.b16 %v480
    %v1894 = vunpack.c.h.b16 %v480
    %v1895 = vunpack.c.l.b16 %v481
    %v1896 = vunpack.c.h.b16 %v481
    %v1897 = vunpack.c.l.b16 %v482
    %v1898 = vunpack.c.h.b16 %v482
    %v1899 = vunpack.c.l.b16 %v483
    %v1900 = vunpack.c.h.b16 %v483
    %v1901 = vunpack.c.l.b16 %v484
    %v1902 = vunpack.c.h.b16 %v484
    %v1903 = vunpack.c.l.b16 %v485
    %v1904 = vunpack.c.h.b16 %v485
    %v1905 = vunpack.c.l.b16 %v486
    %v1906 = vunpack.c.h.b16 %v486
    %v1907 = vunpack.c.l.b16 %v487
    %v1908 = vunpack.c.h.b16 %v487
    %v1909 = vunpack.c.l.b16 %v488
    %v1910 = vunpack.c.h.b16 %v488
    %v1911 = vunpack.c.l.b16 %v489
    %v1912 = vunpack.c.h.b16 %v489
    %v1913 = vunpack.c.l.b16 %v490
    %v1914 = vunpack.c.h.b16 %v490
    %v1915 = vunpack.c.l.b16 %v491
    %v1916 = vunpack.c.h.b16 %v491
    %v1917 = vunpack.c.l.b16 %v492
    %v1918 = vunpack.c.h.b16 %v492
    %v1919 = vunpack.c.l.b16 %v493
    %v1920 = vunpack.c.h.b16 %v493
    %v1921 = vunpack.c.l.b16 %v494
    %v1922 = vunpack.c.h.b16 %v494
    %v1923 = vunpack.c.l.b16 %v495
    %v1924 = vunpack.c.h.b16 %v495
    %v1925 = vunpack.c.l.b16 %v496
    %v1926 = vunpack.c.h.b16 %v496
    %v1927 = vunpack.c.l.b16 %v497
    %v1928 = vunpack.c.h.b16 %v497
    %v1929 = vunpack.c.l.b16 %v498
    %v1930 = vunpack.c.h.b16 %v498
    %v1931 = vunpack.c.l.b16 %v499
    %v1932 = vunpack.c.h.b16 %v499
    %v1933 = vunpack.c.l.b16 %v500
    %v1934 = vunpack.c.h.b16 %v500
    %v1935 = vunpack.c.l.b16 %v501
    %v1936 = vunpack.c.h.b16 %v501
    %v1937 = vunpack.c.l.b16 %v502
    %v1938 = vunpack.c.h.b16 %v502
    %v1939 = vunpack.c.l.b16 %v503
    %v1940 = vunpack.c.h.b16 %v503
    %v1941 = vunpack.c.l.b16 %v504
    %v1942 = vunpack.c.h.b16 %v504
    %v1943 = vunpack.c.l.b16 %v505
    %v1944 = vunpack.c.h.b16 %v505
    %v1945 = vunpack.c.l.b16 %v506
    %v1946 = vunpack.c.h.b16 %v506
    %v1947 = vunpack.c.l.b16 %v507
    %v1948 = vunpack.c.h.b16 %v507
    %v1949 = vunpack.c.l.b16 %v508
    %v1950 = vunpack.c.h.b16 %v508
    %v1951 = vunpack.c.l.b16 %v509
    %v1952 = vunpack.c.h.b16 %v509
    %v1953 = vunpack.c.l.b16 %v510
    %v1954 = vunpack.c.h.b16 %v510
    %v1955 = vunpack.c.l.b16 %v511
    %v1956 = vunpack.c.h.b16 %v511
    %v1957 = vunpack.c.l.b16 %v512
    %v1958 = vunpack.c.h.b16 %v512
    %v1959 = vunpack.c.l.b16 %v513
    %v1960 = vunpack.c.h.b16 %v513
    %v1961 = vunpack.c.l.b16 %v514
    %v1962 = vunpack.c.h.b16 %v514
    %v1963 = vunpack.c.l.b16 %v515
    %v1964 = vunpack.c.h.b16 %v515
    %v1965 = vunpack.c.l.b16 %v516
    %v1966 = vunpack.c.h.b16 %v516
    %v1967 = vunpack.c.l.b16 %v517
    %v1968 = vunpack.c.h.b16 %v517
    %v1969 = vunpack.c.l.b16 %v518
    %v1970 = vunpack.c.h.b16 %v518
    %v1971 = vunpack.c.l.b16 %v519
    %v1972 = vunpack.c.h.b16 %v519
    %v1973 = vunpack.c.l.b16 %v520
    %v1974 = vunpack.c.h.b16 %v520
    %v1975 = vunpack.c.l.b16 %v521
    %v1976 = vunpack.c.h.b16 %v521
    %v1977 = vunpack.c.l.b16 %v522
    %v1978 = vunpack.c.h.b16 %v522
    %v1979 = vunpack.c.l.b16 %v523
    %v1980 = vunpack.c.h.b16 %v523
    %v1981 = vunpack.c.l.b16 %v524
    %v1982 = vunpack.c.h.b16 %v524
    %v1983 = vunpack.c.l.b16 %v525
    %v1984 = vunpack.c.h.b16 %v525
    %v1985 = vunpack.c.l.b16 %v526
    %v1986 = vunpack.c.h.b16 %v526
    %v1987 = vunpack.c.l.b16 %v527
    %v1988 = vunpack.c.h.b16 %v527
    %v1989 = vunpack.c.l.b16 %v528
    %v1990 = vunpack.c.h.b16 %v528
    %v1991 = vunpack.c.l.b16 %v529
    %v1992 = vunpack.c.h.b16 %v529
    %v1993 = vunpack.c.l.b16 %v530
    %v1994 = vunpack.c.h.b16 %v530
    %v1995 = vunpack.c.l.b16 %v531
    %v1996 = vunpack.c.h.b16 %v531
    %v1997 = vunpack.c.l.b16 %v532
    %v1998 = vunpack.c.h.b16 %v532
    %v1999 = vunpack.c.l.b16 %v533
    %v2000 = vunpack.c.h.b16 %v533
    %v2001 = vunpack.c.l.b16 %v534
    %v2002 = vunpack.c.h.b16 %v534
    %v2003 = vunpack.c.l.b16 %v535
    %v2004 = vunpack.c.h.b16 %v535
    %v2005 = vunpack.c.l.b16 %v536
    %v2006 = vunpack.c.h.b16 %v536
    %v2007 = vunpack.c.l.b16 %v537
    %v2008 = vunpack.c.h.b16 %v537
    %v2009 = vunpack.c.l.b16 %v538
    %v2010 = vunpack.c.h.b16 %v538
    %v2011 = vunpack.c.l.b16 %v539
    %v2012 = vunpack.c.h.b16 %v539
    %v2013 = vunpack.c.l.b16 %v540
    %v2014 = vunpack.c.h.b16 %v540
    %v2015 = vunpack.c.l.b16 %v541
    %v2016 = vunpack.c.h.b16 %v541
    %v2017 = vunpack.c.l.b16 %v542
    %v2018 = vunpack.c.h.b16 %v542
    %v2019 = vunpack.c.l.b16 %v543
    %v2020 = vunpack.c.h.b16 %v543
    %v2021 = vunpack.c.l.b16 %v544
    %v2022 = vunpack.c.h.b16 %v544
    %v2023 = vunpack.c.l.b16 %v545
    %v2024 = vunpack.c.h.b16 %v545
    %v2025 = vunpack.c.l.b16 %v546
    %v2026 = vunpack.c.h.b16 %v546
    %v2027 = vunpack.c.l.b16 %v547
    %v2028 = vunpack.c.h.b16 %v547
    %v2029 = vunpack.c.l.b16 %v548
    %v2030 = vunpack.c.h.b16 %v548
    %v2031 = vunpack.c.l.b16 %v549
    %v2032 = vunpack.c.h.b16 %v549
    %v2033 = vunpack.c.l.b16 %v550
    %v2034 = vunpack.c.h.b16 %v550
    %v2035 = vunpack.c.l.b16 %v551
    %v2036 = vunpack.c.h.b16 %v551
    %v2037 = vunpack.c.l.b16 %v552
    %v2038 = vunpack.c.h.b16 %v552
    %v2039 = vunpack.c.l.b16 %v553
    %v2040 = vunpack.c.h.b16 %v553
    %v2041 = vunpack.c.l.b16 %v554
    %v2042 = vunpack.c.h.b16 %v554
    %v2043 = vunpack.c.l.b16 %v555
    %v2044 = vunpack.c.h.b16 %v555
    %v2045 = vunpack.c.l.b16 %v556
    %v2046 = vunpack.c.h.b16 %v556
    %v2047 = vunpack.c.l.b16 %v557
    %v2048 = vunpack.c.h.b16 %v557
    %v2049 = vunpack.c.l.b16 %v558
    %v2050 = vunpack.c.h.b16 %v558
    %v2051 = vunpack.c.l.b16 %v559
    %v2052 = vunpack.c.h.b16 %v559
    %v2053 = vunpack.c.l.b16 %v560
    %v2054 = vunpack.c.h.b16 %v560
    %v2055 = vunpack.c.l.b16 %v561
    %v2056 = vunpack.c.h.b16 %v561
    %v2057 = vunpack.c.l.b16 %v562
    %v2058 = vunpack.c.h.b16 %v562
    %v2059 = vunpack.c.l.b16 %v563
    %v2060 = vunpack.c.h.b16 %v563
    %v2061 = vunpack.c.l.b16 %v564
    %v2062 = vunpack.c.h.b16 %v564
    %v2063 = vunpack.c.l.b16 %v565
    %v2064 = vunpack.c.h.b16 %v565
    %v2065 = vunpack.c.l.b16 %v566
    %v2066 = vunpack.c.h.b16 %v566
    %v2067 = vunpack.c.l.b16 %v567
    %v2068 = vunpack.c.h.b16 %v567
    %v2069 = vunpack.c.l.b16 %v568
    %v2070 = vunpack.c.h.b16 %v568
    %v2071 = vunpack.c.l.b16 %v569
    %v2072 = vunpack.c.h.b16 %v569
    %v2073 = vunpack.c.l.b16 %v570
    %v2074 = vunpack.c.h.b16 %v570
    %v2075 = vunpack.c.l.b16 %v571
    %v2076 = vunpack.c.h.b16 %v571
    %v2077 = vunpack.c.l.b16 %v572
    %v2078 = vunpack.c.h.b16 %v572
    %v2079 = vunpack.c.l.b16 %v573
    %v2080 = vunpack.c.h.b16 %v573
    %v2081 = vunpack.c.l.b16 %v574
    %v2082 = vunpack.c.h.b16 %v574
    %v2083 = vunpack.c.l.b16 %v575
    %v2084 = vunpack.c.h.b16 %v575
    %v2085 = vunpack.c.l.b16 %v576
    %v2086 = vunpack.c.h.b16 %v576
    %v2087 = vunpack.c.l.b16 %v577
    %v2088 = vunpack.c.h.b16 %v577
    %v2089 = vunpack.c.l.b16 %v578
    %v2090 = vunpack.c.h.b16 %v578
    %v2091 = vunpack.c.l.b16 %v579
    %v2092 = vunpack.c.h.b16 %v579
    %v2093 = vunpack.c.l.b16 %v580
    %v2094 = vunpack.c.h.b16 %v580
    %v2095 = vunpack.c.l.b16 %v581
    %v2096 = vunpack.c.h.b16 %v581
    %v2097 = vunpack.c.l.b16 %v582
    %v2098 = vunpack.c.h.b16 %v582
    %v2099 = vunpack.c.l.b16 %v583
    %v2100 = vunpack.c.h.b16 %v583
    %v2101 = vunpack.c.l.b16 %v584
    %v2102 = vunpack.c.h.b16 %v584
    %v2103 = vunpack.c.l.b16 %v585
    %v2104 = vunpack.c.h.b16 %v585
    %v2105 = vunpack.c.l.b16 %v586
    %v2106 = vunpack.c.h.b16 %v586
    %v2107 = vunpack.c.l.b16 %v587
    %v2108 = vunpack.c.h.b16 %v587
    %v2109 = vunpack.c.l.b16 %v588
    %v2110 = vunpack.c.h.b16 %v588
    %v2111 = vunpack.c.l.b16 %v589
    %v2112 = vunpack.c.h.b16 %v589
    %v2113 = vunpack.c.l.b16 %v590
    %v2114 = vunpack.c.h.b16 %v590
    %v2115 = vunpack.c.l.b16 %v591
    %v2116 = vunpack.c.h.b16 %v591
    %v2117 = vunpack.c.l.b16 %v592
    %v2118 = vunpack.c.h.b16 %v592
    %v2119 = vunpack.c.l.b16 %v593
    %v2120 = vunpack.c.h.b16 %v593
    %v2121 = vunpack.c.l.b16 %v594
    %v2122 = vunpack.c.h.b16 %v594
    %v2123 = vunpack.c.l.b16 %v595
    %v2124 = vunpack.c.h.b16 %v595
    %v2125 = vunpack.c.l.b16 %v596
    %v2126 = vunpack.c.h.b16 %v596
    %v2127 = vunpack.c.l.b16 %v597
    %v2128 = vunpack.c.h.b16 %v597
    %v2129 = vunpack.c.l.b16 %v598
    %v2130 = vunpack.c.h.b16 %v598
    %v2131 = vunpack.c.l.b16 %v599
    %v2132 = vunpack.c.h.b16 %v599
    %v2133 = vunpack.c.l.b16 %v600
    %v2134 = vunpack.c.h.b16 %v600
    %v2135 = vunpack.c.l.b16 %v601
    %v2136 = vunpack.c.h.b16 %v601
    %v2137 = vunpack.c.l.b16 %v602
    %v2138 = vunpack.c.h.b16 %v602
    %v2139 = vunpack.c.l.b16 %v603
    %v2140 = vunpack.c.h.b16 %v603
    %v2141 = vunpack.c.l.b16 %v604
    %v2142 = vunpack.c.h.b16 %v604
    %v2143 = vunpack.c.l.b16 %v605
    %v2144 = vunpack.c.h.b16 %v605
    %v2145 = vunpack.c.l.b16 %v606
    %v2146 = vunpack.c.h.b16 %v606
    %v2147 = vunpack.c.l.b16 %v607
    %v2148 = vunpack.c.h.b16 %v607
    %v2149 = vunpack.c.l.b16 %v608
    %v2150 = vunpack.c.h.b16 %v608
    %v2151 = vunpack.c.l.b16 %v609
    %v2152 = vunpack.c.h.b16 %v609
    %v2153 = vunpack.c.l.b16 %v610
    %v2154 = vunpack.c.h.b16 %v610
    %v2155 = vunpack.c.l.b16 %v611
    %v2156 = vunpack.c.h.b16 %v611
    %v2157 = vunpack.c.l.b16 %v612
    %v2158 = vunpack.c.h.b16 %v612
    %v2159 = vunpack.c.l.b16 %v613
    %v2160 = vunpack.c.h.b16 %v613
    %v2161 = vunpack.c.l.b16 %v614
    %v2162 = vunpack.c.h.b16 %v614
    %v2163 = vunpack.c.l.b16 %v615
    %v2164 = vunpack.c.h.b16 %v615
    %v2165 = vunpack.c.l.b16 %v616
    %v2166 = vunpack.c.h.b16 %v616
    %v2167 = vunpack.c.l.b16 %v617
    %v2168 = vunpack.c.h.b16 %v617
    %v2169 = vunpack.c.l.b16 %v618
    %v2170 = vunpack.c.h.b16 %v618
    %v2171 = vunpack.c.l.b16 %v619
    %v2172 = vunpack.c.h.b16 %v619
    %v2173 = vunpack.c.l.b16 %v620
    %v2174 = vunpack.c.h.b16 %v620
    %v2175 = vunpack.c.l.b16 %v621
    %v2176 = vunpack.c.h.b16 %v621
    %v2177 = vunpack.c.l.b16 %v622
    %v2178 = vunpack.c.h.b16 %v622
    %v2179 = vunpack.c.l.b16 %v623
    %v2180 = vunpack.c.h.b16 %v623
    %v2181 = vunpack.c.l.b16 %v624
    %v2182 = vunpack.c.h.b16 %v624
    %v2183 = vunpack.c.l.b16 %v625
    %v2184 = vunpack.c.h.b16 %v625
    %v2185 = vunpack.c.l.b16 %v626
    %v2186 = vunpack.c.h.b16 %v626
    %v2187 = vunpack.c.l.b16 %v627
    %v2188 = vunpack.c.h.b16 %v627
    %v2189 = vunpack.c.l.b16 %v628
    %v2190 = vunpack.c.h.b16 %v628
    %v2191 = vunpack.c.l.b16 %v629
    %v2192 = vunpack.c.h.b16 %v629
    %v2193 = vunpack.c.l.b16 %v630
    %v2194 = vunpack.c.h.b16 %v630
    %v2195 = vunpack.c.l.b16 %v631
    %v2196 = vunpack.c.h.b16 %v631
    %v2197 = vunpack.c.l.b16 %v632
    %v2198 = vunpack.c.h.b16 %v632
    %v2199 = vunpack.c.l.b16 %v633
    %v2200 = vunpack.c.h.b16 %v633
    %v2201 = vunpack.c.l.b16 %v634
    %v2202 = vunpack.c.h.b16 %v634
    %v2203 = vunpack.c.l.b16 %v635
    %v2204 = vunpack.c.h.b16 %v635
    %v2205 = vunpack.c.l.b16 %v636
    %v2206 = vunpack.c.h.b16 %v636
    %v2207 = vunpack.c.l.b16 %v637
    %v2208 = vunpack.c.h.b16 %v637
    %v2209 = vunpack.c.l.b16 %v638
    %v2210 = vunpack.c.h.b16 %v638
    %v2211 = vunpack.c.l.b16 %v639
    %v2212 = vunpack.c.h.b16 %v639
    %v2213 = vunpack.c.l.b16 %v640
    %v2214 = vunpack.c.h.b16 %v640
    %v2215 = vunpack.c.l.b16 %v641
    %v2216 = vunpack.c.h.b16 %v641
    %v2217 = vunpack.c.l.b16 %v642
    %v2218 = vunpack.c.h.b16 %v642
    %v2219 = vunpack.c.l.b16 %v643
    %v2220 = vunpack.c.h.b16 %v643
    %v2221 = vunpack.c.l.b16 %v644
    %v2222 = vunpack.c.h.b16 %v644
    %v2223 = vunpack.c.l.b16 %v645
    %v2224 = vunpack.c.h.b16 %v645
    %v2225 = vunpack.c.l.b16 %v646
    %v2226 = vunpack.c.h.b16 %v646
    %v2227 = vunpack.c.l.b16 %v647
    %v2228 = vunpack.c.h.b16 %v647
    %v2229 = vunpack.c.l.b16 %v648
    %v2230 = vunpack.c.h.b16 %v648
    %v2231 = vunpack.c.l.b16 %v649
    %v2232 = vunpack.c.h.b16 %v649
    %v2233 = vunpack.c.l.b16 %v650
    %v2234 = vunpack.c.h.b16 %v650
    %v2235 = vunpack.c.l.b16 %v651
    %v2236 = vunpack.c.h.b16 %v651
    %v2237 = vunpack.c.l.b16 %v652
    %v2238 = vunpack.c.h.b16 %v652
    %v2239 = vunpack.c.l.b16 %v653
    %v2240 = vunpack.c.h.b16 %v653
    %v2241 = vunpack.c.l.b16 %v654
    %v2242 = vunpack.c.h.b16 %v654
    %v2243 = vunpack.c.l.b16 %v655
    %v2244 = vunpack.c.h.b16 %v655
    %v2245 = vunpack.c.l.b16 %v656
    %v2246 = vunpack.c.h.b16 %v656
    %v2247 = vunpack.c.l.b16 %v657
    %v2248 = vunpack.c.h.b16 %v657
    %v2249 = vunpack.c.l.b16 %v658
    %v2250 = vunpack.c.h.b16 %v658
    %v2251 = vunpack.c.l.b16 %v659
    %v2252 = vunpack.c.h.b16 %v659
    %v2253 = vunpack.c.l.b16 %v660
    %v2254 = vunpack.c.h.b16 %v660
    %v2255 = vunpack.c.l.b16 %v661
    %v2256 = vunpack.c.h.b16 %v661
    %v2257 = vunpack.c.l.b16 %v662
    %v2258 = vunpack.c.h.b16 %v662
    %v2259 = vunpack.c.l.b16 %v663
    %v2260 = vunpack.c.h.b16 %v663
    %v2261 = vunpack.c.l.b16 %v664
    %v2262 = vunpack.c.h.b16 %v664
    %v2263 = vunpack.c.l.b16 %v665
    %v2264 = vunpack.c.h.b16 %v665
    %v2265 = vunpack.c.l.b16 %v666
    %v2266 = vunpack.c.h.b16 %v666
    %v2267 = vunpack.c.l.b16 %v667
    %v2268 = vunpack.c.h.b16 %v667
    %v2269 = vunpack.c.l.b16 %v668
    %v2270 = vunpack.c.h.b16 %v668
    %v2271 = vunpack.c.l.b16 %v669
    %v2272 = vunpack.c.h.b16 %v669
    %v2273 = vunpack.c.l.b16 %v670
    %v2274 = vunpack.c.h.b16 %v670
    %v2275 = vunpack.c.l.b16 %v671
    %v2276 = vunpack.c.h.b16 %v671
    %v2277 = vunpack.c.l.b16 %v672
    %v2278 = vunpack.c.h.b16 %v672
    %v2279 = vunpack.c.l.b16 %v673
    %v2280 = vunpack.c.h.b16 %v673
    %v2281 = vunpack.c.l.b16 %v674
    %v2282 = vunpack.c.h.b16 %v674
    %v2283 = vunpack.c.l.b16 %v675
    %v2284 = vunpack.c.h.b16 %v675
    %v2285 = vunpack.c.l.b16 %v676
    %v2286 = vunpack.c.h.b16 %v676
    %v2287 = vunpack.c.l.b16 %v677
    %v2288 = vunpack.c.h.b16 %v677
    %v2289 = vunpack.c.l.b16 %v678
    %v2290 = vunpack.c.h.b16 %v678
    %v2291 = vunpack.c.l.b16 %v679
    %v2292 = vunpack.c.h.b16 %v679
    %v2293 = vunpack.c.l.b16 %v680
    %v2294 = vunpack.c.h.b16 %v680
    %v2295 = vunpack.c.l.b16 %v681
    %v2296 = vunpack.c.h.b16 %v681
    %v2297 = vunpack.c.l.b16 %v682
    %v2298 = vunpack.c.h.b16 %v682
    %v2299 = vunpack.c.l.b16 %v683
    %v2300 = vunpack.c.h.b16 %v683
    %v2301 = vunpack.c.l.b16 %v684
    %v2302 = vunpack.c.h.b16 %v684
    %v2303 = vpack.c.b16 %v1287, %v1279
    %v2304 = vpack.c.b16 %v1288, %v1280
    %v2305 = vpack.c.b16 %v1289, %v1281
    %v2306 = vpack.c.b16 %v1290, %v1282
    %v2307 = vpack.c.b16 %v1291, %v1283
    %v2308 = vpack.c.b16 %v1292, %v1284
    %v2309 = vpack.c.b16 %v1293, %v1285
    %v2310 = vpack.c.b16 %v1294, %v1286
    %v2311 = vpack.c.b16 %v1303, %v1295
    %v2312 = vpack.c.b16 %v1304, %v1296
    %v2313 = vpack.c.b16 %v1305, %v1297
    %v2314 = vpack.c.b16 %v1306, %v1298
    %v2315 = vpack.c.b16 %v1307, %v1299
    %v2316 = vpack.c.b16 %v1308, %v1300
    %v2317 = vpack.c.b16 %v1309, %v1301
    %v2318 = vpack.c.b16 %v1310, %v1302
    %v2319 = vpack.c.b16 %v1319, %v1311
    %v2320 = vpack.c.b16 %v1320, %v1312
    %v2321 = vpack.c.b16 %v1321, %v1313
    %v2322 = vpack.c.b16 %v1322, %v1314
    %v2323 = vpack.c.b16 %v1323, %v1315
    %v2324 = vpack.c.b16 %v1324, %v1316
    %v2325 = vpack.c.b16 %v1325, %v1317
    %v2326 = vpack.c.b16 %v1326, %v1318
    %v2327 = vpack.c.b16 %v1335, %v1327
    %v2328 = vpack.c.b16 %v1336, %v1328
    %v2329 = vpack.c.b16 %v1337, %v1329
    %v2330 = vpack.c.b16 %v1338, %v1330
    %v2331 = vpack.c.b16 %v1339, %v1331
    %v2332 = vpack.c.b16 %v1340, %v1332
    %v2333 = vpack.c.b16 %v1341, %v1333
    %v2334 = vpack.c.b16 %v1342, %v1334
    %v2335 = vpack.c.b16 %v1351, %v1343
    %v2336 = vpack.c.b16 %v1352, %v1344
    %v2337 = vpack.c.b16 %v1353, %v1345
    %v2338 = vpack.c.b16 %v1354, %v1346
    %v2339 = vpack.c.b16 %v1355, %v1347
    %v2340 = vpack.c.b16 %v1356, %v1348
    %v2341 = vpack.c.b16 %v1357, %v1349
    %v2342 = vpack.c.b16 %v1358, %v1350
    %v2343 = vpack.c.b16 %v1367, %v1359
    %v2344 = vpack.c.b16 %v1368, %v1360
    %v2345 = vpack.c.b16 %v1369, %v1361
    %v2346 = vpack.c.b16 %v1370, %v1362
    %v2347 = vpack.c.b16 %v1371, %v1363
    %v2348 = vpack.c.b16 %v1372, %v1364
    %v2349 = vpack.c.b16 %v1373, %v1365
    %v2350 = vpack.c.b16 %v1374, %v1366
    %v2351 = vpack.c.b16 %v1383, %v1375
    %v2352 = vpack.c.b16 %v1384, %v1376
    %v2353 = vpack.c.b16 %v1385, %v1377
    %v2354 = vpack.c.b16 %v1386, %v1378
    %v2355 = vpack.c.b16 %v1387, %v1379
    %v2356 = vpack.c.b16 %v1388, %v1380
    %v2357 = vpack.c.b16 %v1389, %v1381
    %v2358 = vpack.c.b16 %v1390, %v1382
    %v2359 = vpack.c.b16 %v1399, %v1391
    %v2360 = vpack.c.b16 %v1400, %v1392
    %v2361 = vpack.c.b16 %v1401, %v1393
    %v2362 = vpack.c.b16 %v1402, %v1394
    %v2363 = vpack.c.b16 %v1403, %v1395
    %v2364 = vpack.c.b16 %v1404, %v1396
    %v2365 = vpack.c.b16 %v1405, %v1397
    %v2366 = vpack.c.b16 %v1406, %v1398
    %v2367 = vpack.c.b16 %v1415, %v1407
    %v2368 = vpack.c.b16 %v1416, %v1408
    %v2369 = vpack.c.b16 %v1417, %v1409
    %v2370 = vpack.c.b16 %v1418, %v1410
    %v2371 = vpack.c.b16 %v1419, %v1411
    %v2372 = vpack.c.b16 %v1420, %v1412
    %v2373 = vpack.c.b16 %v1421, %v1413
    %v2374 = vpack.c.b16 %v1422, %v1414
    %v2375 = vpack.c.b16 %v1431, %v1423
    %v2376 = vpack.c.b16 %v1432, %v1424
    %v2377 = vpack.c.b16 %v1433, %v1425
    %v2378 = vpack.c.b16 %v1434, %v1426
    %v2379 = vpack.c.b16 %v1435, %v1427
    %v2380 = vpack.c.b16 %v1436, %v1428
    %v2381 = vpack.c.b16 %v1437, %v1429
    %v2382 = vpack.c.b16 %v1438, %v1430
    %v2383 = vpack.c.b16 %v1447, %v1439
    %v2384 = vpack.c.b16 %v1448, %v1440
    %v2385 = vpack.c.b16 %v1449, %v1441
    %v2386 = vpack.c.b16 %v1450, %v1442
    %v2387 = vpack.c.b16 %v1451, %v1443
    %v2388 = vpack.c.b16 %v1452, %v1444
    %v2389 = vpack.c.b16 %v1453, %v1445
    %v2390 = vpack.c.b16 %v1454, %v1446
    %v2391 = vpack.c.b16 %v1463, %v1455
    %v2392 = vpack.c.b16 %v1464, %v1456
    %v2393 = vpack.c.b16 %v1465, %v1457
    %v2394 = vpack.c.b16 %v1466, %v1458
    %v2395 = vpack.c.b16 %v1467, %v1459
    %v2396 = vpack.c.b16 %v1468, %v1460
    %v2397 = vpack.c.b16 %v1469, %v1461
    %v2398 = vpack.c.b16 %v1470, %v1462
    %v2399 = vpack.c.b16 %v1479, %v1471
    %v2400 = vpack.c.b16 %v1480, %v1472
    %v2401 = vpack.c.b16 %v1481, %v1473
    %v2402 = vpack.c.b16 %v1482, %v1474
    %v2403 = vpack.c.b16 %v1483, %v1475
    %v2404 = vpack.c.b16 %v1484, %v1476
    %v2405 = vpack.c.b16 %v1485, %v1477
    %v2406 = vpack.c.b16 %v1486, %v1478
    %v2407 = vpack.c.b16 %v1495, %v1487
    %v2408 = vpack.c.b16 %v1496, %v1488
    %v2409 = vpack.c.b16 %v1497, %v1489
    %v2410 = vpack.c.b16 %v1498, %v1490
    %v2411 = vpack.c.b16 %v1499, %v1491
    %v2412 = vpack.c.b16 %v1500, %v1492
    %v2413 = vpack.c.b16 %v1501, %v1493
    %v2414 = vpack.c.b16 %v1502, %v1494
    %v2415 = vpack.c.b16 %v1511, %v1503
    %v2416 = vpack.c.b16 %v1512, %v1504
    %v2417 = vpack.c.b16 %v1513, %v1505
    %v2418 = vpack.c.b16 %v1514, %v1506
    %v2419 = vpack.c.b16 %v1515, %v1507
    %v2420 = vpack.c.b16 %v1516, %v1508
    %v2421 = vpack.c.b16 %v1517, %v1509
    %v2422 = vpack.c.b16 %v1518, %v1510
    %v2423 = vpack.c.b16 %v1527, %v1519
    %v2424 = vpack.c.b16 %v1528, %v1520
    %v2425 = vpack.c.b16 %v1529, %v1521
    %v2426 = vpack.c.b16 %v1530, %v1522
    %v2427 = vpack.c.b16 %v1531, %v1523
    %v2428 = vpack.c.b16 %v1532, %v1524
    %v2429 = vpack.c.b16 %v1533, %v1525
    %v2430 = vpack.c.b16 %v1534, %v1526
    %v2431 = vpack.c.b16 %v1543, %v1535
    %v2432 = vpack.c.b16 %v1544, %v1536
    %v2433 = vpack.c.b16 %v1545, %v1537
    %v2434 = vpack.c.b16 %v1546, %v1538
    %v2435 = vpack.c.b16 %v1547, %v1539
    %v2436 = vpack.c.b16 %v1548, %v1540
    %v2437 = vpack.c.b16 %v1549, %v1541
    %v2438 = vpack.c.b16 %v1550, %v1542
    %v2439 = vpack.c.b16 %v1559, %v1551
    %v2440 = vpack.c.b16 %v1560, %v1552
    %v2441 = vpack.c.b16 %v1561, %v1553
    %v2442 = vpack.c.b16 %v1562, %v1554
    %v2443 = vpack.c.b16 %v1563, %v1555
    %v2444 = vpack.c.b16 %v1564, %v1556
    %v2445 = vpack.c.b16 %v1565, %v1557
    %v2446 = vpack.c.b16 %v1566, %v1558
    %v2447 = vpack.c.b16 %v1575, %v1567
    %v2448 = vpack.c.b16 %v1576, %v1568
    %v2449 = vpack.c.b16 %v1577, %v1569
    %v2450 = vpack.c.b16 %v1578, %v1570
    %v2451 = vpack.c.b16 %v1579, %v1571
    %v2452 = vpack.c.b16 %v1580, %v1572
    %v2453 = vpack.c.b16 %v1581, %v1573
    %v2454 = vpack.c.b16 %v1582, %v1574
    %v2455 = vpack.c.b16 %v1591, %v1583
    %v2456 = vpack.c.b16 %v1592, %v1584
    %v2457 = vpack.c.b16 %v1593, %v1585
    %v2458 = vpack.c.b16 %v1594, %v1586
    %v2459 = vpack.c.b16 %v1595, %v1587
    %v2460 = vpack.c.b16 %v1596, %v1588
    %v2461 = vpack.c.b16 %v1597, %v1589
    %v2462 = vpack.c.b16 %v1598, %v1590
    %v2463 = vpack.c.b16 %v1607, %v1599
    %v2464 = vpack.c.b16 %v1608, %v1600
    %v2465 = vpack.c.b16 %v1609, %v1601
    %v2466 = vpack.c.b16 %v1610, %v1602
    %v2467 = vpack.c.b16 %v1611, %v1603
    %v2468 = vpack.c.b16 %v1612, %v1604
    %v2469 = vpack.c.b16 %v1613, %v1605
    %v2470 = vpack.c.b16 %v1614, %v1606
    %v2471 = vpack.c.b16 %v1623, %v1615
    %v2472 = vpack.c.b16 %v1624, %v1616
    %v2473 = vpack.c.b16 %v1625, %v1617
    %v2474 = vpack.c.b16 %v1626, %v1618
    %v2475 = vpack.c.b16 %v1627, %v1619
    %v2476 = vpack.c.b16 %v1628, %v1620
    %v2477 = vpack.c.b16 %v1629, %v1621
    %v2478 = vpack.c.b16 %v1630, %v1622
    %v2479 = vpack.c.b16 %v1639, %v1631
    %v2480 = vpack.c.b16 %v1640, %v1632
    %v2481 = vpack.c.b16 %v1641, %v1633
    %v2482 = vpack.c.b16 %v1642, %v1634
    %v2483 = vpack.c.b16 %v1643, %v1635
    %v2484 = vpack.c.b16 %v1644, %v1636
    %v2485 = vpack.c.b16 %v1645, %v1637
    %v2486 = vpack.c.b16 %v1646, %v1638
    %v2487 = vpack.c.b16 %v1655, %v1647
    %v2488 = vpack.c.b16 %v1656, %v1648
    %v2489 = vpack.c.b16 %v1657, %v1649
    %v2490 = vpack.c.b16 %v1658, %v1650
    %v2491 = vpack.c.b16 %v1659, %v1651
    %v2492 = vpack.c.b16 %v1660, %v1652
    %v2493 = vpack.c.b16 %v1661, %v1653
    %v2494 = vpack.c.b16 %v1662, %v1654
    %v2495 = vpack.c.b16 %v1671, %v1663
    %v2496 = vpack.c.b16 %v1672, %v1664
    %v2497 = vpack.c.b16 %v1673, %v1665
    %v2498 = vpack.c.b16 %v1674, %v1666
    %v2499 = vpack.c.b16 %v1675, %v1667
    %v2500 = vpack.c.b16 %v1676, %v1668
    %v2501 = vpack.c.b16 %v1677, %v1669
    %v2502 = vpack.c.b16 %v1678, %v1670
    %v2503 = vpack.c.b16 %v1687, %v1679
    %v2504 = vpack.c.b16 %v1688, %v1680
    %v2505 = vpack.c.b16 %v1689, %v1681
    %v2506 = vpack.c.b16 %v1690, %v1682
    %v2507 = vpack.c.b16 %v1691, %v1683
    %v2508 = vpack.c.b16 %v1692, %v1684
    %v2509 = vpack.c.b16 %v1693, %v1685
    %v2510 = vpack.c.b16 %v1694, %v1686
    %v2511 = vpack.c.b16 %v1703, %v1695
    %v2512 = vpack.c.b16 %v1704, %v1696
    %v2513 = vpack.c.b16 %v1705, %v1697
    %v2514 = vpack.c.b16 %v1706, %v1698
    %v2515 = vpack.c.b16 %v1707, %v1699
    %v2516 = vpack.c.b16 %v1708, %v1700
    %v2517 = vpack.c.b16 %v1709, %v1701
    %v2518 = vpack.c.b16 %v1710, %v1702
    %v2519 = vpack.c.b16 %v1719, %v1711
    %v2520 = vpack.c.b16 %v1720, %v1712
    %v2521 = vpack.c.b16 %v1721, %v1713
    %v2522 = vpack.c.b16 %v1722, %v1714
    %v2523 = vpack.c.b16 %v1723, %v1715
    %v2524 = vpack.c.b16 %v1724, %v1716
    %v2525 = vpack.c.b16 %v1725, %v1717
    %v2526 = vpack.c.b16 %v1726, %v1718
    %v2527 = vpack.c.b16 %v1735, %v1727
    %v2528 = vpack.c.b16 %v1736, %v1728
    %v2529 = vpack.c.b16 %v1737, %v1729
    %v2530 = vpack.c.b16 %v1738, %v1730
    %v2531 = vpack.c.b16 %v1739, %v1731
    %v2532 = vpack.c.b16 %v1740, %v1732
    %v2533 = vpack.c.b16 %v1741, %v1733
    %v2534 = vpack.c.b16 %v1742, %v1734
    %v2535 = vpack.c.b16 %v1751, %v1743
    %v2536 = vpack.c.b16 %v1752, %v1744
    %v2537 = vpack.c.b16 %v1753, %v1745
    %v2538 = vpack.c.b16 %v1754, %v1746
    %v2539 = vpack.c.b16 %v1755, %v1747
    %v2540 = vpack.c.b16 %v1756, %v1748
    %v2541 = vpack.c.b16 %v1757, %v1749
    %v2542 = vpack.c.b16 %v1758, %v1750
    %v2543 = vpack.c.b16 %v1767, %v1759
    %v2544 = vpack.c.b16 %v1768, %v1760
    %v2545 = vpack.c.b16 %v1769, %v1761
    %v2546 = vpack.c.b16 %v1770, %v1762
    %v2547 = vpack.c.b16 %v1771, %v1763
    %v2548 = vpack.c.b16 %v1772, %v1764
    %v2549 = vpack.c.b16 %v1773, %v1765
    %v2550 = vpack.c.b16 %v1774, %v1766
    %v2551 = vpack.c.b16 %v1783, %v1775
    %v2552 = vpack.c.b16 %v1784, %v1776
    %v2553 = vpack.c.b16 %v1785, %v1777
    %v2554 = vpack.c.b16 %v1786, %v1778
    %v2555 = vpack.c.b16 %v1787, %v1779
    %v2556 = vpack.c.b16 %v1788, %v1780
    %v2557 = vpack.c.b16 %v1789, %v1781
    %v2558 = vpack.c.b16 %v1790, %v1782
    %v2559 = vpack.c.b16 %v1799, %v1791
    %v2560 = vpack.c.b16 %v1800, %v1792
    %v2561 = vpack.c.b16 %v1801, %v1793
    %v2562 = vpack.c.b16 %v1802, %v1794
    %v2563 = vpack.c.b16 %v1803, %v1795
    %v2564 = vpack.c.b16 %v1804, %v1796
    %v2565 = vpack.c.b16 %v1805, %v1797
    %v2566 = vpack.c.b16 %v1806, %v1798
    %v2567 = vpack.c.b16 %v1815, %v1807
    %v2568 = vpack.c.b16 %v1816, %v1808
    %v2569 = vpack.c.b16 %v1817, %v1809
    %v2570 = vpack.c.b16 %v1818, %v1810
    %v2571 = vpack.c.b16 %v1819, %v1811
    %v2572 = vpack.c.b16 %v1820, %v1812
    %v2573 = vpack.c.b16 %v1821, %v1813
    %v2574 = vpack.c.b16 %v1822, %v1814
    %v2575 = vpack.c.b16 %v1831, %v1823
    %v2576 = vpack.c.b16 %v1832, %v1824
    %v2577 = vpack.c.b16 %v1833, %v1825
    %v2578 = vpack.c.b16 %v1834, %v1826
    %v2579 = vpack.c.b16 %v1835, %v1827
    %v2580 = vpack.c.b16 %v1836, %v1828
    %v2581 = vpack.c.b16 %v1837, %v1829
    %v2582 = vpack.c.b16 %v1838, %v1830
    %v2583 = vpack.c.b16 %v1847, %v1839
    %v2584 = vpack.c.b16 %v1848, %v1840
    %v2585 = vpack.c.b16 %v1849, %v1841
    %v2586 = vpack.c.b16 %v1850, %v1842
    %v2587 = vpack.c.b16 %v1851, %v1843
    %v2588 = vpack.c.b16 %v1852, %v1844
    %v2589 = vpack.c.b16 %v1853, %v1845
    %v2590 = vpack.c.b16 %v1854, %v1846
    %v2591 = vpack.c.b16 %v1863, %v1855
    %v2592 = vpack.c.b16 %v1864, %v1856
    %v2593 = vpack.c.b16 %v1865, %v1857
    %v2594 = vpack.c.b16 %v1866, %v1858
    %v2595 = vpack.c.b16 %v1867, %v1859
    %v2596 = vpack.c.b16 %v1868, %v1860
    %v2597 = vpack.c.b16 %v1869, %v1861
    %v2598 = vpack.c.b16 %v1870, %v1862
    %v2599 = vpack.c.b16 %v1879, %v1871
    %v2600 = vpack.c.b16 %v1880, %v1872
    %v2601 = vpack.c.b16 %v1881, %v1873
    %v2602 = vpack.c.b16 %v1882, %v1874
    %v2603 = vpack.c.b16 %v1883, %v1875
    %v2604 = vpack.c.b16 %v1884, %v1876
    %v2605 = vpack.c.b16 %v1885, %v1877
    %v2606 = vpack.c.b16 %v1886, %v1878
    %v2607 = vpack.c.b16 %v1895, %v1887
    %v2608 = vpack.c.b16 %v1896, %v1888
    %v2609 = vpack.c.b16 %v1897, %v1889
    %v2610 = vpack.c.b16 %v1898, %v1890
    %v2611 = vpack.c.b16 %v1899, %v1891
    %v2612 = vpack.c.b16 %v1900, %v1892
    %v2613 = vpack.c.b16 %v1901, %v1893
    %v2614 = vpack.c.b16 %v1902, %v1894
    %v2615 = vpack.c.b16 %v1911, %v1903
    %v2616 = vpack.c.b16 %v1912, %v1904
    %v2617 = vpack.c.b16 %v1913, %v1905
    %v2618 = vpack.c.b16 %v1914, %v1906
    %v2619 = vpack.c.b16 %v1915, %v1907
    %v2620 = vpack.c.b16 %v1916, %v1908
    %v2621 = vpack.c.b16 %v1917, %v1909
    %v2622 = vpack.c.b16 %v1918, %v1910
    %v2623 = vpack.c.b16 %v1927, %v1919
    %v2624 = vpack.c.b16 %v1928, %v1920
    %v2625 = vpack.c.b16 %v1929, %v1921
    %v2626 = vpack.c.b16 %v1930, %v1922
    %v2627 = vpack.c.b16 %v1931, %v1923
    %v2628 = vpack.c.b16 %v1932, %v1924
    %v2629 = vpack.c.b16 %v1933, %v1925
    %v2630 = vpack.c.b16 %v1934, %v1926
    %v2631 = vpack.c.b16 %v1943, %v1935
    %v2632 = vpack.c.b16 %v1944, %v1936
    %v2633 = vpack.c.b16 %v1945, %v1937
    %v2634 = vpack.c.b16 %v1946, %v1938
    %v2635 = vpack.c.b16 %v1947, %v1939
    %v2636 = vpack.c.b16 %v1948, %v1940
    %v2637 = vpack.c.b16 %v1949, %v1941
    %v2638 = vpack.c.b16 %v1950, %v1942
    %v2639 = vpack.c.b16 %v1959, %v1951
    %v2640 = vpack.c.b16 %v1960, %v1952
    %v2641 = vpack.c.b16 %v1961, %v1953
    %v2642 = vpack.c.b16 %v1962, %v1954
    %v2643 = vpack.c.b16 %v1963, %v1955
    %v2644 = vpack.c.b16 %v1964, %v1956
    %v2645 = vpack.c.b16 %v1965, %v1957
    %v2646 = vpack.c.b16 %v1966, %v1958
    %v2647 = vpack.c.b16 %v1975, %v1967
    %v2648 = vpack.c.b16 %v1976, %v1968
    %v2649 = vpack.c.b16 %v1977, %v1969
    %v2650 = vpack.c.b16 %v1978, %v1970
    %v2651 = vpack.c.b16 %v1979, %v1971
    %v2652 = vpack.c.b16 %v1980, %v1972
    %v2653 = vpack.c.b16 %v1981, %v1973
    %v2654 = vpack.c.b16 %v1982, %v1974
    %v2655 = vpack.c.b16 %v1991, %v1983
    %v2656 = vpack.c.b16 %v1992, %v1984
    %v2657 = vpack.c.b16 %v1993, %v1985
    %v2658 = vpack.c.b16 %v1994, %v1986
    %v2659 = vpack.c.b16 %v1995, %v1987
    %v2660 = vpack.c.b16 %v1996, %v1988
    %v2661 = vpack.c.b16 %v1997, %v1989
    %v2662 = vpack.c.b16 %v1998, %v1990
    %v2663 = vpack.c.b16 %v2007, %v1999
    %v2664 = vpack.c.b16 %v2008, %v2000
    %v2665 = vpack.c.b16 %v2009, %v2001
    %v2666 = vpack.c.b16 %v2010, %v2002
    %v2667 = vpack.c.b16 %v2011, %v2003
    %v2668 = vpack.c.b16 %v2012, %v2004
    %v2669 = vpack.c.b16 %v2013, %v2005
    %v2670 = vpack.c.b16 %v2014, %v2006
    %v2671 = vpack.c.b16 %v2023, %v2015
    %v2672 = vpack.c.b16 %v2024, %v2016
    %v2673 = vpack.c.b16 %v2025, %v2017
    %v2674 = vpack.c.b16 %v2026, %v2018
    %v2675 = vpack.c.b16 %v2027, %v2019
    %v2676 = vpack.c.b16 %v2028, %v2020
    %v2677 = vpack.c.b16 %v2029, %v2021
    %v2678 = vpack.c.b16 %v2030, %v2022
    %v2679 = vpack.c.b16 %v2039, %v2031
    %v2680 = vpack.c.b16 %v2040, %v2032
    %v2681 = vpack.c.b16 %v2041, %v2033
    %v2682 = vpack.c.b16 %v2042, %v2034
    %v2683 = vpack.c.b16 %v2043, %v2035
    %v2684 = vpack.c.b16 %v2044, %v2036
    %v2685 = vpack.c.b16 %v2045, %v2037
    %v2686 = vpack.c.b16 %v2046, %v2038
    %v2687 = vpack.c.b16 %v2055, %v2047
    %v2688 = vpack.c.b16 %v2056, %v2048
    %v2689 = vpack.c.b16 %v2057, %v2049
    %v2690 = vpack.c.b16 %v2058, %v2050
    %v2691 = vpack.c.b16 %v2059, %v2051
    %v2692 = vpack.c.b16 %v2060, %v2052
    %v2693 = vpack.c.b16 %v2061, %v2053
    %v2694 = vpack.c.b16 %v2062, %v2054
    %v2695 = vpack.c.b16 %v2071, %v2063
    %v2696 = vpack.c.b16 %v2072, %v2064
    %v2697 = vpack.c.b16 %v2073, %v2065
    %v2698 = vpack.c.b16 %v2074, %v2066
    %v2699 = vpack.c.b16 %v2075, %v2067
    %v2700 = vpack.c.b16 %v2076, %v2068
    %v2701 = vpack.c.b16 %v2077, %v2069
    %v2702 = vpack.c.b16 %v2078, %v2070
    %v2703 = vpack.c.b16 %v2087, %v2079
    %v2704 = vpack.c.b16 %v2088, %v2080
    %v2705 = vpack.c.b16 %v2089, %v2081
    %v2706 = vpack.c.b16 %v2090, %v2082
    %v2707 = vpack.c.b16 %v2091, %v2083
    %v2708 = vpack.c.b16 %v2092, %v2084
    %v2709 = vpack.c.b16 %v2093, %v2085
    %v2710 = vpack.c.b16 %v2094, %v2086
    %v2711 = vpack.c.b16 %v2103, %v2095
    %v2712 = vpack.c.b16 %v2104, %v2096
    %v2713 = vpack.c.b16 %v2105, %v2097
    %v2714 = vpack.c.b16 %v2106, %v2098
    %v2715 = vpack.c.b16 %v2107, %v2099
    %v2716 = vpack.c.b16 %v2108, %v2100
    %v2717 = vpack.c.b16 %v2109, %v2101
    %v2718 = vpack.c.b16 %v2110, %v2102
    %v2719 = vpack.c.b16 %v2119, %v2111
    %v2720 = vpack.c.b16 %v2120, %v2112
    %v2721 = vpack.c.b16 %v2121, %v2113
    %v2722 = vpack.c.b16 %v2122, %v2114
    %v2723 = vpack.c.b16 %v2123, %v2115
    %v2724 = vpack.c.b16 %v2124, %v2116
    %v2725 = vpack.c.b16 %v2125, %v2117
    %v2726 = vpack.c.b16 %v2126, %v2118
    %v2727 = vpack.c.b16 %v2135, %v2127
    %v2728 = vpack.c.b16 %v2136, %v2128
    %v2729 = vpack.c.b16 %v2137, %v2129
    %v2730 = vpack.c.b16 %v2138, %v2130
    %v2731 = vpack.c.b16 %v2139, %v2131
    %v2732 = vpack.c.b16 %v2140, %v2132
    %v2733 = vpack.c.b16 %v2141, %v2133
    %v2734 = vpack.c.b16 %v2142, %v2134
    %v2735 = vpack.c.b16 %v2151, %v2143
    %v2736 = vpack.c.b16 %v2152, %v2144
    %v2737 = vpack.c.b16 %v2153, %v2145
    %v2738 = vpack.c.b16 %v2154, %v2146
    %v2739 = vpack.c.b16 %v2155, %v2147
    %v2740 = vpack.c.b16 %v2156, %v2148
    %v2741 = vpack.c.b16 %v2157, %v2149
    %v2742 = vpack.c.b16 %v2158, %v2150
    %v2743 = vpack.c.b16 %v2167, %v2159
    %v2744 = vpack.c.b16 %v2168, %v2160
    %v2745 = vpack.c.b16 %v2169, %v2161
    %v2746 = vpack.c.b16 %v2170, %v2162
    %v2747 = vpack.c.b16 %v2171, %v2163
    %v2748 = vpack.c.b16 %v2172, %v2164
    %v2749 = vpack.c.b16 %v2173, %v2165
    %v2750 = vpack.c.b16 %v2174, %v2166
    %v2751 = vpack.c.b16 %v2183, %v2175
    %v2752 = vpack.c.b16 %v2184, %v2176
    %v2753 = vpack.c.b16 %v2185, %v2177
    %v2754 = vpack.c.b16 %v2186, %v2178
    %v2755 = vpack.c.b16 %v2187, %v2179
    %v2756 = vpack.c.b16 %v2188, %v2180
    %v2757 = vpack.c.b16 %v2189, %v2181
    %v2758 = vpack.c.b16 %v2190, %v2182
    %v2759 = vpack.c.b16 %v2199, %v2191
    %v2760 = vpack.c.b16 %v2200, %v2192
    %v2761 = vpack.c.b16 %v2201, %v2193
    %v2762 = vpack.c.b16 %v2202, %v2194
    %v2763 = vpack.c.b16 %v2203, %v2195
    %v2764 = vpack.c.b16 %v2204, %v2196
    %v2765 = vpack.c.b16 %v2205, %v2197
    %v2766 = vpack.c.b16 %v2206, %v2198
    %v2767 = vpack.c.b16 %v2215, %v2207
    %v2768 = vpack.c.b16 %v2216, %v2208
    %v2769 = vpack.c.b16 %v2217, %v2209
    %v2770 = vpack.c.b16 %v2218, %v2210
    %v2771 = vpack.c.b16 %v2219, %v2211
    %v2772 = vpack.c.b16 %v2220, %v2212
    %v2773 = vpack.c.b16 %v2221, %v2213
    %v2774 = vpack.c.b16 %v2222, %v2214
    %v2775 = vpack.c.b16 %v2231, %v2223
    %v2776 = vpack.c.b16 %v2232, %v2224
    %v2777 = vpack.c.b16 %v2233, %v2225
    %v2778 = vpack.c.b16 %v2234, %v2226
    %v2779 = vpack.c.b16 %v2235, %v2227
    %v2780 = vpack.c.b16 %v2236, %v2228
    %v2781 = vpack.c.b16 %v2237, %v2229
    %v2782 = vpack.c.b16 %v2238, %v2230
    %v2783 = vpack.c.b16 %v2247, %v2239
    %v2784 = vpack.c.b16 %v2248, %v2240
    %v2785 = vpack.c.b16 %v2249, %v2241
    %v2786 = vpack.c.b16 %v2250, %v2242
    %v2787 = vpack.c.b16 %v2251, %v2243
    %v2788 = vpack.c.b16 %v2252, %v2244
    %v2789 = vpack.c.b16 %v2253, %v2245
    %v2790 = vpack.c.b16 %v2254, %v2246
    %v2791 = vpack.c.b16 %v2263, %v2255
    %v2792 = vpack.c.b16 %v2264, %v2256
    %v2793 = vpack.c.b16 %v2265, %v2257
    %v2794 = vpack.c.b16 %v2266, %v2258
    %v2795 = vpack.c.b16 %v2267, %v2259
    %v2796 = vpack.c.b16 %v2268, %v2260
    %v2797 = vpack.c.b16 %v2269, %v2261
    %v2798 = vpack.c.b16 %v2270, %v2262
    %v2799 = vpack.c.b16 %v2279, %v2271
    %v2800 = vpack.c.b16 %v2280, %v2272
    %v2801 = vpack.c.b16 %v2281, %v2273
    %v2802 = vpack.c.b16 %v2282, %v2274
    %v2803 = vpack.c.b16 %v2283, %v2275
    %v2804 = vpack.c.b16 %v2284, %v2276
    %v2805 = vpack.c.b16 %v2285, %v2277
    %v2806 = vpack.c.b16 %v2286, %v2278
    %v2807 = vpack.c.b16 %v2295, %v2287
    %v2808 = vpack.c.b16 %v2296, %v2288
    %v2809 = vpack.c.b16 %v2297, %v2289
    %v2810 = vpack.c.b16 %v2298, %v2290
    %v2811 = vpack.c.b16 %v2299, %v2291
    %v2812 = vpack.c.b16 %v2300, %v2292
    %v2813 = vpack.c.b16 %v2301, %v2293
    %v2814 = vpack.c.b16 %v2302, %v2294
    %3327 = vmatprep.subr.bf16.mxu0 %v2304
    %3328 = vmatpush1.bf16.msra.mxu0 %v2303
    %3329 = vmatprep.subr.bf16.mxu0 %v2312
    %3330 = vmatpush1.bf16.msra.mxu0 %v2311
    %3331 = vmatprep.subr.bf16.mxu0 %v2320
    %3332 = vmatpush1.bf16.msra.mxu0 %v2319
    %3333 = vmatprep.subr.bf16.mxu0 %v2328
    %3334 = vmatpush1.bf16.msra.mxu0 %v2327
    %3335 = vmatprep.subr.bf16.mxu0 %v2336
    %3336 = vmatpush1.bf16.msra.mxu0 %v2335
    %3337 = vmatprep.subr.bf16.mxu0 %v2344
    %3338 = vmatpush1.bf16.msra.mxu0 %v2343
    %3339 = vmatprep.subr.bf16.mxu0 %v2352
    %3340 = vmatpush1.bf16.msra.mxu0 %v2351
    %3341 = vmatprep.subr.bf16.mxu0 %v2360
    %3342 = vmatpush1.bf16.msra.mxu0 %v2359
    %3343 = vmatprep.subr.bf16.mxu0 %v2368
    %3344 = vmatpush1.bf16.msra.mxu0 %v2367
    %3345 = vmatprep.subr.bf16.mxu0 %v2376
    %3346 = vmatpush1.bf16.msra.mxu0 %v2375
    %3347 = vmatprep.subr.bf16.mxu0 %v2384
    %3348 = vmatpush1.bf16.msra.mxu0 %v2383
    %3349 = vmatprep.subr.bf16.mxu0 %v2392
    %3350 = vmatpush1.bf16.msra.mxu0 %v2391
    %3351 = vmatprep.subr.bf16.mxu0 %v2400
    %3352 = vmatpush1.bf16.msra.mxu0 %v2399
    %3353 = vmatprep.subr.bf16.mxu0 %v2408
    %3354 = vmatpush1.bf16.msra.mxu0 %v2407
    %3355 = vmatprep.subr.bf16.mxu0 %v2416
    %3356 = vmatpush1.bf16.msra.mxu0 %v2415
    %3357 = vmatprep.subr.bf16.mxu0 %v2424
    %3358 = vmatpush1.bf16.msra.mxu0 %v2423
    %3359 = vmatprep.mubr.bf16.mxu0 %v752
    %3360 = vmatmul.mubr.bf16.gmra.mrb[0].mxu0 %v751
    %v3361 = vpop.f32.mrb[0].mxu0
    %v3362 = vadd.f32 %v690, %v3361
    %v3363 = vpop.f32.mrb[0].mxu0
    %v3364 = vadd.f32 %v694, %v3363
    %v3365 = vpop.f32.mrb[0].mxu0
    %v3366 = vadd.f32 %v690, %v3365
    %v3367 = vpop.f32.mrb[0].mxu0
    %v3368 = vadd.f32 %v694, %v3367
    %3369 = vdwg.mxu0
    %3370 = vmatprep.subr.bf16.mxu0 %v2432
    %3371 = vmatpush1.bf16.msra.mxu0 %v2431
    %3372 = vmatprep.subr.bf16.mxu0 %v2440
    %3373 = vmatpush1.bf16.msra.mxu0 %v2439
    %3374 = vmatprep.subr.bf16.mxu0 %v2448
    %3375 = vmatpush1.bf16.msra.mxu0 %v2447
    %3376 = vmatprep.subr.bf16.mxu0 %v2456
    %3377 = vmatpush1.bf16.msra.mxu0 %v2455
    %3378 = vmatprep.subr.bf16.mxu0 %v2464
    %3379 = vmatpush1.bf16.msra.mxu0 %v2463
    %3380 = vmatprep.subr.bf16.mxu0 %v2472
    %3381 = vmatpush1.bf16.msra.mxu0 %v2471
    %3382 = vmatprep.subr.bf16.mxu0 %v2480
    %3383 = vmatpush1.bf16.msra.mxu0 %v2479
    %3384 = vmatprep.subr.bf16.mxu0 %v2488
    %3385 = vmatpush1.bf16.msra.mxu0 %v2487
    %3386 = vmatprep.subr.bf16.mxu0 %v2496
    %3387 = vmatpush1.bf16.msra.mxu0 %v2495
    %3388 = vmatprep.subr.bf16.mxu0 %v2504
    %3389 = vmatpush1.bf16.msra.mxu0 %v2503
    %3390 = vmatprep.subr.bf16.mxu0 %v2512
    %3391 = vmatpush1.bf16.msra.mxu0 %v2511
    %3392 = vmatprep.subr.bf16.mxu0 %v2520
    %3393 = vmatpush1.bf16.msra.mxu0 %v2519
    %3394 = vmatprep.subr.bf16.mxu0 %v2528
    %3395 = vmatpush1.bf16.msra.mxu0 %v2527
    %3396 = vmatprep.subr.bf16.mxu0 %v2536
    %3397 = vmatpush1.bf16.msra.mxu0 %v2535
    %3398 = vmatprep.subr.bf16.mxu0 %v2544
    %3399 = vmatpush1.bf16.msra.mxu0 %v2543
    %3400 = vmatprep.subr.bf16.mxu0 %v2552
    %3401 = vmatpush1.bf16.msra.mxu0 %v2551
    %3402 = vmatprep.mubr.bf16.mxu0 %v754
    %3403 = vmatmul.mubr.bf16.gmra.mrb[0].mxu0 %v753
    %v3404 = vpop.f32.mrb[0].mxu0
    %v3405 = vadd.f32 %v3362, %v3404
    %v3406 = vpop.f32.mrb[0].mxu0
    %v3407 = vadd.f32 %v3364, %v3406
    %v3408 = vpop.f32.mrb[0].mxu0
    %v3409 = vadd.f32 %v3366, %v3408
    %v3410 = vpop.f32.mrb[0].mxu0
    %v3411 = vadd.f32 %v3368, %v3410
    %3412 = vdwg.mxu0
    %3413 = vmatprep.subr.bf16.mxu0 %v2560
    %3414 = vmatpush1.bf16.msra.mxu0 %v2559
    %3415 = vmatprep.subr.bf16.mxu0 %v2568
    %3416 = vmatpush1.bf16.msra.mxu0 %v2567
    %3417 = vmatprep.subr.bf16.mxu0 %v2576
    %3418 = vmatpush1.bf16.msra.mxu0 %v2575
    %3419 = vmatprep.subr.bf16.mxu0 %v2584
    %3420 = vmatpush1.bf16.msra.mxu0 %v2583
    %3421 = vmatprep.subr.bf16.mxu0 %v2592
    %3422 = vmatpush1.bf16.msra.mxu0 %v2591
    %3423 = vmatprep.subr.bf16.mxu0 %v2600
    %3424 = vmatpush1.bf16.msra.mxu0 %v2599
    %3425 = vmatprep.subr.bf16.mxu0 %v2608
    %3426 = vmatpush1.bf16.msra.mxu0 %v2607
    %3427 = vmatprep.subr.bf16.mxu0 %v2616
    %3428 = vmatpush1.bf16.msra.mxu0 %v2615
    %3429 = vmatprep.subr.bf16.mxu0 %v2624
    %3430 = vmatpush1.bf16.msra.mxu0 %v2623
    %3431 = vmatprep.subr.bf16.mxu0 %v2632
    %3432 = vmatpush1.bf16.msra.mxu0 %v2631
    %3433 = vmatprep.subr.bf16.mxu0 %v2640
    %3434 = vmatpush1.bf16.msra.mxu0 %v2639
    %3435 = vmatprep.subr.bf16.mxu0 %v2648
    %3436 = vmatpush1.bf16.msra.mxu0 %v2647
    %3437 = vmatprep.subr.bf16.mxu0 %v2656
    %3438 = vmatpush1.bf16.msra.mxu0 %v2655
    %3439 = vmatprep.subr.bf16.mxu0 %v2664
    %3440 = vmatpush1.bf16.msra.mxu0 %v2663
    %3441 = vmatprep.subr.bf16.mxu0 %v2672
    %3442 = vmatpush1.bf16.msra.mxu0 %v2671
    %3443 = vmatprep.subr.bf16.mxu0 %v2680
    %3444 = vmatpush1.bf16.msra.mxu0 %v2679
    %3445 = vmatprep.mubr.bf16.mxu0 %v756
    %3446 = vmatmul.mubr.bf16.gmra.mrb[0].mxu0 %v755
    %v3447 = vpop.f32.mrb[0].mxu0
    %v3448 = vadd.f32 %v3405, %v3447
    %v3449 = vpop.f32.mrb[0].mxu0
    %v3450 = vadd.f32 %v3407, %v3449
    %v3451 = vpop.f32.mrb[0].mxu0
    %v3452 = vadd.f32 %v3409, %v3451
    %v3453 = vpop.f32.mrb[0].mxu0
    %v3454 = vadd.f32 %v3411, %v3453
    %3455 = vdwg.mxu0
    %3456 = vmatprep.subr.bf16.mxu0 %v2688
    %3457 = vmatpush1.bf16.msra.mxu0 %v2687
    %3458 = vmatprep.subr.bf16.mxu0 %v2696
    %3459 = vmatpush1.bf16.msra.mxu0 %v2695
    %3460 = vmatprep.subr.bf16.mxu0 %v2704
    %3461 = vmatpush1.bf16.msra.mxu0 %v2703
    %3462 = vmatprep.subr.bf16.mxu0 %v2712
    %3463 = vmatpush1.bf16.msra.mxu0 %v2711
    %3464 = vmatprep.subr.bf16.mxu0 %v2720
    %3465 = vmatpush1.bf16.msra.mxu0 %v2719
    %3466 = vmatprep.subr.bf16.mxu0 %v2728
    %3467 = vmatpush1.bf16.msra.mxu0 %v2727
    %3468 = vmatprep.subr.bf16.mxu0 %v2736
    %3469 = vmatpush1.bf16.msra.mxu0 %v2735
    %3470 = vmatprep.subr.bf16.mxu0 %v2744
    %3471 = vmatpush1.bf16.msra.mxu0 %v2743
    %3472 = vmatprep.subr.bf16.mxu0 %v2752
    %3473 = vmatpush1.bf16.msra.mxu0 %v2751
    %3474 = vmatprep.subr.bf16.mxu0 %v2760
    %3475 = vmatpush1.bf16.msra.mxu0 %v2759
    %3476 = vmatprep.subr.bf16.mxu0 %v2768
    %3477 = vmatpush1.bf16.msra.mxu0 %v2767
    %3478 = vmatprep.subr.bf16.mxu0 %v2776
    %3479 = vmatpush1.bf16.msra.mxu0 %v2775
    %3480 = vmatprep.subr.bf16.mxu0 %v2784
    %3481 = vmatpush1.bf16.msra.mxu0 %v2783
    %3482 = vmatprep.subr.bf16.mxu0 %v2792
    %3483 = vmatpush1.bf16.msra.mxu0 %v2791
    %3484 = vmatprep.subr.bf16.mxu0 %v2800
    %3485 = vmatpush1.bf16.msra.mxu0 %v2799
    %3486 = vmatprep.subr.bf16.mxu0 %v2808
    %3487 = vmatpush1.bf16.msra.mxu0 %v2807
    %3488 = vmatprep.mubr.bf16.mxu0 %v758
    %3489 = vmatmul.mubr.bf16.gmra.mrb[0].mxu0 %v757
    %v3490 = vpop.f32.mrb[0].mxu0
    %v3491 = vadd.f32 %v3448, %v3490
    %v3492 = vpop.f32.mrb[0].mxu0
    %v3493 = vadd.f32 %v3450, %v3492
    %v3494 = vpop.f32.mrb[0].mxu0
    %v3495 = vadd.f32 %v3452, %v3494
    %v3496 = vpop.f32.mrb[0].mxu0
    %v3497 = vadd.f32 %v3454, %v3496
    %3498 = vdwg.mxu0
    %3499 = vmatprep.subr.bf16.mxu0 %v2306
    %3500 = vmatpush1.bf16.msra.mxu0 %v2305
    %3501 = vmatprep.subr.bf16.mxu0 %v2314
    %3502 = vmatpush1.bf16.msra.mxu0 %v2313
    %3503 = vmatprep.subr.bf16.mxu0 %v2322
    %3504 = vmatpush1.bf16.msra.mxu0 %v2321
    %3505 = vmatprep.subr.bf16.mxu0 %v2330
    %3506 = vmatpush1.bf16.msra.mxu0 %v2329
    %3507 = vmatprep.subr.bf16.mxu0 %v2338
    %3508 = vmatpush1.bf16.msra.mxu0 %v2337
    %3509 = vmatprep.subr.bf16.mxu0 %v2346
    %3510 = vmatpush1.bf16.msra.mxu0 %v2345
    %3511 = vmatprep.subr.bf16.mxu0 %v2354
    %3512 = vmatpush1.bf16.msra.mxu0 %v2353
    %3513 = vmatprep.subr.bf16.mxu0 %v2362
    %3514 = vmatpush1.bf16.msra.mxu0 %v2361
    %3515 = vmatprep.subr.bf16.mxu0 %v2370
    %3516 = vmatpush1.bf16.msra.mxu0 %v2369
    %3517 = vmatprep.subr.bf16.mxu0 %v2378
    %3518 = vmatpush1.bf16.msra.mxu0 %v2377
    %3519 = vmatprep.subr.bf16.mxu0 %v2386
    %3520 = vmatpush1.bf16.msra.mxu0 %v2385
    %3521 = vmatprep.subr.bf16.mxu0 %v2394
    %3522 = vmatpush1.bf16.msra.mxu0 %v2393
    %3523 = vmatprep.subr.bf16.mxu0 %v2402
    %3524 = vmatpush1.bf16.msra.mxu0 %v2401
    %3525 = vmatprep.subr.bf16.mxu0 %v2410
    %3526 = vmatpush1.bf16.msra.mxu0 %v2409
    %3527 = vmatprep.subr.bf16.mxu0 %v2418
    %3528 = vmatpush1.bf16.msra.mxu0 %v2417
    %3529 = vmatprep.subr.bf16.mxu0 %v2426
    %3530 = vmatpush1.bf16.msra.mxu0 %v2425
    %3531 = vmatprep.mubr.bf16.mxu0 %v752
    %3532 = vmatmul.mubr.bf16.gmra.mrb[0].mxu0 %v751
    %v3533 = vpop.f32.mrb[0].mxu0
    %v3534 = vadd.f32 %v698, %v3533
    %v3535 = vpop.f32.mrb[0].mxu0
    %v3536 = vadd.f32 %v702, %v3535
    %v3537 = vpop.f32.mrb[0].mxu0
    %v3538 = vadd.f32 %v698, %v3537
    %v3539 = vpop.f32.mrb[0].mxu0
    %v3540 = vadd.f32 %v702, %v3539
    %3541 = vdwg.mxu0
    %3542 = vmatprep.subr.bf16.mxu0 %v2434
    %3543 = vmatpush1.bf16.msra.mxu0 %v2433
    %3544 = vmatprep.subr.bf16.mxu0 %v2442
    %3545 = vmatpush1.bf16.msra.mxu0 %v2441
    %3546 = vmatprep.subr.bf16.mxu0 %v2450
    %3547 = vmatpush1.bf16.msra.mxu0 %v2449
    %3548 = vmatprep.subr.bf16.mxu0 %v2458
    %3549 = vmatpush1.bf16.msra.mxu0 %v2457
    %3550 = vmatprep.subr.bf16.mxu0 %v2466
    %3551 = vmatpush1.bf16.msra.mxu0 %v2465
    %3552 = vmatprep.subr.bf16.mxu0 %v2474
    %3553 = vmatpush1.bf16.msra.mxu0 %v2473
    %3554 = vmatprep.subr.bf16.mxu0 %v2482
    %3555 = vmatpush1.bf16.msra.mxu0 %v2481
    %3556 = vmatprep.subr.bf16.mxu0 %v2490
    %3557 = vmatpush1.bf16.msra.mxu0 %v2489
    %3558 = vmatprep.subr.bf16.mxu0 %v2498
    %3559 = vmatpush1.bf16.msra.mxu0 %v2497
    %3560 = vmatprep.subr.bf16.mxu0 %v2506
    %3561 = vmatpush1.bf16.msra.mxu0 %v2505
    %3562 = vmatprep.subr.bf16.mxu0 %v2514
    %3563 = vmatpush1.bf16.msra.mxu0 %v2513
    %3564 = vmatprep.subr.bf16.mxu0 %v2522
    %3565 = vmatpush1.bf16.msra.mxu0 %v2521
    %3566 = vmatprep.subr.bf16.mxu0 %v2530
    %3567 = vmatpush1.bf16.msra.mxu0 %v2529
    %3568 = vmatprep.subr.bf16.mxu0 %v2538
    %3569 = vmatpush1.bf16.msra.mxu0 %v2537
    %3570 = vmatprep.subr.bf16.mxu0 %v2546
    %3571 = vmatpush1.bf16.msra.mxu0 %v2545
    %3572 = vmatprep.subr.bf16.mxu0 %v2554
    %3573 = vmatpush1.bf16.msra.mxu0 %v2553
    %3574 = vmatprep.mubr.bf16.mxu0 %v754
    %3575 = vmatmul.mubr.bf16.gmra.mrb[0].mxu0 %v753
    %v3576 = vpop.f32.mrb[0].mxu0
    %v3577 = vadd.f32 %v3534, %v3576
    %v3578 = vpop.f32.mrb[0].mxu0
    %v3579 = vadd.f32 %v3536, %v3578
    %v3580 = vpop.f32.mrb[0].mxu0
    %v3581 = vadd.f32 %v3538, %v3580
    %v3582 = vpop.f32.mrb[0].mxu0
    %v3583 = vadd.f32 %v3540, %v3582
    %3584 = vdwg.mxu0
    %3585 = vmatprep.subr.bf16.mxu0 %v2562
    %3586 = vmatpush1.bf16.msra.mxu0 %v2561
    %3587 = vmatprep.subr.bf16.mxu0 %v2570
    %3588 = vmatpush1.bf16.msra.mxu0 %v2569
    %3589 = vmatprep.subr.bf16.mxu0 %v2578
    %3590 = vmatpush1.bf16.msra.mxu0 %v2577
    %3591 = vmatprep.subr.bf16.mxu0 %v2586
    %3592 = vmatpush1.bf16.msra.mxu0 %v2585
    %3593 = vmatprep.subr.bf16.mxu0 %v2594
    %3594 = vmatpush1.bf16.msra.mxu0 %v2593
    %3595 = vmatprep.subr.bf16.mxu0 %v2602
    %3596 = vmatpush1.bf16.msra.mxu0 %v2601
    %3597 = vmatprep.subr.bf16.mxu0 %v2610
    %3598 = vmatpush1.bf16.msra.mxu0 %v2609
    %3599 = vmatprep.subr.bf16.mxu0 %v2618
    %3600 = vmatpush1.bf16.msra.mxu0 %v2617
    %3601 = vmatprep.subr.bf16.mxu0 %v2626
    %3602 = vmatpush1.bf16.msra.mxu0 %v2625
    %3603 = vmatprep.subr.bf16.mxu0 %v2634
    %3604 = vmatpush1.bf16.msra.mxu0 %v2633
    %3605 = vmatprep.subr.bf16.mxu0 %v2642
    %3606 = vmatpush1.bf16.msra.mxu0 %v2641
    %3607 = vmatprep.subr.bf16.mxu0 %v2650
    %3608 = vmatpush1.bf16.msra.mxu0 %v2649
    %3609 = vmatprep.subr.bf16.mxu0 %v2658
    %3610 = vmatpush1.bf16.msra.mxu0 %v2657
    %3611 = vmatprep.subr.bf16.mxu0 %v2666
    %3612 = vmatpush1.bf16.msra.mxu0 %v2665
    %3613 = vmatprep.subr.bf16.mxu0 %v2674
    %3614 = vmatpush1.bf16.msra.mxu0 %v2673
    %3615 = vmatprep.subr.bf16.mxu0 %v2682
    %3616 = vmatpush1.bf16.msra.mxu0 %v2681
    %3617 = vmatprep.mubr.bf16.mxu0 %v756
    %3618 = vmatmul.mubr.bf16.gmra.mrb[0].mxu0 %v755
    %v3619 = vpop.f32.mrb[0].mxu0
    %v3620 = vadd.f32 %v3577, %v3619
    %v3621 = vpop.f32.mrb[0].mxu0
    %v3622 = vadd.f32 %v3579, %v3621
    %v3623 = vpop.f32.mrb[0].mxu0
    %v3624 = vadd.f32 %v3581, %v3623
    %v3625 = vpop.f32.mrb[0].mxu0
    %v3626 = vadd.f32 %v3583, %v3625
    %3627 = vdwg.mxu0
    %3628 = vmatprep.subr.bf16.mxu0 %v2690
    %3629 = vmatpush1.bf16.msra.mxu0 %v2689
    %3630 = vmatprep.subr.bf16.mxu0 %v2698
    %3631 = vmatpush1.bf16.msra.mxu0 %v2697
    %3632 = vmatprep.subr.bf16.mxu0 %v2706
    %3633 = vmatpush1.bf16.msra.mxu0 %v2705
    %3634 = vmatprep.subr.bf16.mxu0 %v2714
    %3635 = vmatpush1.bf16.msra.mxu0 %v2713
    %3636 = vmatprep.subr.bf16.mxu0 %v2722
    %3637 = vmatpush1.bf16.msra.mxu0 %v2721
    %3638 = vmatprep.subr.bf16.mxu0 %v2730
    %3639 = vmatpush1.bf16.msra.mxu0 %v2729
    %3640 = vmatprep.subr.bf16.mxu0 %v2738
    %3641 = vmatpush1.bf16.msra.mxu0 %v2737
    %3642 = vmatprep.subr.bf16.mxu0 %v2746
    %3643 = vmatpush1.bf16.msra.mxu0 %v2745
    %3644 = vmatprep.subr.bf16.mxu0 %v2754
    %3645 = vmatpush1.bf16.msra.mxu0 %v2753
    %3646 = vmatprep.subr.bf16.mxu0 %v2762
    %3647 = vmatpush1.bf16.msra.mxu0 %v2761
    %3648 = vmatprep.subr.bf16.mxu0 %v2770
    %3649 = vmatpush1.bf16.msra.mxu0 %v2769
    %3650 = vmatprep.subr.bf16.mxu0 %v2778
    %3651 = vmatpush1.bf16.msra.mxu0 %v2777
    %3652 = vmatprep.subr.bf16.mxu0 %v2786
    %3653 = vmatpush1.bf16.msra.mxu0 %v2785
    %3654 = vmatprep.subr.bf16.mxu0 %v2794
    %3655 = vmatpush1.bf16.msra.mxu0 %v2793
    %3656 = vmatprep.subr.bf16.mxu0 %v2802
    %3657 = vmatpush1.bf16.msra.mxu0 %v2801
    %3658 = vmatprep.subr.bf16.mxu0 %v2810
    %3659 = vmatpush1.bf16.msra.mxu0 %v2809
    %3660 = vmatprep.mubr.bf16.mxu0 %v758
    %3661 = vmatmul.mubr.bf16.gmra.mrb[0].mxu0 %v757
    %v3662 = vpop.f32.mrb[0].mxu0
    %v3663 = vadd.f32 %v3620, %v3662
    %v3664 = vpop.f32.mrb[0].mxu0
    %v3665 = vadd.f32 %v3622, %v3664
    %v3666 = vpop.f32.mrb[0].mxu0
    %v3667 = vadd.f32 %v3624, %v3666
    %v3668 = vpop.f32.mrb[0].mxu0
    %v3669 = vadd.f32 %v3626, %v3668
    %3670 = vdwg.mxu0
    %3671 = vmatprep.subr.bf16.mxu0 %v2308
    %3672 = vmatpush1.bf16.msra.mxu0 %v2307
    %3673 = vmatprep.subr.bf16.mxu0 %v2316
    %3674 = vmatpush1.bf16.msra.mxu0 %v2315
    %3675 = vmatprep.subr.bf16.mxu0 %v2324
    %3676 = vmatpush1.bf16.msra.mxu0 %v2323
    %3677 = vmatprep.subr.bf16.mxu0 %v2332
    %3678 = vmatpush1.bf16.msra.mxu0 %v2331
    %3679 = vmatprep.subr.bf16.mxu0 %v2340
    %3680 = vmatpush1.bf16.msra.mxu0 %v2339
    %3681 = vmatprep.subr.bf16.mxu0 %v2348
    %3682 = vmatpush1.bf16.msra.mxu0 %v2347
    %3683 = vmatprep.subr.bf16.mxu0 %v2356
    %3684 = vmatpush1.bf16.msra.mxu0 %v2355
    %3685 = vmatprep.subr.bf16.mxu0 %v2364
    %3686 = vmatpush1.bf16.msra.mxu0 %v2363
    %3687 = vmatprep.subr.bf16.mxu0 %v2372
    %3688 = vmatpush1.bf16.msra.mxu0 %v2371
    %3689 = vmatprep.subr.bf16.mxu0 %v2380
    %3690 = vmatpush1.bf16.msra.mxu0 %v2379
    %3691 = vmatprep.subr.bf16.mxu0 %v2388
    %3692 = vmatpush1.bf16.msra.mxu0 %v2387
    %3693 = vmatprep.subr.bf16.mxu0 %v2396
    %3694 = vmatpush1.bf16.msra.mxu0 %v2395
    %3695 = vmatprep.subr.bf16.mxu0 %v2404
    %3696 = vmatpush1.bf16.msra.mxu0 %v2403
    %3697 = vmatprep.subr.bf16.mxu0 %v2412
    %3698 = vmatpush1.bf16.msra.mxu0 %v2411
    %3699 = vmatprep.subr.bf16.mxu0 %v2420
    %3700 = vmatpush1.bf16.msra.mxu0 %v2419
    %3701 = vmatprep.subr.bf16.mxu0 %v2428
    %3702 = vmatpush1.bf16.msra.mxu0 %v2427
    %3703 = vmatprep.mubr.bf16.mxu0 %v752
    %3704 = vmatmul.mubr.bf16.gmra.mrb[0].mxu0 %v751
    %v3705 = vpop.f32.mrb[0].mxu0
    %v3706 = vadd.f32 %v706, %v3705
    %v3707 = vpop.f32.mrb[0].mxu0
    %v3708 = vadd.f32 %v710, %v3707
    %v3709 = vpop.f32.mrb[0].mxu0
    %v3710 = vadd.f32 %v706, %v3709
    %v3711 = vpop.f32.mrb[0].mxu0
    %v3712 = vadd.f32 %v710, %v3711
    %3713 = vdwg.mxu0
    %3714 = vmatprep.subr.bf16.mxu0 %v2436
    %3715 = vmatpush1.bf16.msra.mxu0 %v2435
    %3716 = vmatprep.subr.bf16.mxu0 %v2444
    %3717 = vmatpush1.bf16.msra.mxu0 %v2443
    %3718 = vmatprep.subr.bf16.mxu0 %v2452
    %3719 = vmatpush1.bf16.msra.mxu0 %v2451
    %3720 = vmatprep.subr.bf16.mxu0 %v2460
    %3721 = vmatpush1.bf16.msra.mxu0 %v2459
    %3722 = vmatprep.subr.bf16.mxu0 %v2468
    %3723 = vmatpush1.bf16.msra.mxu0 %v2467
    %3724 = vmatprep.subr.bf16.mxu0 %v2476
    %3725 = vmatpush1.bf16.msra.mxu0 %v2475
    %3726 = vmatprep.subr.bf16.mxu0 %v2484
    %3727 = vmatpush1.bf16.msra.mxu0 %v2483
    %3728 = vmatprep.subr.bf16.mxu0 %v2492
    %3729 = vmatpush1.bf16.msra.mxu0 %v2491
    %3730 = vmatprep.subr.bf16.mxu0 %v2500
    %3731 = vmatpush1.bf16.msra.mxu0 %v2499
    %3732 = vmatprep.subr.bf16.mxu0 %v2508
    %3733 = vmatpush1.bf16.msra.mxu0 %v2507
    %3734 = vmatprep.subr.bf16.mxu0 %v2516
    %3735 = vmatpush1.bf16.msra.mxu0 %v2515
    %3736 = vmatprep.subr.bf16.mxu0 %v2524
    %3737 = vmatpush1.bf16.msra.mxu0 %v2523
    %3738 = vmatprep.subr.bf16.mxu0 %v2532
    %3739 = vmatpush1.bf16.msra.mxu0 %v2531
    %3740 = vmatprep.subr.bf16.mxu0 %v2540
    %3741 = vmatpush1.bf16.msra.mxu0 %v2539
    %3742 = vmatprep.subr.bf16.mxu0 %v2548
    %3743 = vmatpush1.bf16.msra.mxu0 %v2547
    %3744 = vmatprep.subr.bf16.mxu0 %v2556
    %3745 = vmatpush1.bf16.msra.mxu0 %v2555
    %3746 = vmatprep.mubr.bf16.mxu0 %v754
    %3747 = vmatmul.mubr.bf16.gmra.mrb[0].mxu0 %v753
    %v3748 = vpop.f32.mrb[0].mxu0
    %v3749 = vadd.f32 %v3706, %v3748
    %v3750 = vpop.f32.mrb[0].mxu0
    %v3751 = vadd.f32 %v3708, %v3750
    %v3752 = vpop.f32.mrb[0].mxu0
    %v3753 = vadd.f32 %v3710, %v3752
    %v3754 = vpop.f32.mrb[0].mxu0
    %v3755 = vadd.f32 %v3712, %v3754
    %3756 = vdwg.mxu0
    %3757 = vmatprep.subr.bf16.mxu0 %v2564
    %3758 = vmatpush1.bf16.msra.mxu0 %v2563
    %3759 = vmatprep.subr.bf16.mxu0 %v2572
    %3760 = vmatpush1.bf16.msra.mxu0 %v2571
    %3761 = vmatprep.subr.bf16.mxu0 %v2580
    %3762 = vmatpush1.bf16.msra.mxu0 %v2579
    %3763 = vmatprep.subr.bf16.mxu0 %v2588
    %3764 = vmatpush1.bf16.msra.mxu0 %v2587
    %3765 = vmatprep.subr.bf16.mxu0 %v2596
    %3766 = vmatpush1.bf16.msra.mxu0 %v2595
    %3767 = vmatprep.subr.bf16.mxu0 %v2604
    %3768 = vmatpush1.bf16.msra.mxu0 %v2603
    %3769 = vmatprep.subr.bf16.mxu0 %v2612
    %3770 = vmatpush1.bf16.msra.mxu0 %v2611
    %3771 = vmatprep.subr.bf16.mxu0 %v2620
    %3772 = vmatpush1.bf16.msra.mxu0 %v2619
    %3773 = vmatprep.subr.bf16.mxu0 %v2628
    %3774 = vmatpush1.bf16.msra.mxu0 %v2627
    %3775 = vmatprep.subr.bf16.mxu0 %v2636
    %3776 = vmatpush1.bf16.msra.mxu0 %v2635
    %3777 = vmatprep.subr.bf16.mxu0 %v2644
    %3778 = vmatpush1.bf16.msra.mxu0 %v2643
    %3779 = vmatprep.subr.bf16.mxu0 %v2652
    %3780 = vmatpush1.bf16.msra.mxu0 %v2651
    %3781 = vmatprep.subr.bf16.mxu0 %v2660
    %3782 = vmatpush1.bf16.msra.mxu0 %v2659
    %3783 = vmatprep.subr.bf16.mxu0 %v2668
    %3784 = vmatpush1.bf16.msra.mxu0 %v2667
    %3785 = vmatprep.subr.bf16.mxu0 %v2676
    %3786 = vmatpush1.bf16.msra.mxu0 %v2675
    %3787 = vmatprep.subr.bf16.mxu0 %v2684
    %3788 = vmatpush1.bf16.msra.mxu0 %v2683
    %3789 = vmatprep.mubr.bf16.mxu0 %v756
    %3790 = vmatmul.mubr.bf16.gmra.mrb[0].mxu0 %v755
    %v3791 = vpop.f32.mrb[0].mxu0
    %v3792 = vadd.f32 %v3749, %v3791
    %v3793 = vpop.f32.mrb[0].mxu0
    %v3794 = vadd.f32 %v3751, %v3793
    %v3795 = vpop.f32.mrb[0].mxu0
    %v3796 = vadd.f32 %v3753, %v3795
    %v3797 = vpop.f32.mrb[0].mxu0
    %v3798 = vadd.f32 %v3755, %v3797
    %3799 = vdwg.mxu0
    %3800 = vmatprep.subr.bf16.mxu0 %v2692
    %3801 = vmatpush1.bf16.msra.mxu0 %v2691
    %3802 = vmatprep.subr.bf16.mxu0 %v2700
    %3803 = vmatpush1.bf16.msra.mxu0 %v2699
    %3804 = vmatprep.subr.bf16.mxu0 %v2708
    %3805 = vmatpush1.bf16.msra.mxu0 %v2707
    %3806 = vmatprep.subr.bf16.mxu0 %v2716
    %3807 = vmatpush1.bf16.msra.mxu0 %v2715
    %3808 = vmatprep.subr.bf16.mxu0 %v2724
    %3809 = vmatpush1.bf16.msra.mxu0 %v2723
    %3810 = vmatprep.subr.bf16.mxu0 %v2732
    %3811 = vmatpush1.bf16.msra.mxu0 %v2731
    %3812 = vmatprep.subr.bf16.mxu0 %v2740
    %3813 = vmatpush1.bf16.msra.mxu0 %v2739
    %3814 = vmatprep.subr.bf16.mxu0 %v2748
    %3815 = vmatpush1.bf16.msra.mxu0 %v2747
    %3816 = vmatprep.subr.bf16.mxu0 %v2756
    %3817 = vmatpush1.bf16.msra.mxu0 %v2755
    %3818 = vmatprep.subr.bf16.mxu0 %v2764
    %3819 = vmatpush1.bf16.msra.mxu0 %v2763
    %3820 = vmatprep.subr.bf16.mxu0 %v2772
    %3821 = vmatpush1.bf16.msra.mxu0 %v2771
    %3822 = vmatprep.subr.bf16.mxu0 %v2780
    %3823 = vmatpush1.bf16.msra.mxu0 %v2779
    %3824 = vmatprep.subr.bf16.mxu0 %v2788
    %3825 = vmatpush1.bf16.msra.mxu0 %v2787
    %3826 = vmatprep.subr.bf16.mxu0 %v2796
    %3827 = vmatpush1.bf16.msra.mxu0 %v2795
    %3828 = vmatprep.subr.bf16.mxu0 %v2804
    %3829 = vmatpush1.bf16.msra.mxu0 %v2803
    %3830 = vmatprep.subr.bf16.mxu0 %v2812
    %3831 = vmatpush1.bf16.msra.mxu0 %v2811
    %3832 = vmatprep.mubr.bf16.mxu0 %v758
    %3833 = vmatmul.mubr.bf16.gmra.mrb[0].mxu0 %v757
    %v3834 = vpop.f32.mrb[0].mxu0
    %v3835 = vadd.f32 %v3792, %v3834
    %v3836 = vpop.f32.mrb[0].mxu0
    %v3837 = vadd.f32 %v3794, %v3836
    %v3838 = vpop.f32.mrb[0].mxu0
    %v3839 = vadd.f32 %v3796, %v3838
    %v3840 = vpop.f32.mrb[0].mxu0
    %v3841 = vadd.f32 %v3798, %v3840
    %3842 = vdwg.mxu0
    %3843 = vmatprep.subr.bf16.mxu0 %v2310
    %3844 = vmatpush1.bf16.msra.mxu0 %v2309
    %3845 = vmatprep.subr.bf16.mxu0 %v2318
    %3846 = vmatpush1.bf16.msra.mxu0 %v2317
    %3847 = vmatprep.subr.bf16.mxu0 %v2326
    %3848 = vmatpush1.bf16.msra.mxu0 %v2325
    %3849 = vmatprep.subr.bf16.mxu0 %v2334
    %3850 = vmatpush1.bf16.msra.mxu0 %v2333
    %3851 = vmatprep.subr.bf16.mxu0 %v2342
    %3852 = vmatpush1.bf16.msra.mxu0 %v2341
    %3853 = vmatprep.subr.bf16.mxu0 %v2350
    %3854 = vmatpush1.bf16.msra.mxu0 %v2349
    %3855 = vmatprep.subr.bf16.mxu0 %v2358
    %3856 = vmatpush1.bf16.msra.mxu0 %v2357
    %3857 = vmatprep.subr.bf16.mxu0 %v2366
    %3858 = vmatpush1.bf16.msra.mxu0 %v2365
    %3859 = vmatprep.subr.bf16.mxu0 %v2374
    %3860 = vmatpush1.bf16.msra.mxu0 %v2373
    %3861 = vmatprep.subr.bf16.mxu0 %v2382
    %3862 = vmatpush1.bf16.msra.mxu0 %v2381
    %3863 = vmatprep.subr.bf16.mxu0 %v2390
    %3864 = vmatpush1.bf16.msra.mxu0 %v2389
    %3865 = vmatprep.subr.bf16.mxu0 %v2398
    %3866 = vmatpush1.bf16.msra.mxu0 %v2397
    %3867 = vmatprep.subr.bf16.mxu0 %v2406
    %3868 = vmatpush1.bf16.msra.mxu0 %v2405
    %3869 = vmatprep.subr.bf16.mxu0 %v2414
    %3870 = vmatpush1.bf16.msra.mxu0 %v2413
    %3871 = vmatprep.subr.bf16.mxu0 %v2422
    %3872 = vmatpush1.bf16.msra.mxu0 %v2421
    %3873 = vmatprep.subr.bf16.mxu0 %v2430
    %3874 = vmatpush1.bf16.msra.mxu0 %v2429
    %3875 = vmatprep.mubr.bf16.mxu0 %v752
    %3876 = vmatmul.mubr.bf16.gmra.mrb[0].mxu0 %v751
    %v3877 = vpop.f32.mrb[0].mxu0
    %v3878 = vadd.f32 %v714, %v3877
    %v3879 = vpop.f32.mrb[0].mxu0
    %v3880 = vadd.f32 %v718, %v3879
    %v3881 = vpop.f32.mrb[0].mxu0
    %v3882 = vadd.f32 %v714, %v3881
    %v3883 = vpop.f32.mrb[0].mxu0
    %v3884 = vadd.f32 %v718, %v3883
    %3885 = vdwg.mxu0
    %3886 = vmatprep.subr.bf16.mxu0 %v2438
    %3887 = vmatpush1.bf16.msra.mxu0 %v2437
    %3888 = vmatprep.subr.bf16.mxu0 %v2446
    %3889 = vmatpush1.bf16.msra.mxu0 %v2445
    %3890 = vmatprep.subr.bf16.mxu0 %v2454
    %3891 = vmatpush1.bf16.msra.mxu0 %v2453
    %3892 = vmatprep.subr.bf16.mxu0 %v2462
    %3893 = vmatpush1.bf16.msra.mxu0 %v2461
    %3894 = vmatprep.subr.bf16.mxu0 %v2470
    %3895 = vmatpush1.bf16.msra.mxu0 %v2469
    %3896 = vmatprep.subr.bf16.mxu0 %v2478
    %3897 = vmatpush1.bf16.msra.mxu0 %v2477
    %3898 = vmatprep.subr.bf16.mxu0 %v2486
    %3899 = vmatpush1.bf16.msra.mxu0 %v2485
    %3900 = vmatprep.subr.bf16.mxu0 %v2494
    %3901 = vmatpush1.bf16.msra.mxu0 %v2493
    %3902 = vmatprep.subr.bf16.mxu0 %v2502
    %3903 = vmatpush1.bf16.msra.mxu0 %v2501
    %3904 = vmatprep.subr.bf16.mxu0 %v2510
    %3905 = vmatpush1.bf16.msra.mxu0 %v2509
    %3906 = vmatprep.subr.bf16.mxu0 %v2518
    %3907 = vmatpush1.bf16.msra.mxu0 %v2517
    %3908 = vmatprep.subr.bf16.mxu0 %v2526
    %3909 = vmatpush1.bf16.msra.mxu0 %v2525
    %3910 = vmatprep.subr.bf16.mxu0 %v2534
    %3911 = vmatpush1.bf16.msra.mxu0 %v2533
    %3912 = vmatprep.subr.bf16.mxu0 %v2542
    %3913 = vmatpush1.bf16.msra.mxu0 %v2541
    %3914 = vmatprep.subr.bf16.mxu0 %v2550
    %3915 = vmatpush1.bf16.msra.mxu0 %v2549
    %3916 = vmatprep.subr.bf16.mxu0 %v2558
    %3917 = vmatpush1.bf16.msra.mxu0 %v2557
    %3918 = vmatprep.mubr.bf16.mxu0 %v754
    %3919 = vmatmul.mubr.bf16.gmra.mrb[0].mxu0 %v753
    %v3920 = vpop.f32.mrb[0].mxu0
    %v3921 = vadd.f32 %v3878, %v3920
    %v3922 = vpop.f32.mrb[0].mxu0
    %v3923 = vadd.f32 %v3880, %v3922
    %v3924 = vpop.f32.mrb[0].mxu0
    %v3925 = vadd.f32 %v3882, %v3924
    %v3926 = vpop.f32.mrb[0].mxu0
    %v3927 = vadd.f32 %v3884, %v3926
    %3928 = vdwg.mxu0
    %3929 = vmatprep.subr.bf16.mxu0 %v2566
    %3930 = vmatpush1.bf16.msra.mxu0 %v2565
    %3931 = vmatprep.subr.bf16.mxu0 %v2574
    %3932 = vmatpush1.bf16.msra.mxu0 %v2573
    %3933 = vmatprep.subr.bf16.mxu0 %v2582
    %3934 = vmatpush1.bf16.msra.mxu0 %v2581
    %3935 = vmatprep.subr.bf16.mxu0 %v2590
    %3936 = vmatpush1.bf16.msra.mxu0 %v2589
    %3937 = vmatprep.subr.bf16.mxu0 %v2598
    %3938 = vmatpush1.bf16.msra.mxu0 %v2597
    %3939 = vmatprep.subr.bf16.mxu0 %v2606
    %3940 = vmatpush1.bf16.msra.mxu0 %v2605
    %3941 = vmatprep.subr.bf16.mxu0 %v2614
    %3942 = vmatpush1.bf16.msra.mxu0 %v2613
    %3943 = vmatprep.subr.bf16.mxu0 %v2622
    %3944 = vmatpush1.bf16.msra.mxu0 %v2621
    %3945 = vmatprep.subr.bf16.mxu0 %v2630
    %3946 = vmatpush1.bf16.msra.mxu0 %v2629
    %3947 = vmatprep.subr.bf16.mxu0 %v2638
    %3948 = vmatpush1.bf16.msra.mxu0 %v2637
    %3949 = vmatprep.subr.bf16.mxu0 %v2646
    %3950 = vmatpush1.bf16.msra.mxu0 %v2645
    %3951 = vmatprep.subr.bf16.mxu0 %v2654
    %3952 = vmatpush1.bf16.msra.mxu0 %v2653
    %3953 = vmatprep.subr.bf16.mxu0 %v2662
    %3954 = vmatpush1.bf16.msra.mxu0 %v2661
    %3955 = vmatprep.subr.bf16.mxu0 %v2670
    %3956 = vmatpush1.bf16.msra.mxu0 %v2669
    %3957 = vmatprep.subr.bf16.mxu0 %v2678
    %3958 = vmatpush1.bf16.msra.mxu0 %v2677
    %3959 = vmatprep.subr.bf16.mxu0 %v2686
    %3960 = vmatpush1.bf16.msra.mxu0 %v2685
    %3961 = vmatprep.mubr.bf16.mxu0 %v756
    %3962 = vmatmul.mubr.bf16.gmra.mrb[0].mxu0 %v755
    %v3963 = vpop.f32.mrb[0].mxu0
    %v3964 = vadd.f32 %v3921, %v3963
    %v3965 = vpop.f32.mrb[0].mxu0
    %v3966 = vadd.f32 %v3923, %v3965
    %v3967 = vpop.f32.mrb[0].mxu0
    %v3968 = vadd.f32 %v3925, %v3967
    %v3969 = vpop.f32.mrb[0].mxu0
    %v3970 = vadd.f32 %v3927, %v3969
    %3971 = vdwg.mxu0
    %3972 = vmatprep.subr.bf16.mxu0 %v2694
    %3973 = vmatpush1.bf16.msra.mxu0 %v2693
    %3974 = vmatprep.subr.bf16.mxu0 %v2702
    %3975 = vmatpush1.bf16.msra.mxu0 %v2701
    %3976 = vmatprep.subr.bf16.mxu0 %v2710
    %3977 = vmatpush1.bf16.msra.mxu0 %v2709
    %3978 = vmatprep.subr.bf16.mxu0 %v2718
    %3979 = vmatpush1.bf16.msra.mxu0 %v2717
    %3980 = vmatprep.subr.bf16.mxu0 %v2726
    %3981 = vmatpush1.bf16.msra.mxu0 %v2725
    %3982 = vmatprep.subr.bf16.mxu0 %v2734
    %3983 = vmatpush1.bf16.msra.mxu0 %v2733
    %3984 = vmatprep.subr.bf16.mxu0 %v2742
    %3985 = vmatpush1.bf16.msra.mxu0 %v2741
    %3986 = vmatprep.subr.bf16.mxu0 %v2750
    %3987 = vmatpush1.bf16.msra.mxu0 %v2749
    %3988 = vmatprep.subr.bf16.mxu0 %v2758
    %3989 = vmatpush1.bf16.msra.mxu0 %v2757
    %3990 = vmatprep.subr.bf16.mxu0 %v2766
    %3991 = vmatpush1.bf16.msra.mxu0 %v2765
    %3992 = vmatprep.subr.bf16.mxu0 %v2774
    %3993 = vmatpush1.bf16.msra.mxu0 %v2773
    %3994 = vmatprep.subr.bf16.mxu0 %v2782
    %3995 = vmatpush1.bf16.msra.mxu0 %v2781
    %3996 = vmatprep.subr.bf16.mxu0 %v2790
    %3997 = vmatpush1.bf16.msra.mxu0 %v2789
    %3998 = vmatprep.subr.bf16.mxu0 %v2798
    %3999 = vmatpush1.bf16.msra.mxu0 %v2797
    %4000 = vmatprep.subr.bf16.mxu0 %v2806
    %4001 = vmatpush1.bf16.msra.mxu0 %v2805
    %4002 = vmatprep.subr.bf16.mxu0 %v2814
    %4003 = vmatpush1.bf16.msra.mxu0 %v2813
    %4004 = vmatprep.mubr.bf16.mxu0 %v758
    %4005 = vmatmul.mubr.bf16.gmra.mrb[0].mxu0 %v757
    %v4006 = vpop.f32.mrb[0].mxu0
    %v4007 = vadd.f32 %v3964, %v4006
    %v4008 = vpop.f32.mrb[0].mxu0
    %v4009 = vadd.f32 %v3966, %v4008
    %v4010 = vpop.f32.mrb[0].mxu0
    %v4011 = vadd.f32 %v3968, %v4010
    %v4012 = vpop.f32.mrb[0].mxu0
    %v4013 = vadd.f32 %v3970, %v4012
    %4014 = vdwg.mxu0
    %v4015 = vmul.f32 %v3491, 0.2
    %v4016 = vmul.f32 %v3493, 0.2
    %v4017 = vmul.f32 %v3663, 0.2
    %v4018 = vmul.f32 %v3665, 0.2
    %v4019 = vmul.f32 %v3835, 0.2
    %v4020 = vmul.f32 %v3837, 0.2
    %v4021 = vmul.f32 %v4007, 0.2
    %v4022 = vmul.f32 %v4009, 0.2
    %v4023 = vmul.f32 %v3495, 0.2
    %v4024 = vmul.f32 %v3497, 0.2
    %v4025 = vmul.f32 %v3667, 0.2
    %v4026 = vmul.f32 %v3669, 0.2
    %v4027 = vmul.f32 %v3839, 0.2
    %v4028 = vmul.f32 %v3841, 0.2
    %v4029 = vmul.f32 %v4011, 0.2
    %v4030 = vmul.f32 %v4013, 0.2
    %v4031 = vmax.f32 %v3491, %v4015
    %v4032 = vmax.f32 %v3493, %v4016
    %v4033 = vmax.f32 %v3663, %v4017
    %v4034 = vmax.f32 %v3665, %v4018
    %v4035 = vmax.f32 %v3835, %v4019
    %v4036 = vmax.f32 %v3837, %v4020
    %v4037 = vmax.f32 %v4007, %v4021
    %v4038 = vmax.f32 %v4009, %v4022
    %v4039 = vmax.f32 %v3495, %v4023
    %v4040 = vmax.f32 %v3497, %v4024
    %v4041 = vmax.f32 %v3667, %v4025
    %v4042 = vmax.f32 %v3669, %v4026
    %v4043 = vmax.f32 %v3839, %v4027
    %v4044 = vmax.f32 %v3841, %v4028
    %v4045 = vmax.f32 %v4011, %v4029
    %v4046 = vmax.f32 %v4013, %v4030
    %v4047 = vpack.c.bf16 %v4039, %v4031
    %v4048 = vpack.c.bf16 %v4040, %v4032
    %v4049 = vpack.c.bf16 %v4041, %v4033
    %v4050 = vpack.c.bf16 %v4042, %v4034
    %v4051 = vpack.c.bf16 %v4043, %v4035
    %v4052 = vpack.c.bf16 %v4044, %v4036
    %v4053 = vpack.c.bf16 %v4045, %v4037
    %v4054 = vpack.c.bf16 %v4046, %v4038
    %v4055 = vld [vmem:[#allocation6] sm:$0xff]
    %v4056 = vld [vmem:[#allocation6 + $0x8] sm:$0xff]
    %v4057 = vld [vmem:[#allocation6 + $0x10] sm:$0xff]
    %v4058 = vld [vmem:[#allocation6 + $0x18] sm:$0xff]
    %v4059 = vld [vmem:[#allocation6 + $0x20] sm:$0xff]
    %v4060 = vld [vmem:[#allocation6 + $0x28] sm:$0xff]
    %v4061 = vld [vmem:[#allocation6 + $0x30] sm:$0xff]
    %v4062 = vld [vmem:[#allocation6 + $0x38] sm:$0xff]
    %v4063 = vld [vmem:[#allocation6 + $0x40] sm:$0xff]
    %v4064 = vld [vmem:[#allocation6 + $0x48] sm:$0xff]
    %v4065 = vld [vmem:[#allocation6 + $0x50] sm:$0xff]
    %v4066 = vld [vmem:[#allocation6 + $0x58] sm:$0xff]
    %v4067 = vld [vmem:[#allocation6 + $0x60] sm:$0xff]
    %v4068 = vld [vmem:[#allocation6 + $0x68] sm:$0xff]
    %v4069 = vld [vmem:[#allocation6 + $0x70] sm:$0xff]
    %v4070 = vld [vmem:[#allocation6 + $0x78] sm:$0xff]
    %v4071 = vld [vmem:[#allocation6 + $0x80] sm:$0xff]
    %v4072 = vld [vmem:[#allocation6 + $0x88] sm:$0xff]
    %v4073 = vld [vmem:[#allocation6 + $0x90] sm:$0xff]
    %v4074 = vld [vmem:[#allocation6 + $0x98] sm:$0xff]
    %v4075 = vld [vmem:[#allocation6 + $0xa0] sm:$0xff]
    %v4076 = vld [vmem:[#allocation6 + $0xa8] sm:$0xff]
    %v4077 = vld [vmem:[#allocation6 + $0xb0] sm:$0xff]
    %v4078 = vld [vmem:[#allocation6 + $0xb8] sm:$0xff]
    %v4079 = vld [vmem:[#allocation6 + $0xc0] sm:$0xff]
    %v4080 = vld [vmem:[#allocation6 + $0xc8] sm:$0xff]
    %v4081 = vld [vmem:[#allocation6 + $0xd0] sm:$0xff]
    %v4082 = vld [vmem:[#allocation6 + $0xd8] sm:$0xff]
    %v4083 = vld [vmem:[#allocation6 + $0xe0] sm:$0xff]
    %v4084 = vld [vmem:[#allocation6 + $0xe8] sm:$0xff]
    %v4085 = vld [vmem:[#allocation6 + $0xf0] sm:$0xff]
    %v4086 = vld [vmem:[#allocation6 + $0xf8] sm:$0xff]
    %v4087 = vld [vmem:[#allocation6 + $0x100] sm:$0xff]
    %v4088 = vld [vmem:[#allocation6 + $0x108] sm:$0xff]
    %v4089 = vld [vmem:[#allocation6 + $0x110] sm:$0xff]
    %v4090 = vld [vmem:[#allocation6 + $0x118] sm:$0xff]
    %v4091 = vld [vmem:[#allocation6 + $0x120] sm:$0xff]
    %v4092 = vld [vmem:[#allocation6 + $0x128] sm:$0xff]
    %v4093 = vld [vmem:[#allocation6 + $0x130] sm:$0xff]
    %v4094 = vld [vmem:[#allocation6 + $0x138] sm:$0xff]
    %v4095 = vld [vmem:[#allocation6 + $0x140] sm:$0xff]
    %v4096 = vld [vmem:[#allocation6 + $0x148] sm:$0xff]
    %v4097 = vld [vmem:[#allocation6 + $0x150] sm:$0xff]
    %v4098 = vld [vmem:[#allocation6 + $0x158] sm:$0xff]
    %v4099 = vld [vmem:[#allocation6 + $0x160] sm:$0xff]
    %v4100 = vld [vmem:[#allocation6 + $0x168] sm:$0xff]
    %v4101 = vld [vmem:[#allocation6 + $0x170] sm:$0xff]
    %v4102 = vld [vmem:[#allocation6 + $0x178] sm:$0xff]
    %v4103 = vld [vmem:[#allocation6 + $0x180] sm:$0xff]
    %v4104 = vld [vmem:[#allocation6 + $0x188] sm:$0xff]
    %v4105 = vld [vmem:[#allocation6 + $0x190] sm:$0xff]
    %v4106 = vld [vmem:[#allocation6 + $0x198] sm:$0xff]
    %v4107 = vld [vmem:[#allocation6 + $0x1a0] sm:$0xff]
    %v4108 = vld [vmem:[#allocation6 + $0x1a8] sm:$0xff]
    %v4109 = vld [vmem:[#allocation6 + $0x1b0] sm:$0xff]
    %v4110 = vld [vmem:[#allocation6 + $0x1b8] sm:$0xff]
    %v4111 = vld [vmem:[#allocation6 + $0x1c0] sm:$0xff]
    %v4112 = vld [vmem:[#allocation6 + $0x1c8] sm:$0xff]
    %v4113 = vld [vmem:[#allocation6 + $0x1d0] sm:$0xff]
    %v4114 = vld [vmem:[#allocation6 + $0x1d8] sm:$0xff]
    %v4115 = vld [vmem:[#allocation6 + $0x1e0] sm:$0xff]
    %v4116 = vld [vmem:[#allocation6 + $0x1e8] sm:$0xff]
    %v4117 = vld [vmem:[#allocation6 + $0x1f0] sm:$0xff]
    %v4118 = vld [vmem:[#allocation6 + $0x1f8] sm:$0xff]
    %v4119 = vld [vmem:[#allocation6 + $0x200] sm:$0xff]
    %v4120 = vld [vmem:[#allocation6 + $0x208] sm:$0xff]
    %v4121 = vld [vmem:[#allocation6 + $0x210] sm:$0xff]
    %v4122 = vld [vmem:[#allocation6 + $0x218] sm:$0xff]
    %v4123 = vld [vmem:[#allocation6 + $0x220] sm:$0xff]
    %v4124 = vld [vmem:[#allocation6 + $0x228] sm:$0xff]
    %v4125 = vld [vmem:[#allocation6 + $0x230] sm:$0xff]
    %v4126 = vld [vmem:[#allocation6 + $0x238] sm:$0xff]
    %v4127 = vld [vmem:[#allocation6 + $0x240] sm:$0xff]
    %v4128 = vld [vmem:[#allocation6 + $0x248] sm:$0xff]
    %v4129 = vld [vmem:[#allocation6 + $0x250] sm:$0xff]
    %v4130 = vld [vmem:[#allocation6 + $0x258] sm:$0xff]
    %v4131 = vld [vmem:[#allocation6 + $0x260] sm:$0xff]
    %v4132 = vld [vmem:[#allocation6 + $0x268] sm:$0xff]
    %v4133 = vld [vmem:[#allocation6 + $0x270] sm:$0xff]
    %v4134 = vld [vmem:[#allocation6 + $0x278] sm:$0xff]
    %v4135 = vld [vmem:[#allocation6 + $0x280] sm:$0xff]
    %v4136 = vld [vmem:[#allocation6 + $0x288] sm:$0xff]
    %v4137 = vld [vmem:[#allocation6 + $0x290] sm:$0xff]
    %v4138 = vld [vmem:[#allocation6 + $0x298] sm:$0xff]
    %v4139 = vld [vmem:[#allocation6 + $0x2a0] sm:$0xff]
    %v4140 = vld [vmem:[#allocation6 + $0x2a8] sm:$0xff]
    %v4141 = vld [vmem:[#allocation6 + $0x2b0] sm:$0xff]
    %v4142 = vld [vmem:[#allocation6 + $0x2b8] sm:$0xff]
    %v4143 = vld [vmem:[#allocation6 + $0x2c0] sm:$0xff]
    %v4144 = vld [vmem:[#allocation6 + $0x2c8] sm:$0xff]
    %v4145 = vld [vmem:[#allocation6 + $0x2d0] sm:$0xff]
    %v4146 = vld [vmem:[#allocation6 + $0x2d8] sm:$0xff]
    %v4147 = vld [vmem:[#allocation6 + $0x2e0] sm:$0xff]
    %v4148 = vld [vmem:[#allocation6 + $0x2e8] sm:$0xff]
    %v4149 = vld [vmem:[#allocation6 + $0x2f0] sm:$0xff]
    %v4150 = vld [vmem:[#allocation6 + $0x2f8] sm:$0xff]
    %v4151 = vld [vmem:[#allocation6 + $0x300] sm:$0xff]
    %v4152 = vld [vmem:[#allocation6 + $0x308] sm:$0xff]
    %v4153 = vld [vmem:[#allocation6 + $0x310] sm:$0xff]
    %v4154 = vld [vmem:[#allocation6 + $0x318] sm:$0xff]
    %v4155 = vld [vmem:[#allocation6 + $0x320] sm:$0xff]
    %v4156 = vld [vmem:[#allocation6 + $0x328] sm:$0xff]
    %v4157 = vld [vmem:[#allocation6 + $0x330] sm:$0xff]
    %v4158 = vld [vmem:[#allocation6 + $0x338] sm:$0xff]
    %v4159 = vld [vmem:[#allocation6 + $0x340] sm:$0xff]
    %v4160 = vld [vmem:[#allocation6 + $0x348] sm:$0xff]
    %v4161 = vld [vmem:[#allocation6 + $0x350] sm:$0xff]
    %v4162 = vld [vmem:[#allocation6 + $0x358] sm:$0xff]
    %v4163 = vld [vmem:[#allocation6 + $0x360] sm:$0xff]
    %v4164 = vld [vmem:[#allocation6 + $0x368] sm:$0xff]
    %v4165 = vld [vmem:[#allocation6 + $0x370] sm:$0xff]
    %v4166 = vld [vmem:[#allocation6 + $0x378] sm:$0xff]
    %v4167 = vld [vmem:[#allocation6 + $0x380] sm:$0xff]
    %v4168 = vld [vmem:[#allocation6 + $0x388] sm:$0xff]
    %v4169 = vld [vmem:[#allocation6 + $0x390] sm:$0xff]
    %v4170 = vld [vmem:[#allocation6 + $0x398] sm:$0xff]
    %v4171 = vld [vmem:[#allocation6 + $0x3a0] sm:$0xff]
    %v4172 = vld [vmem:[#allocation6 + $0x3a8] sm:$0xff]
    %v4173 = vld [vmem:[#allocation6 + $0x3b0] sm:$0xff]
    %v4174 = vld [vmem:[#allocation6 + $0x3b8] sm:$0xff]
    %v4175 = vld [vmem:[#allocation6 + $0x3c0] sm:$0xff]
    %v4176 = vld [vmem:[#allocation6 + $0x3c8] sm:$0xff]
    %v4177 = vld [vmem:[#allocation6 + $0x3d0] sm:$0xff]
    %v4178 = vld [vmem:[#allocation6 + $0x3d8] sm:$0xff]
    %v4179 = vld [vmem:[#allocation6 + $0x3e0] sm:$0xff]
    %v4180 = vld [vmem:[#allocation6 + $0x3e8] sm:$0xff]
    %v4181 = vld [vmem:[#allocation6 + $0x3f0] sm:$0xff]
    %v4182 = vld [vmem:[#allocation6 + $0x3f8] sm:$0xff]
    %v4183 = vld [vmem:[#allocation6 + $0x400] sm:$0xff]
    %v4184 = vld [vmem:[#allocation6 + $0x408] sm:$0xff]
    %v4185 = vld [vmem:[#allocation6 + $0x410] sm:$0xff]
    %v4186 = vld [vmem:[#allocation6 + $0x418] sm:$0xff]
    %v4187 = vld [vmem:[#allocation6 + $0x420] sm:$0xff]
    %v4188 = vld [vmem:[#allocation6 + $0x428] sm:$0xff]
    %v4189 = vld [vmem:[#allocation6 + $0x430] sm:$0xff]
    %v4190 = vld [vmem:[#allocation6 + $0x438] sm:$0xff]
    %v4191 = vld [vmem:[#allocation6 + $0x440] sm:$0xff]
    %v4192 = vld [vmem:[#allocation6 + $0x448] sm:$0xff]
    %v4193 = vld [vmem:[#allocation6 + $0x450] sm:$0xff]
    %v4194 = vld [vmem:[#allocation6 + $0x458] sm:$0xff]
    %v4195 = vld [vmem:[#allocation6 + $0x460] sm:$0xff]
    %v4196 = vld [vmem:[#allocation6 + $0x468] sm:$0xff]
    %v4197 = vld [vmem:[#allocation6 + $0x470] sm:$0xff]
    %v4198 = vld [vmem:[#allocation6 + $0x478] sm:$0xff]
    %v4199 = vld [vmem:[#allocation6 + $0x480] sm:$0xff]
    %v4200 = vld [vmem:[#allocation6 + $0x488] sm:$0xff]
    %v4201 = vld [vmem:[#allocation6 + $0x490] sm:$0xff]
    %v4202 = vld [vmem:[#allocation6 + $0x498] sm:$0xff]
    %v4203 = vld [vmem:[#allocation6 + $0x4a0] sm:$0xff]
    %v4204 = vld [vmem:[#allocation6 + $0x4a8] sm:$0xff]
    %v4205 = vld [vmem:[#allocation6 + $0x4b0] sm:$0xff]
    %v4206 = vld [vmem:[#allocation6 + $0x4b8] sm:$0xff]
    %v4207 = vld [vmem:[#allocation6 + $0x4c0] sm:$0xff]
    %v4208 = vld [vmem:[#allocation6 + $0x4c8] sm:$0xff]
    %v4209 = vld [vmem:[#allocation6 + $0x4d0] sm:$0xff]
    %v4210 = vld [vmem:[#allocation6 + $0x4d8] sm:$0xff]
    %v4211 = vld [vmem:[#allocation6 + $0x4e0] sm:$0xff]
    %v4212 = vld [vmem:[#allocation6 + $0x4e8] sm:$0xff]
    %v4213 = vld [vmem:[#allocation6 + $0x4f0] sm:$0xff]
    %v4214 = vld [vmem:[#allocation6 + $0x4f8] sm:$0xff]
    %v4215 = vld [vmem:[#allocation6 + $0x500] sm:$0xff]
    %v4216 = vld [vmem:[#allocation6 + $0x508] sm:$0xff]
    %v4217 = vld [vmem:[#allocation6 + $0x510] sm:$0xff]
    %v4218 = vld [vmem:[#allocation6 + $0x518] sm:$0xff]
    %v4219 = vld [vmem:[#allocation6 + $0x520] sm:$0xff]
    %v4220 = vld [vmem:[#allocation6 + $0x528] sm:$0xff]
    %v4221 = vld [vmem:[#allocation6 + $0x530] sm:$0xff]
    %v4222 = vld [vmem:[#allocation6 + $0x538] sm:$0xff]
    %v4223 = vld [vmem:[#allocation6 + $0x540] sm:$0xff]
    %v4224 = vld [vmem:[#allocation6 + $0x548] sm:$0xff]
    %v4225 = vld [vmem:[#allocation6 + $0x550] sm:$0xff]
    %v4226 = vld [vmem:[#allocation6 + $0x558] sm:$0xff]
    %v4227 = vld [vmem:[#allocation6 + $0x560] sm:$0xff]
    %v4228 = vld [vmem:[#allocation6 + $0x568] sm:$0xff]
    %v4229 = vld [vmem:[#allocation6 + $0x570] sm:$0xff]
    %v4230 = vld [vmem:[#allocation6 + $0x578] sm:$0xff]
    %v4231 = vld [vmem:[#allocation6 + $0x580] sm:$0xff]
    %v4232 = vld [vmem:[#allocation6 + $0x588] sm:$0xff]
    %v4233 = vld [vmem:[#allocation6 + $0x590] sm:$0xff]
    %v4234 = vld [vmem:[#allocation6 + $0x598] sm:$0xff]
    %v4235 = vld [vmem:[#allocation6 + $0x5a0] sm:$0xff]
    %v4236 = vld [vmem:[#allocation6 + $0x5a8] sm:$0xff]
    %v4237 = vld [vmem:[#allocation6 + $0x5b0] sm:$0xff]
    %v4238 = vld [vmem:[#allocation6 + $0x5b8] sm:$0xff]
    %v4239 = vld [vmem:[#allocation6 + $0x5c0] sm:$0xff]
    %v4240 = vld [vmem:[#allocation6 + $0x5c8] sm:$0xff]
    %v4241 = vld [vmem:[#allocation6 + $0x5d0] sm:$0xff]
    %v4242 = vld [vmem:[#allocation6 + $0x5d8] sm:$0xff]
    %v4243 = vld [vmem:[#allocation6 + $0x5e0] sm:$0xff]
    %v4244 = vld [vmem:[#allocation6 + $0x5e8] sm:$0xff]
    %v4245 = vld [vmem:[#allocation6 + $0x5f0] sm:$0xff]
    %v4246 = vld [vmem:[#allocation6 + $0x5f8] sm:$0xff]
    %v4247 = vld [vmem:[#allocation6 + $0x600] sm:$0xff]
    %v4248 = vld [vmem:[#allocation6 + $0x608] sm:$0xff]
    %v4249 = vld [vmem:[#allocation6 + $0x610] sm:$0xff]
    %v4250 = vld [vmem:[#allocation6 + $0x618] sm:$0xff]
    %v4251 = vld [vmem:[#allocation6 + $0x620] sm:$0xff]
    %v4252 = vld [vmem:[#allocation6 + $0x628] sm:$0xff]
    %v4253 = vld [vmem:[#allocation6 + $0x630] sm:$0xff]
    %v4254 = vld [vmem:[#allocation6 + $0x638] sm:$0xff]
    %v4255 = vld [vmem:[#allocation6 + $0x640] sm:$0xff]
    %v4256 = vld [vmem:[#allocation6 + $0x648] sm:$0xff]
    %v4257 = vld [vmem:[#allocation6 + $0x650] sm:$0xff]
    %v4258 = vld [vmem:[#allocation6 + $0x658] sm:$0xff]
    %v4259 = vld [vmem:[#allocation6 + $0x660] sm:$0xff]
    %v4260 = vld [vmem:[#allocation6 + $0x668] sm:$0xff]
    %v4261 = vld [vmem:[#allocation6 + $0x670] sm:$0xff]
    %v4262 = vld [vmem:[#allocation6 + $0x678] sm:$0xff]
    %v4263 = vld [vmem:[#allocation6 + $0x680] sm:$0xff]
    %v4264 = vld [vmem:[#allocation6 + $0x688] sm:$0xff]
    %v4265 = vld [vmem:[#allocation6 + $0x690] sm:$0xff]
    %v4266 = vld [vmem:[#allocation6 + $0x698] sm:$0xff]
    %v4267 = vld [vmem:[#allocation6 + $0x6a0] sm:$0xff]
    %v4268 = vld [vmem:[#allocation6 + $0x6a8] sm:$0xff]
    %v4269 = vld [vmem:[#allocation6 + $0x6b0] sm:$0xff]
    %v4270 = vld [vmem:[#allocation6 + $0x6b8] sm:$0xff]
    %v4271 = vld [vmem:[#allocation6 + $0x6c0] sm:$0xff]
    %v4272 = vld [vmem:[#allocation6 + $0x6c8] sm:$0xff]
    %v4273 = vld [vmem:[#allocation6 + $0x6d0] sm:$0xff]
    %v4274 = vld [vmem:[#allocation6 + $0x6d8] sm:$0xff]
    %v4275 = vld [vmem:[#allocation6 + $0x6e0] sm:$0xff]
    %v4276 = vld [vmem:[#allocation6 + $0x6e8] sm:$0xff]
    %v4277 = vld [vmem:[#allocation6 + $0x6f0] sm:$0xff]
    %v4278 = vld [vmem:[#allocation6 + $0x6f8] sm:$0xff]
    %v4279 = vld [vmem:[#allocation6 + $0x700] sm:$0xff]
    %v4280 = vld [vmem:[#allocation6 + $0x708] sm:$0xff]
    %v4281 = vld [vmem:[#allocation6 + $0x710] sm:$0xff]
    %v4282 = vld [vmem:[#allocation6 + $0x718] sm:$0xff]
    %v4283 = vld [vmem:[#allocation6 + $0x720] sm:$0xff]
    %v4284 = vld [vmem:[#allocation6 + $0x728] sm:$0xff]
    %v4285 = vld [vmem:[#allocation6 + $0x730] sm:$0xff]
    %v4286 = vld [vmem:[#allocation6 + $0x738] sm:$0xff]
    %v4287 = vld [vmem:[#allocation6 + $0x740] sm:$0xff]
    %v4288 = vld [vmem:[#allocation6 + $0x748] sm:$0xff]
    %v4289 = vld [vmem:[#allocation6 + $0x750] sm:$0xff]
    %v4290 = vld [vmem:[#allocation6 + $0x758] sm:$0xff]
    %v4291 = vld [vmem:[#allocation6 + $0x760] sm:$0xff]
    %v4292 = vld [vmem:[#allocation6 + $0x768] sm:$0xff]
    %v4293 = vld [vmem:[#allocation6 + $0x770] sm:$0xff]
    %v4294 = vld [vmem:[#allocation6 + $0x778] sm:$0xff]
    %v4295 = vld [vmem:[#allocation6 + $0x780] sm:$0xff]
    %v4296 = vld [vmem:[#allocation6 + $0x788] sm:$0xff]
    %v4297 = vld [vmem:[#allocation6 + $0x790] sm:$0xff]
    %v4298 = vld [vmem:[#allocation6 + $0x798] sm:$0xff]
    %v4299 = vld [vmem:[#allocation6 + $0x7a0] sm:$0xff]
    %v4300 = vld [vmem:[#allocation6 + $0x7a8] sm:$0xff]
    %v4301 = vld [vmem:[#allocation6 + $0x7b0] sm:$0xff]
    %v4302 = vld [vmem:[#allocation6 + $0x7b8] sm:$0xff]
    %v4303 = vld [vmem:[#allocation6 + $0x7c0] sm:$0xff]
    %v4304 = vld [vmem:[#allocation6 + $0x7c8] sm:$0xff]
    %v4305 = vld [vmem:[#allocation6 + $0x7d0] sm:$0xff]
    %v4306 = vld [vmem:[#allocation6 + $0x7d8] sm:$0xff]
    %v4307 = vld [vmem:[#allocation6 + $0x7e0] sm:$0xff]
    %v4308 = vld [vmem:[#allocation6 + $0x7e8] sm:$0xff]
    %v4309 = vld [vmem:[#allocation6 + $0x7f0] sm:$0xff]
    %v4310 = vld [vmem:[#allocation6 + $0x7f8] sm:$0xff]
    %v4311 = vld [vmem:[#allocation7] sm:$0xf]
    %v4313 = vlaneseq
    %v4314 = vshrl.u32 %v4313, 7
    %v4315 = vsub.s32 0, %v4314
    %v4316 = vrot.slane %v4311, %v4315
    %v4317 = vlaneseq
    %v4318 = vshrl.u32 %v4317, 7
    %v4319 = vsub.s32 1, %v4318
    %v4320 = vrot.slane %v4311, %v4319
    %v4321 = vlaneseq
    %v4322 = vshrl.u32 %v4321, 7
    %v4323 = vsub.s32 2, %v4322
    %v4324 = vrot.slane %v4311, %v4323
    %v4325 = vlaneseq
    %v4326 = vshrl.u32 %v4325, 7
    %v4327 = vsub.s32 3, %v4326
    %v4328 = vrot.slane %v4311, %v4327
    %v4589 = vunpack.c.l.b16 %v4055
    %v4590 = vunpack.c.h.b16 %v4055
    %v4591 = vunpack.c.l.b16 %v4056
    %v4592 = vunpack.c.h.b16 %v4056
    %v4593 = vunpack.c.l.b16 %v4057
    %v4594 = vunpack.c.h.b16 %v4057
    %v4595 = vunpack.c.l.b16 %v4058
    %v4596 = vunpack.c.h.b16 %v4058
    %v4597 = vunpack.c.l.b16 %v4059
    %v4598 = vunpack.c.h.b16 %v4059
    %v4599 = vunpack.c.l.b16 %v4060
    %v4600 = vunpack.c.h.b16 %v4060
    %v4601 = vunpack.c.l.b16 %v4061
    %v4602 = vunpack.c.h.b16 %v4061
    %v4603 = vunpack.c.l.b16 %v4062
    %v4604 = vunpack.c.h.b16 %v4062
    %v4605 = vunpack.c.l.b16 %v4063
    %v4606 = vunpack.c.h.b16 %v4063
    %v4607 = vunpack.c.l.b16 %v4064
    %v4608 = vunpack.c.h.b16 %v4064
    %v4609 = vunpack.c.l.b16 %v4065
    %v4610 = vunpack.c.h.b16 %v4065
    %v4611 = vunpack.c.l.b16 %v4066
    %v4612 = vunpack.c.h.b16 %v4066
    %v4613 = vunpack.c.l.b16 %v4067
    %v4614 = vunpack.c.h.b16 %v4067
    %v4615 = vunpack.c.l.b16 %v4068
    %v4616 = vunpack.c.h.b16 %v4068
    %v4617 = vunpack.c.l.b16 %v4069
    %v4618 = vunpack.c.h.b16 %v4069
    %v4619 = vunpack.c.l.b16 %v4070
    %v4620 = vunpack.c.h.b16 %v4070
    %v4621 = vunpack.c.l.b16 %v4071
    %v4622 = vunpack.c.h.b16 %v4071
    %v4623 = vunpack.c.l.b16 %v4072
    %v4624 = vunpack.c.h.b16 %v4072
    %v4625 = vunpack.c.l.b16 %v4073
    %v4626 = vunpack.c.h.b16 %v4073
    %v4627 = vunpack.c.l.b16 %v4074
    %v4628 = vunpack.c.h.b16 %v4074
    %v4629 = vunpack.c.l.b16 %v4075
    %v4630 = vunpack.c.h.b16 %v4075
    %v4631 = vunpack.c.l.b16 %v4076
    %v4632 = vunpack.c.h.b16 %v4076
    %v4633 = vunpack.c.l.b16 %v4077
    %v4634 = vunpack.c.h.b16 %v4077
    %v4635 = vunpack.c.l.b16 %v4078
    %v4636 = vunpack.c.h.b16 %v4078
    %v4637 = vunpack.c.l.b16 %v4079
    %v4638 = vunpack.c.h.b16 %v4079
    %v4639 = vunpack.c.l.b16 %v4080
    %v4640 = vunpack.c.h.b16 %v4080
    %v4641 = vunpack.c.l.b16 %v4081
    %v4642 = vunpack.c.h.b16 %v4081
    %v4643 = vunpack.c.l.b16 %v4082
    %v4644 = vunpack.c.h.b16 %v4082
    %v4645 = vunpack.c.l.b16 %v4083
    %v4646 = vunpack.c.h.b16 %v4083
    %v4647 = vunpack.c.l.b16 %v4084
    %v4648 = vunpack.c.h.b16 %v4084
    %v4649 = vunpack.c.l.b16 %v4085
    %v4650 = vunpack.c.h.b16 %v4085
    %v4651 = vunpack.c.l.b16 %v4086
    %v4652 = vunpack.c.h.b16 %v4086
    %v4653 = vunpack.c.l.b16 %v4087
    %v4654 = vunpack.c.h.b16 %v4087
    %v4655 = vunpack.c.l.b16 %v4088
    %v4656 = vunpack.c.h.b16 %v4088
    %v4657 = vunpack.c.l.b16 %v4089
    %v4658 = vunpack.c.h.b16 %v4089
    %v4659 = vunpack.c.l.b16 %v4090
    %v4660 = vunpack.c.h.b16 %v4090
    %v4661 = vunpack.c.l.b16 %v4091
    %v4662 = vunpack.c.h.b16 %v4091
    %v4663 = vunpack.c.l.b16 %v4092
    %v4664 = vunpack.c.h.b16 %v4092
    %v4665 = vunpack.c.l.b16 %v4093
    %v4666 = vunpack.c.h.b16 %v4093
    %v4667 = vunpack.c.l.b16 %v4094
    %v4668 = vunpack.c.h.b16 %v4094
    %v4669 = vunpack.c.l.b16 %v4095
    %v4670 = vunpack.c.h.b16 %v4095
    %v4671 = vunpack.c.l.b16 %v4096
    %v4672 = vunpack.c.h.b16 %v4096
    %v4673 = vunpack.c.l.b16 %v4097
    %v4674 = vunpack.c.h.b16 %v4097
    %v4675 = vunpack.c.l.b16 %v4098
    %v4676 = vunpack.c.h.b16 %v4098
    %v4677 = vunpack.c.l.b16 %v4099
    %v4678 = vunpack.c.h.b16 %v4099
    %v4679 = vunpack.c.l.b16 %v4100
    %v4680 = vunpack.c.h.b16 %v4100
    %v4681 = vunpack.c.l.b16 %v4101
    %v4682 = vunpack.c.h.b16 %v4101
    %v4683 = vunpack.c.l.b16 %v4102
    %v4684 = vunpack.c.h.b16 %v4102
    %v4685 = vunpack.c.l.b16 %v4103
    %v4686 = vunpack.c.h.b16 %v4103
    %v4687 = vunpack.c.l.b16 %v4104
    %v4688 = vunpack.c.h.b16 %v4104
    %v4689 = vunpack.c.l.b16 %v4105
    %v4690 = vunpack.c.h.b16 %v4105
    %v4691 = vunpack.c.l.b16 %v4106
    %v4692 = vunpack.c.h.b16 %v4106
    %v4693 = vunpack.c.l.b16 %v4107
    %v4694 = vunpack.c.h.b16 %v4107
    %v4695 = vunpack.c.l.b16 %v4108
    %v4696 = vunpack.c.h.b16 %v4108
    %v4697 = vunpack.c.l.b16 %v4109
    %v4698 = vunpack.c.h.b16 %v4109
    %v4699 = vunpack.c.l.b16 %v4110
    %v4700 = vunpack.c.h.b16 %v4110
    %v4701 = vunpack.c.l.b16 %v4111
    %v4702 = vunpack.c.h.b16 %v4111
    %v4703 = vunpack.c.l.b16 %v4112
    %v4704 = vunpack.c.h.b16 %v4112
    %v4705 = vunpack.c.l.b16 %v4113
    %v4706 = vunpack.c.h.b16 %v4113
    %v4707 = vunpack.c.l.b16 %v4114
    %v4708 = vunpack.c.h.b16 %v4114
    %v4709 = vunpack.c.l.b16 %v4115
    %v4710 = vunpack.c.h.b16 %v4115
    %v4711 = vunpack.c.l.b16 %v4116
    %v4712 = vunpack.c.h.b16 %v4116
    %v4713 = vunpack.c.l.b16 %v4117
    %v4714 = vunpack.c.h.b16 %v4117
    %v4715 = vunpack.c.l.b16 %v4118
    %v4716 = vunpack.c.h.b16 %v4118
    %v4717 = vunpack.c.l.b16 %v4119
    %v4718 = vunpack.c.h.b16 %v4119
    %v4719 = vunpack.c.l.b16 %v4120
    %v4720 = vunpack.c.h.b16 %v4120
    %v4721 = vunpack.c.l.b16 %v4121
    %v4722 = vunpack.c.h.b16 %v4121
    %v4723 = vunpack.c.l.b16 %v4122
    %v4724 = vunpack.c.h.b16 %v4122
    %v4725 = vunpack.c.l.b16 %v4123
    %v4726 = vunpack.c.h.b16 %v4123
    %v4727 = vunpack.c.l.b16 %v4124
    %v4728 = vunpack.c.h.b16 %v4124
    %v4729 = vunpack.c.l.b16 %v4125
    %v4730 = vunpack.c.h.b16 %v4125
    %v4731 = vunpack.c.l.b16 %v4126
    %v4732 = vunpack.c.h.b16 %v4126
    %v4733 = vunpack.c.l.b16 %v4127
    %v4734 = vunpack.c.h.b16 %v4127
    %v4735 = vunpack.c.l.b16 %v4128
    %v4736 = vunpack.c.h.b16 %v4128
    %v4737 = vunpack.c.l.b16 %v4129
    %v4738 = vunpack.c.h.b16 %v4129
    %v4739 = vunpack.c.l.b16 %v4130
    %v4740 = vunpack.c.h.b16 %v4130
    %v4741 = vunpack.c.l.b16 %v4131
    %v4742 = vunpack.c.h.b16 %v4131
    %v4743 = vunpack.c.l.b16 %v4132
    %v4744 = vunpack.c.h.b16 %v4132
    %v4745 = vunpack.c.l.b16 %v4133
    %v4746 = vunpack.c.h.b16 %v4133
    %v4747 = vunpack.c.l.b16 %v4134
    %v4748 = vunpack.c.h.b16 %v4134
    %v4749 = vunpack.c.l.b16 %v4135
    %v4750 = vunpack.c.h.b16 %v4135
    %v4751 = vunpack.c.l.b16 %v4136
    %v4752 = vunpack.c.h.b16 %v4136
    %v4753 = vunpack.c.l.b16 %v4137
    %v4754 = vunpack.c.h.b16 %v4137
    %v4755 = vunpack.c.l.b16 %v4138
    %v4756 = vunpack.c.h.b16 %v4138
    %v4757 = vunpack.c.l.b16 %v4139
    %v4758 = vunpack.c.h.b16 %v4139
    %v4759 = vunpack.c.l.b16 %v4140
    %v4760 = vunpack.c.h.b16 %v4140
    %v4761 = vunpack.c.l.b16 %v4141
    %v4762 = vunpack.c.h.b16 %v4141
    %v4763 = vunpack.c.l.b16 %v4142
    %v4764 = vunpack.c.h.b16 %v4142
    %v4765 = vunpack.c.l.b16 %v4143
    %v4766 = vunpack.c.h.b16 %v4143
    %v4767 = vunpack.c.l.b16 %v4144
    %v4768 = vunpack.c.h.b16 %v4144
    %v4769 = vunpack.c.l.b16 %v4145
    %v4770 = vunpack.c.h.b16 %v4145
    %v4771 = vunpack.c.l.b16 %v4146
    %v4772 = vunpack.c.h.b16 %v4146
    %v4773 = vunpack.c.l.b16 %v4147
    %v4774 = vunpack.c.h.b16 %v4147
    %v4775 = vunpack.c.l.b16 %v4148
    %v4776 = vunpack.c.h.b16 %v4148
    %v4777 = vunpack.c.l.b16 %v4149
    %v4778 = vunpack.c.h.b16 %v4149
    %v4779 = vunpack.c.l.b16 %v4150
    %v4780 = vunpack.c.h.b16 %v4150
    %v4781 = vunpack.c.l.b16 %v4151
    %v4782 = vunpack.c.h.b16 %v4151
    %v4783 = vunpack.c.l.b16 %v4152
    %v4784 = vunpack.c.h.b16 %v4152
    %v4785 = vunpack.c.l.b16 %v4153
    %v4786 = vunpack.c.h.b16 %v4153
    %v4787 = vunpack.c.l.b16 %v4154
    %v4788 = vunpack.c.h.b16 %v4154
    %v4789 = vunpack.c.l.b16 %v4155
    %v4790 = vunpack.c.h.b16 %v4155
    %v4791 = vunpack.c.l.b16 %v4156
    %v4792 = vunpack.c.h.b16 %v4156
    %v4793 = vunpack.c.l.b16 %v4157
    %v4794 = vunpack.c.h.b16 %v4157
    %v4795 = vunpack.c.l.b16 %v4158
    %v4796 = vunpack.c.h.b16 %v4158
    %v4797 = vunpack.c.l.b16 %v4159
    %v4798 = vunpack.c.h.b16 %v4159
    %v4799 = vunpack.c.l.b16 %v4160
    %v4800 = vunpack.c.h.b16 %v4160
    %v4801 = vunpack.c.l.b16 %v4161
    %v4802 = vunpack.c.h.b16 %v4161
    %v4803 = vunpack.c.l.b16 %v4162
    %v4804 = vunpack.c.h.b16 %v4162
    %v4805 = vunpack.c.l.b16 %v4163
    %v4806 = vunpack.c.h.b16 %v4163
    %v4807 = vunpack.c.l.b16 %v4164
    %v4808 = vunpack.c.h.b16 %v4164
    %v4809 = vunpack.c.l.b16 %v4165
    %v4810 = vunpack.c.h.b16 %v4165
    %v4811 = vunpack.c.l.b16 %v4166
    %v4812 = vunpack.c.h.b16 %v4166
    %v4813 = vunpack.c.l.b16 %v4167
    %v4814 = vunpack.c.h.b16 %v4167
    %v4815 = vunpack.c.l.b16 %v4168
    %v4816 = vunpack.c.h.b16 %v4168
    %v4817 = vunpack.c.l.b16 %v4169
    %v4818 = vunpack.c.h.b16 %v4169
    %v4819 = vunpack.c.l.b16 %v4170
    %v4820 = vunpack.c.h.b16 %v4170
    %v4821 = vunpack.c.l.b16 %v4171
    %v4822 = vunpack.c.h.b16 %v4171
    %v4823 = vunpack.c.l.b16 %v4172
    %v4824 = vunpack.c.h.b16 %v4172
    %v4825 = vunpack.c.l.b16 %v4173
    %v4826 = vunpack.c.h.b16 %v4173
    %v4827 = vunpack.c.l.b16 %v4174
    %v4828 = vunpack.c.h.b16 %v4174
    %v4829 = vunpack.c.l.b16 %v4175
    %v4830 = vunpack.c.h.b16 %v4175
    %v4831 = vunpack.c.l.b16 %v4176
    %v4832 = vunpack.c.h.b16 %v4176
    %v4833 = vunpack.c.l.b16 %v4177
    %v4834 = vunpack.c.h.b16 %v4177
    %v4835 = vunpack.c.l.b16 %v4178
    %v4836 = vunpack.c.h.b16 %v4178
    %v4837 = vunpack.c.l.b16 %v4179
    %v4838 = vunpack.c.h.b16 %v4179
    %v4839 = vunpack.c.l.b16 %v4180
    %v4840 = vunpack.c.h.b16 %v4180
    %v4841 = vunpack.c.l.b16 %v4181
    %v4842 = vunpack.c.h.b16 %v4181
    %v4843 = vunpack.c.l.b16 %v4182
    %v4844 = vunpack.c.h.b16 %v4182
    %v4845 = vunpack.c.l.b16 %v4183
    %v4846 = vunpack.c.h.b16 %v4183
    %v4847 = vunpack.c.l.b16 %v4184
    %v4848 = vunpack.c.h.b16 %v4184
    %v4849 = vunpack.c.l.b16 %v4185
    %v4850 = vunpack.c.h.b16 %v4185
    %v4851 = vunpack.c.l.b16 %v4186
    %v4852 = vunpack.c.h.b16 %v4186
    %v4853 = vunpack.c.l.b16 %v4187
    %v4854 = vunpack.c.h.b16 %v4187
    %v4855 = vunpack.c.l.b16 %v4188
    %v4856 = vunpack.c.h.b16 %v4188
    %v4857 = vunpack.c.l.b16 %v4189
    %v4858 = vunpack.c.h.b16 %v4189
    %v4859 = vunpack.c.l.b16 %v4190
    %v4860 = vunpack.c.h.b16 %v4190
    %v4861 = vunpack.c.l.b16 %v4191
    %v4862 = vunpack.c.h.b16 %v4191
    %v4863 = vunpack.c.l.b16 %v4192
    %v4864 = vunpack.c.h.b16 %v4192
    %v4865 = vunpack.c.l.b16 %v4193
    %v4866 = vunpack.c.h.b16 %v4193
    %v4867 = vunpack.c.l.b16 %v4194
    %v4868 = vunpack.c.h.b16 %v4194
    %v4869 = vunpack.c.l.b16 %v4195
    %v4870 = vunpack.c.h.b16 %v4195
    %v4871 = vunpack.c.l.b16 %v4196
    %v4872 = vunpack.c.h.b16 %v4196
    %v4873 = vunpack.c.l.b16 %v4197
    %v4874 = vunpack.c.h.b16 %v4197
    %v4875 = vunpack.c.l.b16 %v4198
    %v4876 = vunpack.c.h.b16 %v4198
    %v4877 = vunpack.c.l.b16 %v4199
    %v4878 = vunpack.c.h.b16 %v4199
    %v4879 = vunpack.c.l.b16 %v4200
    %v4880 = vunpack.c.h.b16 %v4200
    %v4881 = vunpack.c.l.b16 %v4201
    %v4882 = vunpack.c.h.b16 %v4201
    %v4883 = vunpack.c.l.b16 %v4202
    %v4884 = vunpack.c.h.b16 %v4202
    %v4885 = vunpack.c.l.b16 %v4203
    %v4886 = vunpack.c.h.b16 %v4203
    %v4887 = vunpack.c.l.b16 %v4204
    %v4888 = vunpack.c.h.b16 %v4204
    %v4889 = vunpack.c.l.b16 %v4205
    %v4890 = vunpack.c.h.b16 %v4205
    %v4891 = vunpack.c.l.b16 %v4206
    %v4892 = vunpack.c.h.b16 %v4206
    %v4893 = vunpack.c.l.b16 %v4207
    %v4894 = vunpack.c.h.b16 %v4207
    %v4895 = vunpack.c.l.b16 %v4208
    %v4896 = vunpack.c.h.b16 %v4208
    %v4897 = vunpack.c.l.b16 %v4209
    %v4898 = vunpack.c.h.b16 %v4209
    %v4899 = vunpack.c.l.b16 %v4210
    %v4900 = vunpack.c.h.b16 %v4210
    %v4901 = vunpack.c.l.b16 %v4211
    %v4902 = vunpack.c.h.b16 %v4211
    %v4903 = vunpack.c.l.b16 %v4212
    %v4904 = vunpack.c.h.b16 %v4212
    %v4905 = vunpack.c.l.b16 %v4213
    %v4906 = vunpack.c.h.b16 %v4213
    %v4907 = vunpack.c.l.b16 %v4214
    %v4908 = vunpack.c.h.b16 %v4214
    %v4909 = vunpack.c.l.b16 %v4215
    %v4910 = vunpack.c.h.b16 %v4215
    %v4911 = vunpack.c.l.b16 %v4216
    %v4912 = vunpack.c.h.b16 %v4216
    %v4913 = vunpack.c.l.b16 %v4217
    %v4914 = vunpack.c.h.b16 %v4217
    %v4915 = vunpack.c.l.b16 %v4218
    %v4916 = vunpack.c.h.b16 %v4218
    %v4917 = vunpack.c.l.b16 %v4219
    %v4918 = vunpack.c.h.b16 %v4219
    %v4919 = vunpack.c.l.b16 %v4220
    %v4920 = vunpack.c.h.b16 %v4220
    %v4921 = vunpack.c.l.b16 %v4221
    %v4922 = vunpack.c.h.b16 %v4221
    %v4923 = vunpack.c.l.b16 %v4222
    %v4924 = vunpack.c.h.b16 %v4222
    %v4925 = vunpack.c.l.b16 %v4223
    %v4926 = vunpack.c.h.b16 %v4223
    %v4927 = vunpack.c.l.b16 %v4224
    %v4928 = vunpack.c.h.b16 %v4224
    %v4929 = vunpack.c.l.b16 %v4225
    %v4930 = vunpack.c.h.b16 %v4225
    %v4931 = vunpack.c.l.b16 %v4226
    %v4932 = vunpack.c.h.b16 %v4226
    %v4933 = vunpack.c.l.b16 %v4227
    %v4934 = vunpack.c.h.b16 %v4227
    %v4935 = vunpack.c.l.b16 %v4228
    %v4936 = vunpack.c.h.b16 %v4228
    %v4937 = vunpack.c.l.b16 %v4229
    %v4938 = vunpack.c.h.b16 %v4229
    %v4939 = vunpack.c.l.b16 %v4230
    %v4940 = vunpack.c.h.b16 %v4230
    %v4941 = vunpack.c.l.b16 %v4231
    %v4942 = vunpack.c.h.b16 %v4231
    %v4943 = vunpack.c.l.b16 %v4232
    %v4944 = vunpack.c.h.b16 %v4232
    %v4945 = vunpack.c.l.b16 %v4233
    %v4946 = vunpack.c.h.b16 %v4233
    %v4947 = vunpack.c.l.b16 %v4234
    %v4948 = vunpack.c.h.b16 %v4234
    %v4949 = vunpack.c.l.b16 %v4235
    %v4950 = vunpack.c.h.b16 %v4235
    %v4951 = vunpack.c.l.b16 %v4236
    %v4952 = vunpack.c.h.b16 %v4236
    %v4953 = vunpack.c.l.b16 %v4237
    %v4954 = vunpack.c.h.b16 %v4237
    %v4955 = vunpack.c.l.b16 %v4238
    %v4956 = vunpack.c.h.b16 %v4238
    %v4957 = vunpack.c.l.b16 %v4239
    %v4958 = vunpack.c.h.b16 %v4239
    %v4959 = vunpack.c.l.b16 %v4240
    %v4960 = vunpack.c.h.b16 %v4240
    %v4961 = vunpack.c.l.b16 %v4241
    %v4962 = vunpack.c.h.b16 %v4241
    %v4963 = vunpack.c.l.b16 %v4242
    %v4964 = vunpack.c.h.b16 %v4242
    %v4965 = vunpack.c.l.b16 %v4243
    %v4966 = vunpack.c.h.b16 %v4243
    %v4967 = vunpack.c.l.b16 %v4244
    %v4968 = vunpack.c.h.b16 %v4244
    %v4969 = vunpack.c.l.b16 %v4245
    %v4970 = vunpack.c.h.b16 %v4245
    %v4971 = vunpack.c.l.b16 %v4246
    %v4972 = vunpack.c.h.b16 %v4246
    %v4973 = vunpack.c.l.b16 %v4247
    %v4974 = vunpack.c.h.b16 %v4247
    %v4975 = vunpack.c.l.b16 %v4248
    %v4976 = vunpack.c.h.b16 %v4248
    %v4977 = vunpack.c.l.b16 %v4249
    %v4978 = vunpack.c.h.b16 %v4249
    %v4979 = vunpack.c.l.b16 %v4250
    %v4980 = vunpack.c.h.b16 %v4250
    %v4981 = vunpack.c.l.b16 %v4251
    %v4982 = vunpack.c.h.b16 %v4251
    %v4983 = vunpack.c.l.b16 %v4252
    %v4984 = vunpack.c.h.b16 %v4252
    %v4985 = vunpack.c.l.b16 %v4253
    %v4986 = vunpack.c.h.b16 %v4253
    %v4987 = vunpack.c.l.b16 %v4254
    %v4988 = vunpack.c.h.b16 %v4254
    %v4989 = vunpack.c.l.b16 %v4255
    %v4990 = vunpack.c.h.b16 %v4255
    %v4991 = vunpack.c.l.b16 %v4256
    %v4992 = vunpack.c.h.b16 %v4256
    %v4993 = vunpack.c.l.b16 %v4257
    %v4994 = vunpack.c.h.b16 %v4257
    %v4995 = vunpack.c.l.b16 %v4258
    %v4996 = vunpack.c.h.b16 %v4258
    %v4997 = vunpack.c.l.b16 %v4259
    %v4998 = vunpack.c.h.b16 %v4259
    %v4999 = vunpack.c.l.b16 %v4260
    %v5000 = vunpack.c.h.b16 %v4260
    %v5001 = vunpack.c.l.b16 %v4261
    %v5002 = vunpack.c.h.b16 %v4261
    %v5003 = vunpack.c.l.b16 %v4262
    %v5004 = vunpack.c.h.b16 %v4262
    %v5005 = vunpack.c.l.b16 %v4263
    %v5006 = vunpack.c.h.b16 %v4263
    %v5007 = vunpack.c.l.b16 %v4264
    %v5008 = vunpack.c.h.b16 %v4264
    %v5009 = vunpack.c.l.b16 %v4265
    %v5010 = vunpack.c.h.b16 %v4265
    %v5011 = vunpack.c.l.b16 %v4266
    %v5012 = vunpack.c.h.b16 %v4266
    %v5013 = vunpack.c.l.b16 %v4267
    %v5014 = vunpack.c.h.b16 %v4267
    %v5015 = vunpack.c.l.b16 %v4268
    %v5016 = vunpack.c.h.b16 %v4268
    %v5017 = vunpack.c.l.b16 %v4269
    %v5018 = vunpack.c.h.b16 %v4269
    %v5019 = vunpack.c.l.b16 %v4270
    %v5020 = vunpack.c.h.b16 %v4270
    %v5021 = vunpack.c.l.b16 %v4271
    %v5022 = vunpack.c.h.b16 %v4271
    %v5023 = vunpack.c.l.b16 %v4272
    %v5024 = vunpack.c.h.b16 %v4272
    %v5025 = vunpack.c.l.b16 %v4273
    %v5026 = vunpack.c.h.b16 %v4273
    %v5027 = vunpack.c.l.b16 %v4274
    %v5028 = vunpack.c.h.b16 %v4274
    %v5029 = vunpack.c.l.b16 %v4275
    %v5030 = vunpack.c.h.b16 %v4275
    %v5031 = vunpack.c.l.b16 %v4276
    %v5032 = vunpack.c.h.b16 %v4276
    %v5033 = vunpack.c.l.b16 %v4277
    %v5034 = vunpack.c.h.b16 %v4277
    %v5035 = vunpack.c.l.b16 %v4278
    %v5036 = vunpack.c.h.b16 %v4278
    %v5037 = vunpack.c.l.b16 %v4279
    %v5038 = vunpack.c.h.b16 %v4279
    %v5039 = vunpack.c.l.b16 %v4280
    %v5040 = vunpack.c.h.b16 %v4280
    %v5041 = vunpack.c.l.b16 %v4281
    %v5042 = vunpack.c.h.b16 %v4281
    %v5043 = vunpack.c.l.b16 %v4282
    %v5044 = vunpack.c.h.b16 %v4282
    %v5045 = vunpack.c.l.b16 %v4283
    %v5046 = vunpack.c.h.b16 %v4283
    %v5047 = vunpack.c.l.b16 %v4284
    %v5048 = vunpack.c.h.b16 %v4284
    %v5049 = vunpack.c.l.b16 %v4285
    %v5050 = vunpack.c.h.b16 %v4285
    %v5051 = vunpack.c.l.b16 %v4286
    %v5052 = vunpack.c.h.b16 %v4286
    %v5053 = vunpack.c.l.b16 %v4287
    %v5054 = vunpack.c.h.b16 %v4287
    %v5055 = vunpack.c.l.b16 %v4288
    %v5056 = vunpack.c.h.b16 %v4288
    %v5057 = vunpack.c.l.b16 %v4289
    %v5058 = vunpack.c.h.b16 %v4289
    %v5059 = vunpack.c.l.b16 %v4290
    %v5060 = vunpack.c.h.b16 %v4290
    %v5061 = vunpack.c.l.b16 %v4291
    %v5062 = vunpack.c.h.b16 %v4291
    %v5063 = vunpack.c.l.b16 %v4292
    %v5064 = vunpack.c.h.b16 %v4292
    %v5065 = vunpack.c.l.b16 %v4293
    %v5066 = vunpack.c.h.b16 %v4293
    %v5067 = vunpack.c.l.b16 %v4294
    %v5068 = vunpack.c.h.b16 %v4294
    %v5069 = vunpack.c.l.b16 %v4295
    %v5070 = vunpack.c.h.b16 %v4295
    %v5071 = vunpack.c.l.b16 %v4296
    %v5072 = vunpack.c.h.b16 %v4296
    %v5073 = vunpack.c.l.b16 %v4297
    %v5074 = vunpack.c.h.b16 %v4297
    %v5075 = vunpack.c.l.b16 %v4298
    %v5076 = vunpack.c.h.b16 %v4298
    %v5077 = vunpack.c.l.b16 %v4299
    %v5078 = vunpack.c.h.b16 %v4299
    %v5079 = vunpack.c.l.b16 %v4300
    %v5080 = vunpack.c.h.b16 %v4300
    %v5081 = vunpack.c.l.b16 %v4301
    %v5082 = vunpack.c.h.b16 %v4301
    %v5083 = vunpack.c.l.b16 %v4302
    %v5084 = vunpack.c.h.b16 %v4302
    %v5085 = vunpack.c.l.b16 %v4303
    %v5086 = vunpack.c.h.b16 %v4303
    %v5087 = vunpack.c.l.b16 %v4304
    %v5088 = vunpack.c.h.b16 %v4304
    %v5089 = vunpack.c.l.b16 %v4305
    %v5090 = vunpack.c.h.b16 %v4305
    %v5091 = vunpack.c.l.b16 %v4306
    %v5092 = vunpack.c.h.b16 %v4306
    %v5093 = vunpack.c.l.b16 %v4307
    %v5094 = vunpack.c.h.b16 %v4307
    %v5095 = vunpack.c.l.b16 %v4308
    %v5096 = vunpack.c.h.b16 %v4308
    %v5097 = vunpack.c.l.b16 %v4309
    %v5098 = vunpack.c.h.b16 %v4309
    %v5099 = vunpack.c.l.b16 %v4310
    %v5100 = vunpack.c.h.b16 %v4310
    %v5101 = vpack.c.b16 %v4593, %v4589
    %v5102 = vpack.c.b16 %v4594, %v4590
    %v5103 = vpack.c.b16 %v4595, %v4591
    %v5104 = vpack.c.b16 %v4596, %v4592
    %v5105 = vpack.c.b16 %v4601, %v4597
    %v5106 = vpack.c.b16 %v4602, %v4598
    %v5107 = vpack.c.b16 %v4603, %v4599
    %v5108 = vpack.c.b16 %v4604, %v4600
    %v5109 = vpack.c.b16 %v4609, %v4605
    %v5110 = vpack.c.b16 %v4610, %v4606
    %v5111 = vpack.c.b16 %v4611, %v4607
    %v5112 = vpack.c.b16 %v4612, %v4608
    %v5113 = vpack.c.b16 %v4617, %v4613
    %v5114 = vpack.c.b16 %v4618, %v4614
    %v5115 = vpack.c.b16 %v4619, %v4615
    %v5116 = vpack.c.b16 %v4620, %v4616
    %v5117 = vpack.c.b16 %v4625, %v4621
    %v5118 = vpack.c.b16 %v4626, %v4622
    %v5119 = vpack.c.b16 %v4627, %v4623
    %v5120 = vpack.c.b16 %v4628, %v4624
    %v5121 = vpack.c.b16 %v4633, %v4629
    %v5122 = vpack.c.b16 %v4634, %v4630
    %v5123 = vpack.c.b16 %v4635, %v4631
    %v5124 = vpack.c.b16 %v4636, %v4632
    %v5125 = vpack.c.b16 %v4641, %v4637
    %v5126 = vpack.c.b16 %v4642, %v4638
    %v5127 = vpack.c.b16 %v4643, %v4639
    %v5128 = vpack.c.b16 %v4644, %v4640
    %v5129 = vpack.c.b16 %v4649, %v4645
    %v5130 = vpack.c.b16 %v4650, %v4646
    %v5131 = vpack.c.b16 %v4651, %v4647
    %v5132 = vpack.c.b16 %v4652, %v4648
    %v5133 = vpack.c.b16 %v4657, %v4653
    %v5134 = vpack.c.b16 %v4658, %v4654
    %v5135 = vpack.c.b16 %v4659, %v4655
    %v5136 = vpack.c.b16 %v4660, %v4656
    %v5137 = vpack.c.b16 %v4665, %v4661
    %v5138 = vpack.c.b16 %v4666, %v4662
    %v5139 = vpack.c.b16 %v4667, %v4663
    %v5140 = vpack.c.b16 %v4668, %v4664
    %v5141 = vpack.c.b16 %v4673, %v4669
    %v5142 = vpack.c.b16 %v4674, %v4670
    %v5143 = vpack.c.b16 %v4675, %v4671
    %v5144 = vpack.c.b16 %v4676, %v4672
    %v5145 = vpack.c.b16 %v4681, %v4677
    %v5146 = vpack.c.b16 %v4682, %v4678
    %v5147 = vpack.c.b16 %v4683, %v4679
    %v5148 = vpack.c.b16 %v4684, %v4680
    %v5149 = vpack.c.b16 %v4689, %v4685
    %v5150 = vpack.c.b16 %v4690, %v4686
    %v5151 = vpack.c.b16 %v4691, %v4687
    %v5152 = vpack.c.b16 %v4692, %v4688
    %v5153 = vpack.c.b16 %v4697, %v4693
    %v5154 = vpack.c.b16 %v4698, %v4694
    %v5155 = vpack.c.b16 %v4699, %v4695
    %v5156 = vpack.c.b16 %v4700, %v4696
    %v5157 = vpack.c.b16 %v4705, %v4701
    %v5158 = vpack.c.b16 %v4706, %v4702
    %v5159 = vpack.c.b16 %v4707, %v4703
    %v5160 = vpack.c.b16 %v4708, %v4704
    %v5161 = vpack.c.b16 %v4713, %v4709
    %v5162 = vpack.c.b16 %v4714, %v4710
    %v5163 = vpack.c.b16 %v4715, %v4711
    %v5164 = vpack.c.b16 %v4716, %v4712
    %v5165 = vpack.c.b16 %v4721, %v4717
    %v5166 = vpack.c.b16 %v4722, %v4718
    %v5167 = vpack.c.b16 %v4723, %v4719
    %v5168 = vpack.c.b16 %v4724, %v4720
    %v5169 = vpack.c.b16 %v4729, %v4725
    %v5170 = vpack.c.b16 %v4730, %v4726
    %v5171 = vpack.c.b16 %v4731, %v4727
    %v5172 = vpack.c.b16 %v4732, %v4728
    %v5173 = vpack.c.b16 %v4737, %v4733
    %v5174 = vpack.c.b16 %v4738, %v4734
    %v5175 = vpack.c.b16 %v4739, %v4735
    %v5176 = vpack.c.b16 %v4740, %v4736
    %v5177 = vpack.c.b16 %v4745, %v4741
    %v5178 = vpack.c.b16 %v4746, %v4742
    %v5179 = vpack.c.b16 %v4747, %v4743
    %v5180 = vpack.c.b16 %v4748, %v4744
    %v5181 = vpack.c.b16 %v4753, %v4749
    %v5182 = vpack.c.b16 %v4754, %v4750
    %v5183 = vpack.c.b16 %v4755, %v4751
    %v5184 = vpack.c.b16 %v4756, %v4752
    %v5185 = vpack.c.b16 %v4761, %v4757
    %v5186 = vpack.c.b16 %v4762, %v4758
    %v5187 = vpack.c.b16 %v4763, %v4759
    %v5188 = vpack.c.b16 %v4764, %v4760
    %v5189 = vpack.c.b16 %v4769, %v4765
    %v5190 = vpack.c.b16 %v4770, %v4766
    %v5191 = vpack.c.b16 %v4771, %v4767
    %v5192 = vpack.c.b16 %v4772, %v4768
    %v5193 = vpack.c.b16 %v4777, %v4773
    %v5194 = vpack.c.b16 %v4778, %v4774
    %v5195 = vpack.c.b16 %v4779, %v4775
    %v5196 = vpack.c.b16 %v4780, %v4776
    %v5197 = vpack.c.b16 %v4785, %v4781
    %v5198 = vpack.c.b16 %v4786, %v4782
    %v5199 = vpack.c.b16 %v4787, %v4783
    %v5200 = vpack.c.b16 %v4788, %v4784
    %v5201 = vpack.c.b16 %v4793, %v4789
    %v5202 = vpack.c.b16 %v4794, %v4790
    %v5203 = vpack.c.b16 %v4795, %v4791
    %v5204 = vpack.c.b16 %v4796, %v4792
    %v5205 = vpack.c.b16 %v4801, %v4797
    %v5206 = vpack.c.b16 %v4802, %v4798
    %v5207 = vpack.c.b16 %v4803, %v4799
    %v5208 = vpack.c.b16 %v4804, %v4800
    %v5209 = vpack.c.b16 %v4809, %v4805
    %v5210 = vpack.c.b16 %v4810, %v4806
    %v5211 = vpack.c.b16 %v4811, %v4807
    %v5212 = vpack.c.b16 %v4812, %v4808
    %v5213 = vpack.c.b16 %v4817, %v4813
    %v5214 = vpack.c.b16 %v4818, %v4814
    %v5215 = vpack.c.b16 %v4819, %v4815
    %v5216 = vpack.c.b16 %v4820, %v4816
    %v5217 = vpack.c.b16 %v4825, %v4821
    %v5218 = vpack.c.b16 %v4826, %v4822
    %v5219 = vpack.c.b16 %v4827, %v4823
    %v5220 = vpack.c.b16 %v4828, %v4824
    %v5221 = vpack.c.b16 %v4833, %v4829
    %v5222 = vpack.c.b16 %v4834, %v4830
    %v5223 = vpack.c.b16 %v4835, %v4831
    %v5224 = vpack.c.b16 %v4836, %v4832
    %v5225 = vpack.c.b16 %v4841, %v4837
    %v5226 = vpack.c.b16 %v4842, %v4838
    %v5227 = vpack.c.b16 %v4843, %v4839
    %v5228 = vpack.c.b16 %v4844, %v4840
    %v5229 = vpack.c.b16 %v4849, %v4845
    %v5230 = vpack.c.b16 %v4850, %v4846
    %v5231 = vpack.c.b16 %v4851, %v4847
    %v5232 = vpack.c.b16 %v4852, %v4848
    %v5233 = vpack.c.b16 %v4857, %v4853
    %v5234 = vpack.c.b16 %v4858, %v4854
    %v5235 = vpack.c.b16 %v4859, %v4855
    %v5236 = vpack.c.b16 %v4860, %v4856
    %v5237 = vpack.c.b16 %v4865, %v4861
    %v5238 = vpack.c.b16 %v4866, %v4862
    %v5239 = vpack.c.b16 %v4867, %v4863
    %v5240 = vpack.c.b16 %v4868, %v4864
    %v5241 = vpack.c.b16 %v4873, %v4869
    %v5242 = vpack.c.b16 %v4874, %v4870
    %v5243 = vpack.c.b16 %v4875, %v4871
    %v5244 = vpack.c.b16 %v4876, %v4872
    %v5245 = vpack.c.b16 %v4881, %v4877
    %v5246 = vpack.c.b16 %v4882, %v4878
    %v5247 = vpack.c.b16 %v4883, %v4879
    %v5248 = vpack.c.b16 %v4884, %v4880
    %v5249 = vpack.c.b16 %v4889, %v4885
    %v5250 = vpack.c.b16 %v4890, %v4886
    %v5251 = vpack.c.b16 %v4891, %v4887
    %v5252 = vpack.c.b16 %v4892, %v4888
    %v5253 = vpack.c.b16 %v4897, %v4893
    %v5254 = vpack.c.b16 %v4898, %v4894
    %v5255 = vpack.c.b16 %v4899, %v4895
    %v5256 = vpack.c.b16 %v4900, %v4896
    %v5257 = vpack.c.b16 %v4905, %v4901
    %v5258 = vpack.c.b16 %v4906, %v4902
    %v5259 = vpack.c.b16 %v4907, %v4903
    %v5260 = vpack.c.b16 %v4908, %v4904
    %v5261 = vpack.c.b16 %v4913, %v4909
    %v5262 = vpack.c.b16 %v4914, %v4910
    %v5263 = vpack.c.b16 %v4915, %v4911
    %v5264 = vpack.c.b16 %v4916, %v4912
    %v5265 = vpack.c.b16 %v4921, %v4917
    %v5266 = vpack.c.b16 %v4922, %v4918
    %v5267 = vpack.c.b16 %v4923, %v4919
    %v5268 = vpack.c.b16 %v4924, %v4920
    %v5269 = vpack.c.b16 %v4929, %v4925
    %v5270 = vpack.c.b16 %v4930, %v4926
    %v5271 = vpack.c.b16 %v4931, %v4927
    %v5272 = vpack.c.b16 %v4932, %v4928
    %v5273 = vpack.c.b16 %v4937, %v4933
    %v5274 = vpack.c.b16 %v4938, %v4934
    %v5275 = vpack.c.b16 %v4939, %v4935
    %v5276 = vpack.c.b16 %v4940, %v4936
    %v5277 = vpack.c.b16 %v4945, %v4941
    %v5278 = vpack.c.b16 %v4946, %v4942
    %v5279 = vpack.c.b16 %v4947, %v4943
    %v5280 = vpack.c.b16 %v4948, %v4944
    %v5281 = vpack.c.b16 %v4953, %v4949
    %v5282 = vpack.c.b16 %v4954, %v4950
    %v5283 = vpack.c.b16 %v4955, %v4951
    %v5284 = vpack.c.b16 %v4956, %v4952
    %v5285 = vpack.c.b16 %v4961, %v4957
    %v5286 = vpack.c.b16 %v4962, %v4958
    %v5287 = vpack.c.b16 %v4963, %v4959
    %v5288 = vpack.c.b16 %v4964, %v4960
    %v5289 = vpack.c.b16 %v4969, %v4965
    %v5290 = vpack.c.b16 %v4970, %v4966
    %v5291 = vpack.c.b16 %v4971, %v4967
    %v5292 = vpack.c.b16 %v4972, %v4968
    %v5293 = vpack.c.b16 %v4977, %v4973
    %v5294 = vpack.c.b16 %v4978, %v4974
    %v5295 = vpack.c.b16 %v4979, %v4975
    %v5296 = vpack.c.b16 %v4980, %v4976
    %v5297 = vpack.c.b16 %v4985, %v4981
    %v5298 = vpack.c.b16 %v4986, %v4982
    %v5299 = vpack.c.b16 %v4987, %v4983
    %v5300 = vpack.c.b16 %v4988, %v4984
    %v5301 = vpack.c.b16 %v4993, %v4989
    %v5302 = vpack.c.b16 %v4994, %v4990
    %v5303 = vpack.c.b16 %v4995, %v4991
    %v5304 = vpack.c.b16 %v4996, %v4992
    %v5305 = vpack.c.b16 %v5001, %v4997
    %v5306 = vpack.c.b16 %v5002, %v4998
    %v5307 = vpack.c.b16 %v5003, %v4999
    %v5308 = vpack.c.b16 %v5004, %v5000
    %v5309 = vpack.c.b16 %v5009, %v5005
    %v5310 = vpack.c.b16 %v5010, %v5006
    %v5311 = vpack.c.b16 %v5011, %v5007
    %v5312 = vpack.c.b16 %v5012, %v5008
    %v5313 = vpack.c.b16 %v5017, %v5013
    %v5314 = vpack.c.b16 %v5018, %v5014
    %v5315 = vpack.c.b16 %v5019, %v5015
    %v5316 = vpack.c.b16 %v5020, %v5016
    %v5317 = vpack.c.b16 %v5025, %v5021
    %v5318 = vpack.c.b16 %v5026, %v5022
    %v5319 = vpack.c.b16 %v5027, %v5023
    %v5320 = vpack.c.b16 %v5028, %v5024
    %v5321 = vpack.c.b16 %v5033, %v5029
    %v5322 = vpack.c.b16 %v5034, %v5030
    %v5323 = vpack.c.b16 %v5035, %v5031
    %v5324 = vpack.c.b16 %v5036, %v5032
    %v5325 = vpack.c.b16 %v5041, %v5037
    %v5326 = vpack.c.b16 %v5042, %v5038
    %v5327 = vpack.c.b16 %v5043, %v5039
    %v5328 = vpack.c.b16 %v5044, %v5040
    %v5329 = vpack.c.b16 %v5049, %v5045
    %v5330 = vpack.c.b16 %v5050, %v5046
    %v5331 = vpack.c.b16 %v5051, %v5047
    %v5332 = vpack.c.b16 %v5052, %v5048
    %v5333 = vpack.c.b16 %v5057, %v5053
    %v5334 = vpack.c.b16 %v5058, %v5054
    %v5335 = vpack.c.b16 %v5059, %v5055
    %v5336 = vpack.c.b16 %v5060, %v5056
    %v5337 = vpack.c.b16 %v5065, %v5061
    %v5338 = vpack.c.b16 %v5066, %v5062
    %v5339 = vpack.c.b16 %v5067, %v5063
    %v5340 = vpack.c.b16 %v5068, %v5064
    %v5341 = vpack.c.b16 %v5073, %v5069
    %v5342 = vpack.c.b16 %v5074, %v5070
    %v5343 = vpack.c.b16 %v5075, %v5071
    %v5344 = vpack.c.b16 %v5076, %v5072
    %v5345 = vpack.c.b16 %v5081, %v5077
    %v5346 = vpack.c.b16 %v5082, %v5078
    %v5347 = vpack.c.b16 %v5083, %v5079
    %v5348 = vpack.c.b16 %v5084, %v5080
    %v5349 = vpack.c.b16 %v5089, %v5085
    %v5350 = vpack.c.b16 %v5090, %v5086
    %v5351 = vpack.c.b16 %v5091, %v5087
    %v5352 = vpack.c.b16 %v5092, %v5088
    %v5353 = vpack.c.b16 %v5097, %v5093
    %v5354 = vpack.c.b16 %v5098, %v5094
    %v5355 = vpack.c.b16 %v5099, %v5095
    %v5356 = vpack.c.b16 %v5100, %v5096
    %5613 = vmatprep.subr.bf16.mxu0 %v5102
    %5614 = vmatpush1.bf16.msra.mxu0 %v5101
    %5615 = vmatprep.subr.bf16.mxu0 %v5106
    %5616 = vmatpush1.bf16.msra.mxu0 %v5105
    %5617 = vmatprep.subr.bf16.mxu0 %v5110
    %5618 = vmatpush1.bf16.msra.mxu0 %v5109
    %5619 = vmatprep.subr.bf16.mxu0 %v5114
    %5620 = vmatpush1.bf16.msra.mxu0 %v5113
    %5621 = vmatprep.subr.bf16.mxu0 %v5118
    %5622 = vmatpush1.bf16.msra.mxu0 %v5117
    %5623 = vmatprep.subr.bf16.mxu0 %v5122
    %5624 = vmatpush1.bf16.msra.mxu0 %v5121
    %5625 = vmatprep.subr.bf16.mxu0 %v5126
    %5626 = vmatpush1.bf16.msra.mxu0 %v5125
    %5627 = vmatprep.subr.bf16.mxu0 %v5130
    %5628 = vmatpush1.bf16.msra.mxu0 %v5129
    %5629 = vmatprep.subr.bf16.mxu0 %v5134
    %5630 = vmatpush1.bf16.msra.mxu0 %v5133
    %5631 = vmatprep.subr.bf16.mxu0 %v5138
    %5632 = vmatpush1.bf16.msra.mxu0 %v5137
    %5633 = vmatprep.subr.bf16.mxu0 %v5142
    %5634 = vmatpush1.bf16.msra.mxu0 %v5141
    %5635 = vmatprep.subr.bf16.mxu0 %v5146
    %5636 = vmatpush1.bf16.msra.mxu0 %v5145
    %5637 = vmatprep.subr.bf16.mxu0 %v5150
    %5638 = vmatpush1.bf16.msra.mxu0 %v5149
    %5639 = vmatprep.subr.bf16.mxu0 %v5154
    %5640 = vmatpush1.bf16.msra.mxu0 %v5153
    %5641 = vmatprep.subr.bf16.mxu0 %v5158
    %5642 = vmatpush1.bf16.msra.mxu0 %v5157
    %5643 = vmatprep.subr.bf16.mxu0 %v5162
    %5644 = vmatpush1.bf16.msra.mxu0 %v5161
    %5645 = vmatprep.mubr.bf16.mxu0 %v4048
    %5646 = vmatmul.mubr.bf16.gmra.mrb[0].mxu0 %v4047
    %v5647 = vpop.f32.mrb[0].mxu0
    %v5648 = vadd.f32 %v4316, %v5647
    %v5649 = vpop.f32.mrb[0].mxu0
    %v5650 = vadd.f32 %v4320, %v5649
    %v5651 = vpop.f32.mrb[0].mxu0
    %v5652 = vadd.f32 %v4316, %v5651
    %v5653 = vpop.f32.mrb[0].mxu0
    %v5654 = vadd.f32 %v4320, %v5653
    %5655 = vdwg.mxu0
    %5656 = vmatprep.subr.bf16.mxu0 %v5166
    %5657 = vmatpush1.bf16.msra.mxu0 %v5165
    %5658 = vmatprep.subr.bf16.mxu0 %v5170
    %5659 = vmatpush1.bf16.msra.mxu0 %v5169
    %5660 = vmatprep.subr.bf16.mxu0 %v5174
    %5661 = vmatpush1.bf16.msra.mxu0 %v5173
    %5662 = vmatprep.subr.bf16.mxu0 %v5178
    %5663 = vmatpush1.bf16.msra.mxu0 %v5177
    %5664 = vmatprep.subr.bf16.mxu0 %v5182
    %5665 = vmatpush1.bf16.msra.mxu0 %v5181
    %5666 = vmatprep.subr.bf16.mxu0 %v5186
    %5667 = vmatpush1.bf16.msra.mxu0 %v5185
    %5668 = vmatprep.subr.bf16.mxu0 %v5190
    %5669 = vmatpush1.bf16.msra.mxu0 %v5189
    %5670 = vmatprep.subr.bf16.mxu0 %v5194
    %5671 = vmatpush1.bf16.msra.mxu0 %v5193
    %5672 = vmatprep.subr.bf16.mxu0 %v5198
    %5673 = vmatpush1.bf16.msra.mxu0 %v5197
    %5674 = vmatprep.subr.bf16.mxu0 %v5202
    %5675 = vmatpush1.bf16.msra.mxu0 %v5201
    %5676 = vmatprep.subr.bf16.mxu0 %v5206
    %5677 = vmatpush1.bf16.msra.mxu0 %v5205
    %5678 = vmatprep.subr.bf16.mxu0 %v5210
    %5679 = vmatpush1.bf16.msra.mxu0 %v5209
    %5680 = vmatprep.subr.bf16.mxu0 %v5214
    %5681 = vmatpush1.bf16.msra.mxu0 %v5213
    %5682 = vmatprep.subr.bf16.mxu0 %v5218
    %5683 = vmatpush1.bf16.msra.mxu0 %v5217
    %5684 = vmatprep.subr.bf16.mxu0 %v5222
    %5685 = vmatpush1.bf16.msra.mxu0 %v5221
    %5686 = vmatprep.subr.bf16.mxu0 %v5226
    %5687 = vmatpush1.bf16.msra.mxu0 %v5225
    %5688 = vmatprep.mubr.bf16.mxu0 %v4050
    %5689 = vmatmul.mubr.bf16.gmra.mrb[0].mxu0 %v4049
    %v5690 = vpop.f32.mrb[0].mxu0
    %v5691 = vadd.f32 %v5648, %v5690
    %v5692 = vpop.f32.mrb[0].mxu0
    %v5693 = vadd.f32 %v5650, %v5692
    %v5694 = vpop.f32.mrb[0].mxu0
    %v5695 = vadd.f32 %v5652, %v5694
    %v5696 = vpop.f32.mrb[0].mxu0
    %v5697 = vadd.f32 %v5654, %v5696
    %5698 = vdwg.mxu0
    %5699 = vmatprep.subr.bf16.mxu0 %v5230
    %5700 = vmatpush1.bf16.msra.mxu0 %v5229
    %5701 = vmatprep.subr.bf16.mxu0 %v5234
    %5702 = vmatpush1.bf16.msra.mxu0 %v5233
    %5703 = vmatprep.subr.bf16.mxu0 %v5238
    %5704 = vmatpush1.bf16.msra.mxu0 %v5237
    %5705 = vmatprep.subr.bf16.mxu0 %v5242
    %5706 = vmatpush1.bf16.msra.mxu0 %v5241
    %5707 = vmatprep.subr.bf16.mxu0 %v5246
    %5708 = vmatpush1.bf16.msra.mxu0 %v5245
    %5709 = vmatprep.subr.bf16.mxu0 %v5250
    %5710 = vmatpush1.bf16.msra.mxu0 %v5249
    %5711 = vmatprep.subr.bf16.mxu0 %v5254
    %5712 = vmatpush1.bf16.msra.mxu0 %v5253
    %5713 = vmatprep.subr.bf16.mxu0 %v5258
    %5714 = vmatpush1.bf16.msra.mxu0 %v5257
    %5715 = vmatprep.subr.bf16.mxu0 %v5262
    %5716 = vmatpush1.bf16.msra.mxu0 %v5261
    %5717 = vmatprep.subr.bf16.mxu0 %v5266
    %5718 = vmatpush1.bf16.msra.mxu0 %v5265
    %5719 = vmatprep.subr.bf16.mxu0 %v5270
    %5720 = vmatpush1.bf16.msra.mxu0 %v5269
    %5721 = vmatprep.subr.bf16.mxu0 %v5274
    %5722 = vmatpush1.bf16.msra.mxu0 %v5273
    %5723 = vmatprep.subr.bf16.mxu0 %v5278
    %5724 = vmatpush1.bf16.msra.mxu0 %v5277
    %5725 = vmatprep.subr.bf16.mxu0 %v5282
    %5726 = vmatpush1.bf16.msra.mxu0 %v5281
    %5727 = vmatprep.subr.bf16.mxu0 %v5286
    %5728 = vmatpush1.bf16.msra.mxu0 %v5285
    %5729 = vmatprep.subr.bf16.mxu0 %v5290
    %5730 = vmatpush1.bf16.msra.mxu0 %v5289
    %5731 = vmatprep.mubr.bf16.mxu0 %v4052
    %5732 = vmatmul.mubr.bf16.gmra.mrb[0].mxu0 %v4051
    %v5733 = vpop.f32.mrb[0].mxu0
    %v5734 = vadd.f32 %v5691, %v5733
    %v5735 = vpop.f32.mrb[0].mxu0
    %v5736 = vadd.f32 %v5693, %v5735
    %v5737 = vpop.f32.mrb[0].mxu0
    %v5738 = vadd.f32 %v5695, %v5737
    %v5739 = vpop.f32.mrb[0].mxu0
    %v5740 = vadd.f32 %v5697, %v5739
    %5741 = vdwg.mxu0
    %5742 = vmatprep.subr.bf16.mxu0 %v5294
    %5743 = vmatpush1.bf16.msra.mxu0 %v5293
    %5744 = vmatprep.subr.bf16.mxu0 %v5298
    %5745 = vmatpush1.bf16.msra.mxu0 %v5297
    %5746 = vmatprep.subr.bf16.mxu0 %v5302
    %5747 = vmatpush1.bf16.msra.mxu0 %v5301
    %5748 = vmatprep.subr.bf16.mxu0 %v5306
    %5749 = vmatpush1.bf16.msra.mxu0 %v5305
    %5750 = vmatprep.subr.bf16.mxu0 %v5310
    %5751 = vmatpush1.bf16.msra.mxu0 %v5309
    %5752 = vmatprep.subr.bf16.mxu0 %v5314
    %5753 = vmatpush1.bf16.msra.mxu0 %v5313
    %5754 = vmatprep.subr.bf16.mxu0 %v5318
    %5755 = vmatpush1.bf16.msra.mxu0 %v5317
    %5756 = vmatprep.subr.bf16.mxu0 %v5322
    %5757 = vmatpush1.bf16.msra.mxu0 %v5321
    %5758 = vmatprep.subr.bf16.mxu0 %v5326
    %5759 = vmatpush1.bf16.msra.mxu0 %v5325
    %5760 = vmatprep.subr.bf16.mxu0 %v5330
    %5761 = vmatpush1.bf16.msra.mxu0 %v5329
    %5762 = vmatprep.subr.bf16.mxu0 %v5334
    %5763 = vmatpush1.bf16.msra.mxu0 %v5333
    %5764 = vmatprep.subr.bf16.mxu0 %v5338
    %5765 = vmatpush1.bf16.msra.mxu0 %v5337
    %5766 = vmatprep.subr.bf16.mxu0 %v5342
    %5767 = vmatpush1.bf16.msra.mxu0 %v5341
    %5768 = vmatprep.subr.bf16.mxu0 %v5346
    %5769 = vmatpush1.bf16.msra.mxu0 %v5345
    %5770 = vmatprep.subr.bf16.mxu0 %v5350
    %5771 = vmatpush1.bf16.msra.mxu0 %v5349
    %5772 = vmatprep.subr.bf16.mxu0 %v5354
    %5773 = vmatpush1.bf16.msra.mxu0 %v5353
    %5774 = vmatprep.mubr.bf16.mxu0 %v4054
    %5775 = vmatmul.mubr.bf16.gmra.mrb[0].mxu0 %v4053
    %v5776 = vpop.f32.mrb[0].mxu0
    %v5777 = vadd.f32 %v5734, %v5776
    %v5778 = vpop.f32.mrb[0].mxu0
    %v5779 = vadd.f32 %v5736, %v5778
    %v5780 = vpop.f32.mrb[0].mxu0
    %v5781 = vadd.f32 %v5738, %v5780
    %v5782 = vpop.f32.mrb[0].mxu0
    %v5783 = vadd.f32 %v5740, %v5782
    %5784 = vdwg.mxu0
    %5785 = vmatprep.subr.bf16.mxu0 %v5104
    %5786 = vmatpush1.bf16.msra.mxu0 %v5103
    %5787 = vmatprep.subr.bf16.mxu0 %v5108
    %5788 = vmatpush1.bf16.msra.mxu0 %v5107
    %5789 = vmatprep.subr.bf16.mxu0 %v5112
    %5790 = vmatpush1.bf16.msra.mxu0 %v5111
    %5791 = vmatprep.subr.bf16.mxu0 %v5116
    %5792 = vmatpush1.bf16.msra.mxu0 %v5115
    %5793 = vmatprep.subr.bf16.mxu0 %v5120
    %5794 = vmatpush1.bf16.msra.mxu0 %v5119
    %5795 = vmatprep.subr.bf16.mxu0 %v5124
    %5796 = vmatpush1.bf16.msra.mxu0 %v5123
    %5797 = vmatprep.subr.bf16.mxu0 %v5128
    %5798 = vmatpush1.bf16.msra.mxu0 %v5127
    %5799 = vmatprep.subr.bf16.mxu0 %v5132
    %5800 = vmatpush1.bf16.msra.mxu0 %v5131
    %5801 = vmatprep.subr.bf16.mxu0 %v5136
    %5802 = vmatpush1.bf16.msra.mxu0 %v5135
    %5803 = vmatprep.subr.bf16.mxu0 %v5140
    %5804 = vmatpush1.bf16.msra.mxu0 %v5139
    %5805 = vmatprep.subr.bf16.mxu0 %v5144
    %5806 = vmatpush1.bf16.msra.mxu0 %v5143
    %5807 = vmatprep.subr.bf16.mxu0 %v5148
    %5808 = vmatpush1.bf16.msra.mxu0 %v5147
    %5809 = vmatprep.subr.bf16.mxu0 %v5152
    %5810 = vmatpush1.bf16.msra.mxu0 %v5151
    %5811 = vmatprep.subr.bf16.mxu0 %v5156
    %5812 = vmatpush1.bf16.msra.mxu0 %v5155
    %5813 = vmatprep.subr.bf16.mxu0 %v5160
    %5814 = vmatpush1.bf16.msra.mxu0 %v5159
    %5815 = vmatprep.subr.bf16.mxu0 %v5164
    %5816 = vmatpush1.bf16.msra.mxu0 %v5163
    %5817 = vmatprep.mubr.bf16.mxu0 %v4048
    %5818 = vmatmul.mubr.bf16.gmra.mrb[0].mxu0 %v4047
    %v5819 = vpop.f32.mrb[0].mxu0
    %v5820 = vadd.f32 %v4324, %v5819
    %v5821 = vpop.f32.mrb[0].mxu0
    %v5822 = vadd.f32 %v4328, %v5821
    %v5823 = vpop.f32.mrb[0].mxu0
    %v5824 = vadd.f32 %v4324, %v5823
    %v5825 = vpop.f32.mrb[0].mxu0
    %v5826 = vadd.f32 %v4328, %v5825
    %5827 = vdwg.mxu0
    %5828 = vmatprep.subr.bf16.mxu0 %v5168
    %5829 = vmatpush1.bf16.msra.mxu0 %v5167
    %5830 = vmatprep.subr.bf16.mxu0 %v5172
    %5831 = vmatpush1.bf16.msra.mxu0 %v5171
    %5832 = vmatprep.subr.bf16.mxu0 %v5176
    %5833 = vmatpush1.bf16.msra.mxu0 %v5175
    %5834 = vmatprep.subr.bf16.mxu0 %v5180
    %5835 = vmatpush1.bf16.msra.mxu0 %v5179
    %5836 = vmatprep.subr.bf16.mxu0 %v5184
    %5837 = vmatpush1.bf16.msra.mxu0 %v5183
    %5838 = vmatprep.subr.bf16.mxu0 %v5188
    %5839 = vmatpush1.bf16.msra.mxu0 %v5187
    %5840 = vmatprep.subr.bf16.mxu0 %v5192
    %5841 = vmatpush1.bf16.msra.mxu0 %v5191
    %5842 = vmatprep.subr.bf16.mxu0 %v5196
    %5843 = vmatpush1.bf16.msra.mxu0 %v5195
    %5844 = vmatprep.subr.bf16.mxu0 %v5200
    %5845 = vmatpush1.bf16.msra.mxu0 %v5199
    %5846 = vmatprep.subr.bf16.mxu0 %v5204
    %5847 = vmatpush1.bf16.msra.mxu0 %v5203
    %5848 = vmatprep.subr.bf16.mxu0 %v5208
    %5849 = vmatpush1.bf16.msra.mxu0 %v5207
    %5850 = vmatprep.subr.bf16.mxu0 %v5212
    %5851 = vmatpush1.bf16.msra.mxu0 %v5211
    %5852 = vmatprep.subr.bf16.mxu0 %v5216
    %5853 = vmatpush1.bf16.msra.mxu0 %v5215
    %5854 = vmatprep.subr.bf16.mxu0 %v5220
    %5855 = vmatpush1.bf16.msra.mxu0 %v5219
    %5856 = vmatprep.subr.bf16.mxu0 %v5224
    %5857 = vmatpush1.bf16.msra.mxu0 %v5223
    %5858 = vmatprep.subr.bf16.mxu0 %v5228
    %5859 = vmatpush1.bf16.msra.mxu0 %v5227
    %5860 = vmatprep.mubr.bf16.mxu0 %v4050
    %5861 = vmatmul.mubr.bf16.gmra.mrb[0].mxu0 %v4049
    %v5862 = vpop.f32.mrb[0].mxu0
    %v5863 = vadd.f32 %v5820, %v5862
    %v5864 = vpop.f32.mrb[0].mxu0
    %v5865 = vadd.f32 %v5822, %v5864
    %v5866 = vpop.f32.mrb[0].mxu0
    %v5867 = vadd.f32 %v5824, %v5866
    %v5868 = vpop.f32.mrb[0].mxu0
    %v5869 = vadd.f32 %v5826, %v5868
    %5870 = vdwg.mxu0
    %5871 = vmatprep.subr.bf16.mxu0 %v5232
    %5872 = vmatpush1.bf16.msra.mxu0 %v5231
    %5873 = vmatprep.subr.bf16.mxu0 %v5236
    %5874 = vmatpush1.bf16.msra.mxu0 %v5235
    %5875 = vmatprep.subr.bf16.mxu0 %v5240
    %5876 = vmatpush1.bf16.msra.mxu0 %v5239
    %5877 = vmatprep.subr.bf16.mxu0 %v5244
    %5878 = vmatpush1.bf16.msra.mxu0 %v5243
    %5879 = vmatprep.subr.bf16.mxu0 %v5248
    %5880 = vmatpush1.bf16.msra.mxu0 %v5247
    %5881 = vmatprep.subr.bf16.mxu0 %v5252
    %5882 = vmatpush1.bf16.msra.mxu0 %v5251
    %5883 = vmatprep.subr.bf16.mxu0 %v5256
    %5884 = vmatpush1.bf16.msra.mxu0 %v5255
    %5885 = vmatprep.subr.bf16.mxu0 %v5260
    %5886 = vmatpush1.bf16.msra.mxu0 %v5259
    %5887 = vmatprep.subr.bf16.mxu0 %v5264
    %5888 = vmatpush1.bf16.msra.mxu0 %v5263
    %5889 = vmatprep.subr.bf16.mxu0 %v5268
    %5890 = vmatpush1.bf16.msra.mxu0 %v5267
    %5891 = vmatprep.subr.bf16.mxu0 %v5272
    %5892 = vmatpush1.bf16.msra.mxu0 %v5271
    %5893 = vmatprep.subr.bf16.mxu0 %v5276
    %5894 = vmatpush1.bf16.msra.mxu0 %v5275
    %5895 = vmatprep.subr.bf16.mxu0 %v5280
    %5896 = vmatpush1.bf16.msra.mxu0 %v5279
    %5897 = vmatprep.subr.bf16.mxu0 %v5284
    %5898 = vmatpush1.bf16.msra.mxu0 %v5283
    %5899 = vmatprep.subr.bf16.mxu0 %v5288
    %5900 = vmatpush1.bf16.msra.mxu0 %v5287
    %5901 = vmatprep.subr.bf16.mxu0 %v5292
    %5902 = vmatpush1.bf16.msra.mxu0 %v5291
    %5903 = vmatprep.mubr.bf16.mxu0 %v4052
    %5904 = vmatmul.mubr.bf16.gmra.mrb[0].mxu0 %v4051
    %v5905 = vpop.f32.mrb[0].mxu0
    %v5906 = vadd.f32 %v5863, %v5905
    %v5907 = vpop.f32.mrb[0].mxu0
    %v5908 = vadd.f32 %v5865, %v5907
    %v5909 = vpop.f32.mrb[0].mxu0
    %v5910 = vadd.f32 %v5867, %v5909
    %v5911 = vpop.f32.mrb[0].mxu0
    %v5912 = vadd.f32 %v5869, %v5911
    %5913 = vdwg.mxu0
    %5914 = vmatprep.subr.bf16.mxu0 %v5296
    %5915 = vmatpush1.bf16.msra.mxu0 %v5295
    %5916 = vmatprep.subr.bf16.mxu0 %v5300
    %5917 = vmatpush1.bf16.msra.mxu0 %v5299
    %5918 = vmatprep.subr.bf16.mxu0 %v5304
    %5919 = vmatpush1.bf16.msra.mxu0 %v5303
    %5920 = vmatprep.subr.bf16.mxu0 %v5308
    %5921 = vmatpush1.bf16.msra.mxu0 %v5307
    %5922 = vmatprep.subr.bf16.mxu0 %v5312
    %5923 = vmatpush1.bf16.msra.mxu0 %v5311
    %5924 = vmatprep.subr.bf16.mxu0 %v5316
    %5925 = vmatpush1.bf16.msra.mxu0 %v5315
    %5926 = vmatprep.subr.bf16.mxu0 %v5320
    %5927 = vmatpush1.bf16.msra.mxu0 %v5319
    %5928 = vmatprep.subr.bf16.mxu0 %v5324
    %5929 = vmatpush1.bf16.msra.mxu0 %v5323
    %5930 = vmatprep.subr.bf16.mxu0 %v5328
    %5931 = vmatpush1.bf16.msra.mxu0 %v5327
    %5932 = vmatprep.subr.bf16.mxu0 %v5332
    %5933 = vmatpush1.bf16.msra.mxu0 %v5331
    %5934 = vmatprep.subr.bf16.mxu0 %v5336
    %5935 = vmatpush1.bf16.msra.mxu0 %v5335
    %5936 = vmatprep.subr.bf16.mxu0 %v5340
    %5937 = vmatpush1.bf16.msra.mxu0 %v5339
    %5938 = vmatprep.subr.bf16.mxu0 %v5344
    %5939 = vmatpush1.bf16.msra.mxu0 %v5343
    %5940 = vmatprep.subr.bf16.mxu0 %v5348
    %5941 = vmatpush1.bf16.msra.mxu0 %v5347
    %5942 = vmatprep.subr.bf16.mxu0 %v5352
    %5943 = vmatpush1.bf16.msra.mxu0 %v5351
    %5944 = vmatprep.subr.bf16.mxu0 %v5356
    %5945 = vmatpush1.bf16.msra.mxu0 %v5355
    %5946 = vmatprep.mubr.bf16.mxu0 %v4054
    %5947 = vmatmul.mubr.bf16.gmra.mrb[0].mxu0 %v4053
    %v5948 = vpop.f32.mrb[0].mxu0
    %v5949 = vadd.f32 %v5906, %v5948
    %v5950 = vpop.f32.mrb[0].mxu0
    %v5951 = vadd.f32 %v5908, %v5950
    %v5952 = vpop.f32.mrb[0].mxu0
    %v5953 = vadd.f32 %v5910, %v5952
    %v5954 = vpop.f32.mrb[0].mxu0
    %v5955 = vadd.f32 %v5912, %v5954
    %5956 = vdwg.mxu0
    %v5957 = vmul.f32 %v5777, 0.2
    %v5958 = vmul.f32 %v5779, 0.2
    %v5959 = vmul.f32 %v5949, 0.2
    %v5960 = vmul.f32 %v5951, 0.2
    %v5961 = vmul.f32 %v5781, 0.2
    %v5962 = vmul.f32 %v5783, 0.2
    %v5963 = vmul.f32 %v5953, 0.2
    %v5964 = vmul.f32 %v5955, 0.2
    %v5965 = vmax.f32 %v5777, %v5957
    %v5966 = vmax.f32 %v5779, %v5958
    %v5967 = vmax.f32 %v5949, %v5959
    %v5968 = vmax.f32 %v5951, %v5960
    %v5969 = vmax.f32 %v5781, %v5961
    %v5970 = vmax.f32 %v5783, %v5962
    %v5971 = vmax.f32 %v5953, %v5963
    %v5972 = vmax.f32 %v5955, %v5964
    %v5973 = vpack.c.bf16 %v5969, %v5965
    %v5974 = vpack.c.bf16 %v5970, %v5966
    %v5975 = vpack.c.bf16 %v5971, %v5967
    %v5976 = vpack.c.bf16 %v5972, %v5968
    %v5977 = vld [vmem:[#allocation9] sm:$0xff]
    %v5978 = vld [vmem:[#allocation9 + $0x8] sm:$0xff]
    %v5979 = vld [vmem:[#allocation9 + $0x10] sm:$0xff]
    %v5980 = vld [vmem:[#allocation9 + $0x18] sm:$0xff]
    %v5981 = vld [vmem:[#allocation9 + $0x20] sm:$0xff]
    %v5982 = vld [vmem:[#allocation9 + $0x28] sm:$0xff]
    %v5983 = vld [vmem:[#allocation9 + $0x30] sm:$0xff]
    %v5984 = vld [vmem:[#allocation9 + $0x38] sm:$0xff]
    %v5985 = vld [vmem:[#allocation9 + $0x40] sm:$0xff]
    %v5986 = vld [vmem:[#allocation9 + $0x48] sm:$0xff]
    %v5987 = vld [vmem:[#allocation9 + $0x50] sm:$0xff]
    %v5988 = vld [vmem:[#allocation9 + $0x58] sm:$0xff]
    %v5989 = vld [vmem:[#allocation9 + $0x60] sm:$0xff]
    %v5990 = vld [vmem:[#allocation9 + $0x68] sm:$0xff]
    %v5991 = vld [vmem:[#allocation9 + $0x70] sm:$0xff]
    %v5992 = vld [vmem:[#allocation9 + $0x78] sm:$0xff]
    %v5993 = vld [vmem:[#allocation9 + $0x80] sm:$0xff]
    %v5994 = vld [vmem:[#allocation9 + $0x88] sm:$0xff]
    %v5995 = vld [vmem:[#allocation9 + $0x90] sm:$0xff]
    %v5996 = vld [vmem:[#allocation9 + $0x98] sm:$0xff]
    %v5997 = vld [vmem:[#allocation9 + $0xa0] sm:$0xff]
    %v5998 = vld [vmem:[#allocation9 + $0xa8] sm:$0xff]
    %v5999 = vld [vmem:[#allocation9 + $0xb0] sm:$0xff]
    %v6000 = vld [vmem:[#allocation9 + $0xb8] sm:$0xff]
    %v6001 = vld [vmem:[#allocation9 + $0xc0] sm:$0xff]
    %v6002 = vld [vmem:[#allocation9 + $0xc8] sm:$0xff]
    %v6003 = vld [vmem:[#allocation9 + $0xd0] sm:$0xff]
    %v6004 = vld [vmem:[#allocation9 + $0xd8] sm:$0xff]
    %v6005 = vld [vmem:[#allocation9 + $0xe0] sm:$0xff]
    %v6006 = vld [vmem:[#allocation9 + $0xe8] sm:$0xff]
    %v6007 = vld [vmem:[#allocation9 + $0xf0] sm:$0xff]
    %v6008 = vld [vmem:[#allocation9 + $0xf8] sm:$0xff]
    %v6009 = vld [vmem:[#allocation9 + $0x100] sm:$0xff]
    %v6010 = vld [vmem:[#allocation9 + $0x108] sm:$0xff]
    %v6011 = vld [vmem:[#allocation9 + $0x110] sm:$0xff]
    %v6012 = vld [vmem:[#allocation9 + $0x118] sm:$0xff]
    %v6013 = vld [vmem:[#allocation9 + $0x120] sm:$0xff]
    %v6014 = vld [vmem:[#allocation9 + $0x128] sm:$0xff]
    %v6015 = vld [vmem:[#allocation9 + $0x130] sm:$0xff]
    %v6016 = vld [vmem:[#allocation9 + $0x138] sm:$0xff]
    %v6017 = vld [vmem:[#allocation9 + $0x140] sm:$0xff]
    %v6018 = vld [vmem:[#allocation9 + $0x148] sm:$0xff]
    %v6019 = vld [vmem:[#allocation9 + $0x150] sm:$0xff]
    %v6020 = vld [vmem:[#allocation9 + $0x158] sm:$0xff]
    %v6021 = vld [vmem:[#allocation9 + $0x160] sm:$0xff]
    %v6022 = vld [vmem:[#allocation9 + $0x168] sm:$0xff]
    %v6023 = vld [vmem:[#allocation9 + $0x170] sm:$0xff]
    %v6024 = vld [vmem:[#allocation9 + $0x178] sm:$0xff]
    %v6025 = vld [vmem:[#allocation9 + $0x180] sm:$0xff]
    %v6026 = vld [vmem:[#allocation9 + $0x188] sm:$0xff]
    %v6027 = vld [vmem:[#allocation9 + $0x190] sm:$0xff]
    %v6028 = vld [vmem:[#allocation9 + $0x198] sm:$0xff]
    %v6029 = vld [vmem:[#allocation9 + $0x1a0] sm:$0xff]
    %v6030 = vld [vmem:[#allocation9 + $0x1a8] sm:$0xff]
    %v6031 = vld [vmem:[#allocation9 + $0x1b0] sm:$0xff]
    %v6032 = vld [vmem:[#allocation9 + $0x1b8] sm:$0xff]
    %v6033 = vld [vmem:[#allocation9 + $0x1c0] sm:$0xff]
    %v6034 = vld [vmem:[#allocation9 + $0x1c8] sm:$0xff]
    %v6035 = vld [vmem:[#allocation9 + $0x1d0] sm:$0xff]
    %v6036 = vld [vmem:[#allocation9 + $0x1d8] sm:$0xff]
    %v6037 = vld [vmem:[#allocation9 + $0x1e0] sm:$0xff]
    %v6038 = vld [vmem:[#allocation9 + $0x1e8] sm:$0xff]
    %v6039 = vld [vmem:[#allocation9 + $0x1f0] sm:$0xff]
    %v6040 = vld [vmem:[#allocation9 + $0x1f8] sm:$0xff]
    %v6041 = vld [vmem:[#allocation10] sm:$0x3]
    %v6043 = vlaneseq
    %v6044 = vshrl.u32 %v6043, 7
    %v6045 = vsub.s32 0, %v6044
    %v6046 = vrot.slane %v6041, %v6045
    %v6047 = vlaneseq
    %v6048 = vshrl.u32 %v6047, 7
    %v6049 = vsub.s32 1, %v6048
    %v6050 = vrot.slane %v6041, %v6049
    %v6117 = vunpack.c.l.b16 %v5977
    %v6118 = vunpack.c.h.b16 %v5977
    %v6119 = vunpack.c.l.b16 %v5978
    %v6120 = vunpack.c.h.b16 %v5978
    %v6121 = vunpack.c.l.b16 %v5979
    %v6122 = vunpack.c.h.b16 %v5979
    %v6123 = vunpack.c.l.b16 %v5980
    %v6124 = vunpack.c.h.b16 %v5980
    %v6125 = vunpack.c.l.b16 %v5981
    %v6126 = vunpack.c.h.b16 %v5981
    %v6127 = vunpack.c.l.b16 %v5982
    %v6128 = vunpack.c.h.b16 %v5982
    %v6129 = vunpack.c.l.b16 %v5983
    %v6130 = vunpack.c.h.b16 %v5983
    %v6131 = vunpack.c.l.b16 %v5984
    %v6132 = vunpack.c.h.b16 %v5984
    %v6133 = vunpack.c.l.b16 %v5985
    %v6134 = vunpack.c.h.b16 %v5985
    %v6135 = vunpack.c.l.b16 %v5986
    %v6136 = vunpack.c.h.b16 %v5986
    %v6137 = vunpack.c.l.b16 %v5987
    %v6138 = vunpack.c.h.b16 %v5987
    %v6139 = vunpack.c.l.b16 %v5988
    %v6140 = vunpack.c.h.b16 %v5988
    %v6141 = vunpack.c.l.b16 %v5989
    %v6142 = vunpack.c.h.b16 %v5989
    %v6143 = vunpack.c.l.b16 %v5990
    %v6144 = vunpack.c.h.b16 %v5990
    %v6145 = vunpack.c.l.b16 %v5991
    %v6146 = vunpack.c.h.b16 %v5991
    %v6147 = vunpack.c.l.b16 %v5992
    %v6148 = vunpack.c.h.b16 %v5992
    %v6149 = vunpack.c.l.b16 %v5993
    %v6150 = vunpack.c.h.b16 %v5993
    %v6151 = vunpack.c.l.b16 %v5994
    %v6152 = vunpack.c.h.b16 %v5994
    %v6153 = vunpack.c.l.b16 %v5995
    %v6154 = vunpack.c.h.b16 %v5995
    %v6155 = vunpack.c.l.b16 %v5996
    %v6156 = vunpack.c.h.b16 %v5996
    %v6157 = vunpack.c.l.b16 %v5997
    %v6158 = vunpack.c.h.b16 %v5997
    %v6159 = vunpack.c.l.b16 %v5998
    %v6160 = vunpack.c.h.b16 %v5998
    %v6161 = vunpack.c.l.b16 %v5999
    %v6162 = vunpack.c.h.b16 %v5999
    %v6163 = vunpack.c.l.b16 %v6000
    %v6164 = vunpack.c.h.b16 %v6000
    %v6165 = vunpack.c.l.b16 %v6001
    %v6166 = vunpack.c.h.b16 %v6001
    %v6167 = vunpack.c.l.b16 %v6002
    %v6168 = vunpack.c.h.b16 %v6002
    %v6169 = vunpack.c.l.b16 %v6003
    %v6170 = vunpack.c.h.b16 %v6003
    %v6171 = vunpack.c.l.b16 %v6004
    %v6172 = vunpack.c.h.b16 %v6004
    %v6173 = vunpack.c.l.b16 %v6005
    %v6174 = vunpack.c.h.b16 %v6005
    %v6175 = vunpack.c.l.b16 %v6006
    %v6176 = vunpack.c.h.b16 %v6006
    %v6177 = vunpack.c.l.b16 %v6007
    %v6178 = vunpack.c.h.b16 %v6007
    %v6179 = vunpack.c.l.b16 %v6008
    %v6180 = vunpack.c.h.b16 %v6008
    %v6181 = vunpack.c.l.b16 %v6009
    %v6182 = vunpack.c.h.b16 %v6009
    %v6183 = vunpack.c.l.b16 %v6010
    %v6184 = vunpack.c.h.b16 %v6010
    %v6185 = vunpack.c.l.b16 %v6011
    %v6186 = vunpack.c.h.b16 %v6011
    %v6187 = vunpack.c.l.b16 %v6012
    %v6188 = vunpack.c.h.b16 %v6012
    %v6189 = vunpack.c.l.b16 %v6013
    %v6190 = vunpack.c.h.b16 %v6013
    %v6191 = vunpack.c.l.b16 %v6014
    %v6192 = vunpack.c.h.b16 %v6014
    %v6193 = vunpack.c.l.b16 %v6015
    %v6194 = vunpack.c.h.b16 %v6015
    %v6195 = vunpack.c.l.b16 %v6016
    %v6196 = vunpack.c.h.b16 %v6016
    %v6197 = vunpack.c.l.b16 %v6017
    %v6198 = vunpack.c.h.b16 %v6017
    %v6199 = vunpack.c.l.b16 %v6018
    %v6200 = vunpack.c.h.b16 %v6018
    %v6201 = vunpack.c.l.b16 %v6019
    %v6202 = vunpack.c.h.b16 %v6019
    %v6203 = vunpack.c.l.b16 %v6020
    %v6204 = vunpack.c.h.b16 %v6020
    %v6205 = vunpack.c.l.b16 %v6021
    %v6206 = vunpack.c.h.b16 %v6021
    %v6207 = vunpack.c.l.b16 %v6022
    %v6208 = vunpack.c.h.b16 %v6022
    %v6209 = vunpack.c.l.b16 %v6023
    %v6210 = vunpack.c.h.b16 %v6023
    %v6211 = vunpack.c.l.b16 %v6024
    %v6212 = vunpack.c.h.b16 %v6024
    %v6213 = vunpack.c.l.b16 %v6025
    %v6214 = vunpack.c.h.b16 %v6025
    %v6215 = vunpack.c.l.b16 %v6026
    %v6216 = vunpack.c.h.b16 %v6026
    %v6217 = vunpack.c.l.b16 %v6027
    %v6218 = vunpack.c.h.b16 %v6027
    %v6219 = vunpack.c.l.b16 %v6028
    %v6220 = vunpack.c.h.b16 %v6028
    %v6221 = vunpack.c.l.b16 %v6029
    %v6222 = vunpack.c.h.b16 %v6029
    %v6223 = vunpack.c.l.b16 %v6030
    %v6224 = vunpack.c.h.b16 %v6030
    %v6225 = vunpack.c.l.b16 %v6031
    %v6226 = vunpack.c.h.b16 %v6031
    %v6227 = vunpack.c.l.b16 %v6032
    %v6228 = vunpack.c.h.b16 %v6032
    %v6229 = vunpack.c.l.b16 %v6033
    %v6230 = vunpack.c.h.b16 %v6033
    %v6231 = vunpack.c.l.b16 %v6034
    %v6232 = vunpack.c.h.b16 %v6034
    %v6233 = vunpack.c.l.b16 %v6035
    %v6234 = vunpack.c.h.b16 %v6035
    %v6235 = vunpack.c.l.b16 %v6036
    %v6236 = vunpack.c.h.b16 %v6036
    %v6237 = vunpack.c.l.b16 %v6037
    %v6238 = vunpack.c.h.b16 %v6037
    %v6239 = vunpack.c.l.b16 %v6038
    %v6240 = vunpack.c.h.b16 %v6038
    %v6241 = vunpack.c.l.b16 %v6039
    %v6242 = vunpack.c.h.b16 %v6039
    %v6243 = vunpack.c.l.b16 %v6040
    %v6244 = vunpack.c.h.b16 %v6040
    %v6245 = vpack.c.b16 %v6119, %v6117
    %v6246 = vpack.c.b16 %v6120, %v6118
    %v6247 = vpack.c.b16 %v6123, %v6121
    %v6248 = vpack.c.b16 %v6124, %v6122
    %v6249 = vpack.c.b16 %v6127, %v6125
    %v6250 = vpack.c.b16 %v6128, %v6126
    %v6251 = vpack.c.b16 %v6131, %v6129
    %v6252 = vpack.c.b16 %v6132, %v6130
    %v6253 = vpack.c.b16 %v6135, %v6133
    %v6254 = vpack.c.b16 %v6136, %v6134
    %v6255 = vpack.c.b16 %v6139, %v6137
    %v6256 = vpack.c.b16 %v6140, %v6138
    %v6257 = vpack.c.b16 %v6143, %v6141
    %v6258 = vpack.c.b16 %v6144, %v6142
    %v6259 = vpack.c.b16 %v6147, %v6145
    %v6260 = vpack.c.b16 %v6148, %v6146
    %v6261 = vpack.c.b16 %v6151, %v6149
    %v6262 = vpack.c.b16 %v6152, %v6150
    %v6263 = vpack.c.b16 %v6155, %v6153
    %v6264 = vpack.c.b16 %v6156, %v6154
    %v6265 = vpack.c.b16 %v6159, %v6157
    %v6266 = vpack.c.b16 %v6160, %v6158
    %v6267 = vpack.c.b16 %v6163, %v6161
    %v6268 = vpack.c.b16 %v6164, %v6162
    %v6269 = vpack.c.b16 %v6167, %v6165
    %v6270 = vpack.c.b16 %v6168, %v6166
    %v6271 = vpack.c.b16 %v6171, %v6169
    %v6272 = vpack.c.b16 %v6172, %v6170
    %v6273 = vpack.c.b16 %v6175, %v6173
    %v6274 = vpack.c.b16 %v6176, %v6174
    %v6275 = vpack.c.b16 %v6179, %v6177
    %v6276 = vpack.c.b16 %v6180, %v6178
    %v6277 = vpack.c.b16 %v6183, %v6181
    %v6278 = vpack.c.b16 %v6184, %v6182
    %v6279 = vpack.c.b16 %v6187, %v6185
    %v6280 = vpack.c.b16 %v6188, %v6186
    %v6281 = vpack.c.b16 %v6191, %v6189
    %v6282 = vpack.c.b16 %v6192, %v6190
    %v6283 = vpack.c.b16 %v6195, %v6193
    %v6284 = vpack.c.b16 %v6196, %v6194
    %v6285 = vpack.c.b16 %v6199, %v6197
    %v6286 = vpack.c.b16 %v6200, %v6198
    %v6287 = vpack.c.b16 %v6203, %v6201
    %v6288 = vpack.c.b16 %v6204, %v6202
    %v6289 = vpack.c.b16 %v6207, %v6205
    %v6290 = vpack.c.b16 %v6208, %v6206
    %v6291 = vpack.c.b16 %v6211, %v6209
    %v6292 = vpack.c.b16 %v6212, %v6210
    %v6293 = vpack.c.b16 %v6215, %v6213
    %v6294 = vpack.c.b16 %v6216, %v6214
    %v6295 = vpack.c.b16 %v6219, %v6217
    %v6296 = vpack.c.b16 %v6220, %v6218
    %v6297 = vpack.c.b16 %v6223, %v6221
    %v6298 = vpack.c.b16 %v6224, %v6222
    %v6299 = vpack.c.b16 %v6227, %v6225
    %v6300 = vpack.c.b16 %v6228, %v6226
    %v6301 = vpack.c.b16 %v6231, %v6229
    %v6302 = vpack.c.b16 %v6232, %v6230
    %v6303 = vpack.c.b16 %v6235, %v6233
    %v6304 = vpack.c.b16 %v6236, %v6234
    %v6305 = vpack.c.b16 %v6239, %v6237
    %v6306 = vpack.c.b16 %v6240, %v6238
    %v6307 = vpack.c.b16 %v6243, %v6241
    %v6308 = vpack.c.b16 %v6244, %v6242
    %6373 = vmatprep.subr.bf16.mxu0 %v6246
    %6374 = vmatpush1.bf16.msra.mxu0 %v6245
    %6375 = vmatprep.subr.bf16.mxu0 %v6248
    %6376 = vmatpush1.bf16.msra.mxu0 %v6247
    %6377 = vmatprep.subr.bf16.mxu0 %v6250
    %6378 = vmatpush1.bf16.msra.mxu0 %v6249
    %6379 = vmatprep.subr.bf16.mxu0 %v6252
    %6380 = vmatpush1.bf16.msra.mxu0 %v6251
    %6381 = vmatprep.subr.bf16.mxu0 %v6254
    %6382 = vmatpush1.bf16.msra.mxu0 %v6253
    %6383 = vmatprep.subr.bf16.mxu0 %v6256
    %6384 = vmatpush1.bf16.msra.mxu0 %v6255
    %6385 = vmatprep.subr.bf16.mxu0 %v6258
    %6386 = vmatpush1.bf16.msra.mxu0 %v6257
    %6387 = vmatprep.subr.bf16.mxu0 %v6260
    %6388 = vmatpush1.bf16.msra.mxu0 %v6259
    %6389 = vmatprep.subr.bf16.mxu0 %v6262
    %6390 = vmatpush1.bf16.msra.mxu0 %v6261
    %6391 = vmatprep.subr.bf16.mxu0 %v6264
    %6392 = vmatpush1.bf16.msra.mxu0 %v6263
    %6393 = vmatprep.subr.bf16.mxu0 %v6266
    %6394 = vmatpush1.bf16.msra.mxu0 %v6265
    %6395 = vmatprep.subr.bf16.mxu0 %v6268
    %6396 = vmatpush1.bf16.msra.mxu0 %v6267
    %6397 = vmatprep.subr.bf16.mxu0 %v6270
    %6398 = vmatpush1.bf16.msra.mxu0 %v6269
    %6399 = vmatprep.subr.bf16.mxu0 %v6272
    %6400 = vmatpush1.bf16.msra.mxu0 %v6271
    %6401 = vmatprep.subr.bf16.mxu0 %v6274
    %6402 = vmatpush1.bf16.msra.mxu0 %v6273
    %6403 = vmatprep.subr.bf16.mxu0 %v6276
    %6404 = vmatpush1.bf16.msra.mxu0 %v6275
    %6405 = vmatprep.mubr.bf16.mxu0 %v5974
    %6406 = vmatmul.mubr.bf16.gmra.mrb[0].mxu0 %v5973
    %v6407 = vpop.f32.mrb[0].mxu0
    %v6408 = vadd.f32 %v6046, %v6407
    %v6409 = vpop.f32.mrb[0].mxu0
    %v6410 = vadd.f32 %v6050, %v6409
    %v6411 = vpop.f32.mrb[0].mxu0
    %v6412 = vadd.f32 %v6046, %v6411
    %v6413 = vpop.f32.mrb[0].mxu0
    %v6414 = vadd.f32 %v6050, %v6413
    %6415 = vdwg.mxu0
    %6416 = vmatprep.subr.bf16.mxu0 %v6278
    %6417 = vmatpush1.bf16.msra.mxu0 %v6277
    %6418 = vmatprep.subr.bf16.mxu0 %v6280
    %6419 = vmatpush1.bf16.msra.mxu0 %v6279
    %6420 = vmatprep.subr.bf16.mxu0 %v6282
    %6421 = vmatpush1.bf16.msra.mxu0 %v6281
    %6422 = vmatprep.subr.bf16.mxu0 %v6284
    %6423 = vmatpush1.bf16.msra.mxu0 %v6283
    %6424 = vmatprep.subr.bf16.mxu0 %v6286
    %6425 = vmatpush1.bf16.msra.mxu0 %v6285
    %6426 = vmatprep.subr.bf16.mxu0 %v6288
    %6427 = vmatpush1.bf16.msra.mxu0 %v6287
    %6428 = vmatprep.subr.bf16.mxu0 %v6290
    %6429 = vmatpush1.bf16.msra.mxu0 %v6289
    %6430 = vmatprep.subr.bf16.mxu0 %v6292
    %6431 = vmatpush1.bf16.msra.mxu0 %v6291
    %6432 = vmatprep.subr.bf16.mxu0 %v6294
    %6433 = vmatpush1.bf16.msra.mxu0 %v6293
    %6434 = vmatprep.subr.bf16.mxu0 %v6296
    %6435 = vmatpush1.bf16.msra.mxu0 %v6295
    %6436 = vmatprep.subr.bf16.mxu0 %v6298
    %6437 = vmatpush1.bf16.msra.mxu0 %v6297
    %6438 = vmatprep.subr.bf16.mxu0 %v6300
    %6439 = vmatpush1.bf16.msra.mxu0 %v6299
    %6440 = vmatprep.subr.bf16.mxu0 %v6302
    %6441 = vmatpush1.bf16.msra.mxu0 %v6301
    %6442 = vmatprep.subr.bf16.mxu0 %v6304
    %6443 = vmatpush1.bf16.msra.mxu0 %v6303
    %6444 = vmatprep.subr.bf16.mxu0 %v6306
    %6445 = vmatpush1.bf16.msra.mxu0 %v6305
    %6446 = vmatprep.subr.bf16.mxu0 %v6308
    %6447 = vmatpush1.bf16.msra.mxu0 %v6307
    %6448 = vmatprep.mubr.bf16.mxu0 %v5976
    %6449 = vmatmul.mubr.bf16.gmra.mrb[0].mxu0 %v5975
    %v6450 = vpop.f32.mrb[0].mxu0
    %v6451 = vadd.f32 %v6408, %v6450
    %v6452 = vpop.f32.mrb[0].mxu0
    %v6453 = vadd.f32 %v6410, %v6452
    %v6454 = vpop.f32.mrb[0].mxu0
    %v6455 = vadd.f32 %v6412, %v6454
    %v6456 = vpop.f32.mrb[0].mxu0
    %v6457 = vadd.f32 %v6414, %v6456
    %6458 = vdwg.mxu0
    %v6459 = vmul.f32 %v6451, 0.2
    %v6460 = vmul.f32 %v6453, 0.2
    %v6461 = vmul.f32 %v6455, 0.2
    %v6462 = vmul.f32 %v6457, 0.2
    %v6463 = vmax.f32 %v6451, %v6459
    %v6464 = vmax.f32 %v6453, %v6460
    %v6465 = vmax.f32 %v6455, %v6461
    %v6466 = vmax.f32 %v6457, %v6462
    %v6467 = vpack.c.bf16 %v6465, %v6463
    %v6468 = vpack.c.bf16 %v6466, %v6464
    %v6469 = vld [vmem:[#allocation12] sm:$0xf]
    %v6470 = vld [vmem:[#allocation12 + $0x4] sm:$0xf]
    %v6471 = vld [vmem:[#allocation12 + $0x8] sm:$0xf]
    %v6472 = vld [vmem:[#allocation12 + $0xc] sm:$0xf]
    %v6473 = vld [vmem:[#allocation12 + $0x10] sm:$0xf]
    %v6474 = vld [vmem:[#allocation12 + $0x14] sm:$0xf]
    %v6475 = vld [vmem:[#allocation12 + $0x18] sm:$0xf]
    %v6476 = vld [vmem:[#allocation12 + $0x1c] sm:$0xf]
    %v6477 = vld [vmem:[#allocation12 + $0x20] sm:$0xf]
    %v6478 = vld [vmem:[#allocation12 + $0x24] sm:$0xf]
    %v6479 = vld [vmem:[#allocation12 + $0x28] sm:$0xf]
    %v6480 = vld [vmem:[#allocation12 + $0x2c] sm:$0xf]
    %v6481 = vld [vmem:[#allocation12 + $0x30] sm:$0xf]
    %v6482 = vld [vmem:[#allocation12 + $0x34] sm:$0xf]
    %v6483 = vld [vmem:[#allocation12 + $0x38] sm:$0xf]
    %v6484 = vld [vmem:[#allocation12 + $0x3c] sm:$0xf]
    %v6485 = vld [vmem:[#allocation12 + $0x40] sm:$0xf]
    %v6486 = vld [vmem:[#allocation12 + $0x44] sm:$0xf]
    %v6487 = vld [vmem:[#allocation12 + $0x48] sm:$0xf]
    %v6488 = vld [vmem:[#allocation12 + $0x4c] sm:$0xf]
    %v6489 = vld [vmem:[#allocation12 + $0x50] sm:$0xf]
    %v6490 = vld [vmem:[#allocation12 + $0x54] sm:$0xf]
    %v6491 = vld [vmem:[#allocation12 + $0x58] sm:$0xf]
    %v6492 = vld [vmem:[#allocation12 + $0x5c] sm:$0xf]
    %v6493 = vld [vmem:[#allocation12 + $0x60] sm:$0xf]
    %v6494 = vld [vmem:[#allocation12 + $0x64] sm:$0xf]
    %v6495 = vld [vmem:[#allocation12 + $0x68] sm:$0xf]
    %v6496 = vld [vmem:[#allocation12 + $0x6c] sm:$0xf]
    %v6497 = vld [vmem:[#allocation12 + $0x70] sm:$0xf]
    %v6498 = vld [vmem:[#allocation12 + $0x74] sm:$0xf]
    %v6499 = vld [vmem:[#allocation12 + $0x78] sm:$0xf]
    %v6500 = vld [vmem:[#allocation12 + $0x7c] sm:$0xf]
    %v6501 = vld [vmem:[#allocation13] sm:$0x1]
    %v6503 = vlaneseq
    %v6504 = vshrl.u32 %v6503, 7
    %v6505 = vsub.s32 0, %v6504
    %v6506 = vrot.slane %v6501, %v6505
    %v6540 = vunpack.c.l.b16 %v6469
    %v6541 = vunpack.c.l.b16 %v6470
    %v6542 = vunpack.c.l.b16 %v6471
    %v6543 = vunpack.c.l.b16 %v6472
    %v6544 = vunpack.c.l.b16 %v6473
    %v6545 = vunpack.c.l.b16 %v6474
    %v6546 = vunpack.c.l.b16 %v6475
    %v6547 = vunpack.c.l.b16 %v6476
    %v6548 = vunpack.c.l.b16 %v6477
    %v6549 = vunpack.c.l.b16 %v6478
    %v6550 = vunpack.c.l.b16 %v6479
    %v6551 = vunpack.c.l.b16 %v6480
    %v6552 = vunpack.c.l.b16 %v6481
    %v6553 = vunpack.c.l.b16 %v6482
    %v6554 = vunpack.c.l.b16 %v6483
    %v6555 = vunpack.c.l.b16 %v6484
    %v6556 = vunpack.c.l.b16 %v6485
    %v6557 = vunpack.c.l.b16 %v6486
    %v6558 = vunpack.c.l.b16 %v6487
    %v6559 = vunpack.c.l.b16 %v6488
    %v6560 = vunpack.c.l.b16 %v6489
    %v6561 = vunpack.c.l.b16 %v6490
    %v6562 = vunpack.c.l.b16 %v6491
    %v6563 = vunpack.c.l.b16 %v6492
    %v6564 = vunpack.c.l.b16 %v6493
    %v6565 = vunpack.c.l.b16 %v6494
    %v6566 = vunpack.c.l.b16 %v6495
    %v6567 = vunpack.c.l.b16 %v6496
    %v6568 = vunpack.c.l.b16 %v6497
    %v6569 = vunpack.c.l.b16 %v6498
    %v6570 = vunpack.c.l.b16 %v6499
    %v6571 = vunpack.c.l.b16 %v6500
    %v6572 = vpack.c.b16 %v6541, %v6540
    %v6573 = vpack.c.b16 %v6543, %v6542
    %v6574 = vpack.c.b16 %v6545, %v6544
    %v6575 = vpack.c.b16 %v6547, %v6546
    %v6576 = vpack.c.b16 %v6549, %v6548
    %v6577 = vpack.c.b16 %v6551, %v6550
    %v6578 = vpack.c.b16 %v6553, %v6552
    %v6579 = vpack.c.b16 %v6555, %v6554
    %v6580 = vpack.c.b16 %v6557, %v6556
    %v6581 = vpack.c.b16 %v6559, %v6558
    %v6582 = vpack.c.b16 %v6561, %v6560
    %v6583 = vpack.c.b16 %v6563, %v6562
    %v6584 = vpack.c.b16 %v6565, %v6564
    %v6585 = vpack.c.b16 %v6567, %v6566
    %v6586 = vpack.c.b16 %v6569, %v6568
    %v6587 = vpack.c.b16 %v6571, %v6570
    %6604 = vmatprep.subr.bf16.mxu0 0
    %6605 = vmatpush1.bf16.msra.mxu0 %v6572
    %6606 = vmatprep.subr.bf16.mxu0 0
    %6607 = vmatpush1.bf16.msra.mxu0 %v6573
    %6608 = vmatprep.subr.bf16.mxu0 0
    %6609 = vmatpush1.bf16.msra.mxu0 %v6574
    %6610 = vmatprep.subr.bf16.mxu0 0
    %6611 = vmatpush1.bf16.msra.mxu0 %v6575
    %6612 = vmatprep.subr.bf16.mxu0 0
    %6613 = vmatpush1.bf16.msra.mxu0 %v6576
    %6614 = vmatprep.subr.bf16.mxu0 0
    %6615 = vmatpush1.bf16.msra.mxu0 %v6577
    %6616 = vmatprep.subr.bf16.mxu0 0
    %6617 = vmatpush1.bf16.msra.mxu0 %v6578
    %6618 = vmatprep.subr.bf16.mxu0 0
    %6619 = vmatpush1.bf16.msra.mxu0 %v6579
    %6620 = vmatprep.subr.bf16.mxu0 0
    %6621 = vmatpush1.bf16.msra.mxu0 %v6580
    %6622 = vmatprep.subr.bf16.mxu0 0
    %6623 = vmatpush1.bf16.msra.mxu0 %v6581
    %6624 = vmatprep.subr.bf16.mxu0 0
    %6625 = vmatpush1.bf16.msra.mxu0 %v6582
    %6626 = vmatprep.subr.bf16.mxu0 0
    %6627 = vmatpush1.bf16.msra.mxu0 %v6583
    %6628 = vmatprep.subr.bf16.mxu0 0
    %6629 = vmatpush1.bf16.msra.mxu0 %v6584
    %6630 = vmatprep.subr.bf16.mxu0 0
    %6631 = vmatpush1.bf16.msra.mxu0 %v6585
    %6632 = vmatprep.subr.bf16.mxu0 0
    %6633 = vmatpush1.bf16.msra.mxu0 %v6586
    %6634 = vmatprep.subr.bf16.mxu0 0
    %6635 = vmatpush1.bf16.msra.mxu0 %v6587
    %6636 = vmatprep.mubr.bf16.mxu0 %v6468
    %6637 = vmatmul.mubr.bf16.gmra.mrb[0].mxu0 %v6467
    %v6638 = vpop.f32.mrb[0].mxu0
    %v6639 = vadd.f32 %v6506, %v6638
    %v6640 = vpop.f32.mrb[0].mxu0
    %v6641 = vpop.f32.mrb[0].mxu0
    %v6642 = vadd.f32 %v6506, %v6641
    %v6643 = vpop.f32.mrb[0].mxu0
    %6644 = vdwg.mxu0
    %v6645 = vmul.f32 %v6639, 0.2
    %v6646 = vmul.f32 %v6642, 0.2
    %v6647 = vmax.f32 %v6639, %v6645
    %v6648 = vmax.f32 %v6642, %v6646
    %v6649 = vpack.c.bf16 %v6648, %v6647
    %v6650 = vld [vmem:[#allocation15] sm:$0xf]
    %v6651 = vld [vmem:[#allocation15 + $0x4] sm:$0xf]
    %v6652 = vld [vmem:[#allocation15 + $0x8] sm:$0xf]
    %v6653 = vld [vmem:[#allocation15 + $0xc] sm:$0xf]
    %v6654 = vld [vmem:[#allocation15 + $0x10] sm:$0xf]
    %v6655 = vld [vmem:[#allocation15 + $0x14] sm:$0xf]
    %v6656 = vld [vmem:[#allocation15 + $0x18] sm:$0xf]
    %v6657 = vld [vmem:[#allocation15 + $0x1c] sm:$0xf]
    %v6658 = vld [vmem:[#allocation15 + $0x20] sm:$0xf]
    %v6659 = vld [vmem:[#allocation15 + $0x24] sm:$0xf]
    %v6660 = vld [vmem:[#allocation15 + $0x28] sm:$0xf]
    %v6661 = vld [vmem:[#allocation15 + $0x2c] sm:$0xf]
    %v6662 = vld [vmem:[#allocation15 + $0x30] sm:$0xf]
    %v6663 = vld [vmem:[#allocation15 + $0x34] sm:$0xf]
    %v6664 = vld [vmem:[#allocation15 + $0x38] sm:$0xf]
    %v6665 = vld [vmem:[#allocation15 + $0x3c] sm:$0xf]
    %v6666 = vld [vmem:[#allocation16] sm:$0x1]
    %v6668 = vlaneseq
    %v6669 = vshrl.u32 %v6668, 7
    %v6670 = vsub.s32 0, %v6669
    %v6671 = vrot.slane %v6666, %v6670
    %v6689 = vunpack.c.l.b16 %v6650
    %v6690 = vunpack.c.l.b16 %v6651
    %v6691 = vunpack.c.l.b16 %v6652
    %v6692 = vunpack.c.l.b16 %v6653
    %v6693 = vunpack.c.l.b16 %v6654
    %v6694 = vunpack.c.l.b16 %v6655
    %v6695 = vunpack.c.l.b16 %v6656
    %v6696 = vunpack.c.l.b16 %v6657
    %v6697 = vunpack.c.l.b16 %v6658
    %v6698 = vunpack.c.l.b16 %v6659
    %v6699 = vunpack.c.l.b16 %v6660
    %v6700 = vunpack.c.l.b16 %v6661
    %v6701 = vunpack.c.l.b16 %v6662
    %v6702 = vunpack.c.l.b16 %v6663
    %v6703 = vunpack.c.l.b16 %v6664
    %v6704 = vunpack.c.l.b16 %v6665
    %v6705 = vpack.c.b16 %v6690, %v6689
    %v6706 = vpack.c.b16 %v6692, %v6691
    %v6707 = vpack.c.b16 %v6694, %v6693
    %v6708 = vpack.c.b16 %v6696, %v6695
    %v6709 = vpack.c.b16 %v6698, %v6697
    %v6710 = vpack.c.b16 %v6700, %v6699
    %v6711 = vpack.c.b16 %v6702, %v6701
    %v6712 = vpack.c.b16 %v6704, %v6703
    %6721 = vmatprep.subr.bf16.mxu0 0
    %6722 = vmatpush1.bf16.msra.mxu0 %v6705
    %6723 = vmatprep.subr.bf16.mxu0 0
    %6724 = vmatpush1.bf16.msra.mxu0 %v6706
    %6725 = vmatprep.subr.bf16.mxu0 0
    %6726 = vmatpush1.bf16.msra.mxu0 %v6707
    %6727 = vmatprep.subr.bf16.mxu0 0
    %6728 = vmatpush1.bf16.msra.mxu0 %v6708
    %6729 = vmatprep.subr.bf16.mxu0 0
    %6730 = vmatpush1.bf16.msra.mxu0 %v6709
    %6731 = vmatprep.subr.bf16.mxu0 0
    %6732 = vmatpush1.bf16.msra.mxu0 %v6710
    %6733 = vmatprep.subr.bf16.mxu0 0
    %6734 = vmatpush1.bf16.msra.mxu0 %v6711
    %6735 = vmatprep.subr.bf16.mxu0 0
    %6736 = vmatpush1.bf16.msra.mxu0 %v6712
    %6737 = vmatprep.subr.bf16.mxu0 0
    %6738 = vmatpush1.bf16.msra.mxu0 0
    %6739 = vmatprep.subr.bf16.mxu0 0
    %6740 = vmatpush1.bf16.msra.mxu0 0
    %6741 = vmatprep.subr.bf16.mxu0 0
    %6742 = vmatpush1.bf16.msra.mxu0 0
    %6743 = vmatprep.subr.bf16.mxu0 0
    %6744 = vmatpush1.bf16.msra.mxu0 0
    %6745 = vmatprep.subr.bf16.mxu0 0
    %6746 = vmatpush1.bf16.msra.mxu0 0
    %6747 = vmatprep.subr.bf16.mxu0 0
    %6748 = vmatpush1.bf16.msra.mxu0 0
    %6749 = vmatprep.subr.bf16.mxu0 0
    %6750 = vmatpush1.bf16.msra.mxu0 0
    %6751 = vmatprep.subr.bf16.mxu0 0
    %6752 = vmatpush1.bf16.msra.mxu0 0
    %6753 = vmatprep.mubr.bf16.mxu0 0
    %6754 = vmatmul.mubr.bf16.gmra.mrb[0].mxu0 %v6649
    %v6755 = vpop.f32.mrb[0].mxu0
    %v6756 = vadd.f32 %v6671, %v6755
    %v6757 = vpop.f32.mrb[0].mxu0
    %v6758 = vpop.f32.mrb[0].mxu0
    %v6759 = vadd.f32 %v6671, %v6758
    %v6760 = vpop.f32.mrb[0].mxu0
    %6761 = vdwg.mxu0
    %v6762 = vtanh.pop %v6756
    %v6763 = vtanh.pop %v6759
    %6764 = vst [vmem:[%s11] sm:$0xff] %v6762
    %6765 = vst [vmem:[%s11 + $0x8] sm:$0xff] %v6763
    // Predicated region
    $region86: #{encoder_forward.1} parent=1 // pred_check
      _
    $region87: #{encoder_forward.1} parent=1 // pred_check_branch
      %6767 = sbr.rel (0) target = $region89
    $region88: #{encoder_forward.1} parent=1 // pred_region
      _
    $region89: #{encoder_forward.1} parent=1 // pred_fallthru
      _
    // Predicated region
    $region90: #{encoder_forward.1} parent=1 // pred_check
      _
    $region91: #{encoder_forward.1} parent=1 // pred_check_branch
      %6769 = sbr.rel (0) target = $region93
    $region92: #{encoder_forward.1} parent=1 // pred_region
      _
    $region93: #{encoder_forward.1} parent=1 // pred_fallthru
      _
    %6770 = vsyncpa [#allocation3], 1
    %6771 = vsyncpa [#allocation5], 1
    %6772 = vsyncpa [#allocation8], 1
    %6773 = vsyncpa [#allocation11], 1
    %6774 = vsyncpa [#allocation14], 1
    %6775 = vsyncpa [#allocation17], 1

</llo_original>
